<compile_context>
chip_gen: v6e
topology: v6e:2x2x1
jax: 0.10.0
libtpu: 0.0.40
codegen_flags: <defaults>
</compile_context>

<pallas_src>
import functools

import numpy as np
import jax
import jax.numpy as jnp
from jax.experimental import pallas as pl
from jax.experimental.pallas import tpu as pltpu

# ----------------------------- model dimensions ------------------------------
INPLANES = 16          # must equal PLANES * EXPANSION so the residual add works
PLANES = 4
EXPANSION = 4
OUP1 = PLANES                      # MLModule1 oup
INIT1 = -(-OUP1 // 2)              # ceil(4/2) = 2
NEW1 = INIT1                       # ratio=2 -> new = init
OUP2 = PLANES * EXPANSION          # MLModule2 oup = 16
INIT2 = -(-OUP2 // 2)              # 8
NEW2 = INIT2                       # 8
BN_EPS = 1e-5

FOLD_SHIFTS = (-2, -1, 0, 1)       # row/col offsets of the sub+upsample stencil
LANE_ROWS = 32                     # rows 0:9 dw masks, 16:20 W-fold, 24:28 H-fold


# -------------------- pltpu.roll direction probe (one time) ------------------
_ROLL_MODE = None


def _roll_mode():
    """Locks pltpu.roll's rotation convention with a 1-vreg probe; falls back to
    slice+concat if roll is unavailable.  Keeps the main kernel robust."""
    global _ROLL_MODE
    if _ROLL_MODE is not None:
        return _ROLL_MODE
    try:
        def k(x_ref, o_ref):
            o_ref[...] = pltpu.roll(x_ref[...], 1, 1)

        probe = jnp.tile(jnp.arange(128, dtype=jnp.float32)[None, :], (8, 1))
        out = pl.pallas_call(
            k, out_shape=jax.ShapeDtypeStruct((8, 128), jnp.float32))(probe)
        v = float(out[0, 0])
        if v == 127.0:
            _ROLL_MODE = "np"        # pltpu.roll behaves like jnp.roll
        elif v == 1.0:
            _ROLL_MODE = "rev"       # opposite rotation convention
        else:
            _ROLL_MODE = "concat"
    except Exception:
        _ROLL_MODE = "concat"
    return _ROLL_MODE


# ------------------------- host-side constant builders ------------------------
def _bilinear_matrix(n_in):
    """(2*n_in, n_in) matrix == torch Upsample(bilinear, align_corners=False)."""
    n_out = 2 * n_in
    i = np.arange(n_out, dtype=np.float64)
    src = np.clip((i + 0.5) * (n_in / n_out) - 0.5, 0.0, None)
    x0 = np.minimum(np.floor(src).astype(np.int64), n_in - 1)
    x1 = np.minimum(x0 + 1, n_in - 1)
    lam = src - x0
    m = np.zeros((n_out, n_in), dtype=np.float64)
    m[np.arange(n_out), x0] += 1.0 - lam
    m[np.arange(n_out), x1] += lam
    return m


def _fold_1d_weights(n_full):
    """Shift decomposition of (even-subsample -> x2 bilinear upsample) along one
    axis:  out[i] = sum_k w[k, i] * f[i + FOLD_SHIFTS[k]].   Returns (4, n_full)."""
    n_half = n_full // 2
    sel = np.zeros((n_half, n_full))
    sel[np.arange(n_half), 2 * np.arange(n_half)] = 1.0
    A = _bilinear_matrix(n_half) @ sel                   # (n_full, n_full)
    w = np.zeros((len(FOLD_SHIFTS), n_full), np.float64)
    cov = np.zeros_like(A)
    for k, d in enumerate(FOLD_SHIFTS):
        for i in range(n_full):
            j = i + d
            if 0 <= j < n_full:
                w[k, i] = A[i, j]
                cov[i, j] = A[i, j]
    # guard: the 4-tap shift set must cover the whole stencil (correctness review)
    assert np.allclose(cov, A), "fold shift set does not cover the upsample stencil"
    return w


def _lane_constants(H, W):
    """(LANE_ROWS, H*W) slab of lane-wise constants: depthwise boundary masks
    (rows 0:9) and separable fold weights (rows 16:20 = W dir, 24:28 = H dir)."""
    N = H * W
    h = np.arange(N) // W
    w = np.arange(N) % W
    slab = np.zeros((LANE_ROWS, N), np.float32)
    for kh in range(3):
        for kw in range(3):
            ok = ((h + kh - 1 >= 0) & (h + kh - 1 < H)
                  & (w + kw - 1 >= 0) & (w + kw - 1 < W))
            slab[kh * 3 + kw] = ok.astype(np.float32)
    slab[16:20] = _fold_1d_weights(W)[:, w]
    slab[24:28] = _fold_1d_weights(H)[:, h]
    return slab


def _slab_layout(bt):
    """Static (rows, col_offset, width) layout of the packed weight slab."""
    lay = {}
    col = [0]

    def add(name, rows, width):
        lay[name] = (rows, col[0], width)
        col[0] += width

    add('w1', 2 * bt, 16 * bt)      # block-diag first 1x1 (BN folded)
    add('w2', 2 * bt, 2 * bt)       # block-diag second 1x1
    add('w3lo', 8 * bt, 2 * bt)     # block-diag low_level_conv, m1 channels 0:2
    add('w3hi', 8 * bt, 2 * bt)     # block-diag low_level_conv, m1 channels 2:4
    add('t1', 2 * bt, 9)            # dw taps (BN folded), MLModule1.fixed_conv
    add('tclo', 2 * bt, 9)          # dw taps, conv3x3_modify channels 0:2
    add('tchi', 2 * bt, 9)          # dw taps, conv3x3_modify channels 2:4
    add('t2', 8 * bt, 9)            # dw taps, MLModule2.high_level_conv (stride 2)
    for name, rows in (('b1', 2 * bt), ('tb1', 2 * bt), ('b2', 2 * bt),
                       ('tbclo', 2 * bt), ('tbchi', 2 * bt), ('b3', 8 * bt),
                       ('tb2', 8 * bt), ('gsc', 8 * bt), ('gbi', 8 * bt)):
        add(name, rows, 1)
    return lay, col[0]


def _pack_weight_slab(p, bt):
    """Fold BN into the conv weights, batch-tile them (block-diag / row-tiled),
    and pack everything into one lane-padded VMEM slab."""
    f32 = jnp.float32
    w1f = p['m1_pw1_w'] * p['m1_bn1_s'][:, None]
    t1 = p['m1_dw_w'].reshape(INIT1, 9) * p['m1_bn2_s'][:, None]
    w2f = p['m1_pw2_w'] * p['m1_bn3_s'][:, None]
    tcf = p['c3_dw_w'].reshape(PLANES, 9) * p['c3_bn_s'][:, None]
    w3f = p['m2_pw1_w'] * p['m2_bn1_s'][:, None]
    t2 = p['m2_dw_w'].reshape(INIT2, 9) * p['m2_bn2_s'][:, None]
    gsc = p['m2_pw2_w'] * p['m2_bn3_s']
    gbi = p['m2_bn3_b']

    eye = jnp.eye(bt, dtype=f32)

    def bdiag(w):                       # batched 1x1 conv -> block-diagonal weight
        return jnp.kron(eye, w.astype(f32))

    def rep(v):                         # per-channel vector/taps tiled over batch
        v = v if v.ndim == 2 else v[:, None]
        return jnp.tile(v.astype(f32), (bt, 1))

    entries = {
        'w1': bdiag(w1f), 'w2': bdiag(w2f),
        'w3lo': bdiag(w3f[:, :INIT1]), 'w3hi': bdiag(w3f[:, INIT1:]),
        't1': rep(t1), 'tclo': rep(tcf[:INIT1]), 'tchi': rep(tcf[INIT1:]),
        't2': rep(t2),
        'b1': rep(p['m1_bn1_b']), 'tb1': rep(p['m1_bn2_b']), 'b2': rep(p['m1_bn3_b']),
        'tbclo': rep(p['c3_bn_b'][:INIT1]), 'tbchi': rep(p['c3_bn_b'][INIT1:]),
        'b3': rep(p['m2_bn1_b']), 'tb2': rep(p['m2_bn2_b']),
        'gsc': rep(gsc), 'gbi': rep(gbi),
    }
    lay, ncols = _slab_layout(bt)
    rows = 8 * bt
    ncols_pad = ((ncols + 127) // 128) * 128
    slab = jnp.zeros((rows, ncols_pad), f32)
    for name, (r, off, width) in lay.items():
        a = entries[name]
        assert a.shape == (r, width), (name, a.shape, (r, width))
        slab = slab.at[0:r, off:off + width].set(a)
    return slab, lay


def _pick_btile(B, max_tile=8):
    """Largest batch tile <= max_tile that divides B while keeping grid >= 2
    (so v7x megacore still gets both TensorCores)."""
    cands = [t for t in range(1, max_tile + 1) if B % t == 0 and B // t >= 2]
    return max(cands) if cands else B


# ------------------------------ fused Pallas kernel ---------------------------
def _fused_kernel(x_ref, w_ref, l_ref, o_ref, *, H, W, bt, lay, roll_mode):
    f32 = jnp.float32
    N = H * W

    def ld(name):                       # static slice of the packed weight slab
        rows, off, width = lay[name]
        return w_ref[0:rows, off:off + width]

    x = x_ref[...]                      # (bt*INPLANES, N), b-major rows, lane-dense
    masks = l_ref[0:9, :]               # (9, N) depthwise boundary masks
    wW = l_ref[16:20, :]                # (4, N) fold weights, W direction
    wH = l_ref[24:28, :]                # (4, N) fold weights, H direction

    def shift(y, s):
        """z[:, p] = y[:, (p + s) % N]; wrapped lanes are always masked out."""
        s = s % N
        if s == 0:
            return y
        if roll_mode == "np":           # pltpu.roll == jnp.roll convention
            return pltpu.roll(y, N - s, axis=1)
        if roll_mode == "rev":          # opposite rotation convention
            return pltpu.roll(y, s, axis=1)
        return jnp.concatenate([y[:, s:], y[:, :s]], axis=1)   # safe fallback

    def dw_pass(y, taps, biases):
        """One sweep over the 9 shifted views of y feeding len(taps) accumulators
        (the shifted views are shared between consumers)."""
        accs = [jnp.zeros_like(y) for _ in taps]
        for kh in range(3):
            for kw in range(3):
                t = kh * 3 + kw
                sh = shift(y, (kh - 1) * W + (kw - 1))
                if t != 4:              # center tap needs no boundary mask
                    sh = sh * masks[t:t + 1, :]
                accs = [a + tp[:, t:t + 1] * sh for a, tp in zip(accs, taps)]
        return [a + b for a, b in zip(accs, biases)]

    # --- MLModule1.first_conv: 1x1 + BN + ReLU ---
    a1 = jnp.maximum(jnp.dot(ld('w1'), x, preferred_element_type=f32) + ld('b1'), 0.0)

    # --- MLModule1.fixed_conv dw (t1) and conv3x3_modify low half (tclo) share
    #     a1's 9 shifted views (reuse -> one pass instead of two) ---
    a2p, bm_lo = dw_pass(a1, [ld('t1'), ld('tclo')], [ld('tb1'), ld('tbclo')])
    a2 = jnp.maximum(a2p, 0.0)

    # --- MLModule1.fixed_conv tail: 1x1 + BN + ReLU ---
    a3 = jnp.maximum(jnp.dot(ld('w2'), a2, preferred_element_type=f32) + ld('b2'), 0.0)

    # --- conv3x3_modify high half (m1 channels INIT1:PLANES = a3), BN, no ReLU ---
    (bm_hi,) = dw_pass(a3, [ld('tchi')], [ld('tbchi')])

    # --- MLModule2.low_level_conv: 1x1 + BN (contraction split -> no concat) ---
    c1 = (jnp.dot(ld('w3lo'), bm_lo, preferred_element_type=f32)
          + jnp.dot(ld('w3hi'), bm_hi, preferred_element_type=f32) + ld('b3'))

    # --- MLModule2.high_level_conv: stride-2 dw + BN + ReLU computed at stride 1
    #     (even-pixel subsample commutes with the elementwise BN/ReLU/affine) ---
    (fp,) = dw_pass(c1, [ld('t2')], [ld('tb2')])
    f = jnp.maximum(fp, 0.0)
    c3 = ld('gsc') * f + ld('gbi')      # grouped 1x1 + BN (per-channel affine)

    # --- (even-subsample -> x2 bilinear upsample) as separable masked lane shifts
    u = jnp.zeros_like(c3)
    for k, d in enumerate(FOLD_SHIFTS):
        u = u + wW[k:k + 1, :] * shift(c3, d)
    c4 = jnp.zeros_like(u)
    for k, d in enumerate(FOLD_SHIFTS):
        c4 = c4 + wH[k:k + 1, :] * shift(u, d * W)

    # --- concat([c1, c4])[:OUP2] + residual add + ReLU; aligned lane-dense stores
    for b in range(bt):
        xr = x[b * INPLANES:(b + 1) * INPLANES, :]
        lo = c1[b * INIT2:(b + 1) * INIT2, :]
        hi = c4[b * INIT2:(b + 1) * INIT2, :]
        o_ref[b * OUP2:b * OUP2 + INIT2, :] = jnp.maximum(lo + xr[0:INIT2, :], 0.0)
        o_ref[b * OUP2 + INIT2:(b + 1) * OUP2, :] = jnp.maximum(
            hi + xr[INIT2:OUP2, :], 0.0)


# ------------------------------ full forward ---------------------------------
def ml_bottleneck_forward(x, p, *, max_batch_tile=8):
    B, C, H, W = x.shape
    assert C == INPLANES and H % 2 == 0 and W % 2 == 0
    N = H * W
    bt = _pick_btile(B, max_batch_tile)
    roll_mode = _roll_mode()

    xf = x.reshape(B * C, N)                       # b-major rows: a free reshape
    lane = jnp.asarray(_lane_constants(H, W))      # (LANE_ROWS, N) constant
    wslab, lay = _pack_weight_slab(p, bt)          # single packed weight operand

    flops_per_pix = (2 * INIT1 * INPLANES + 4 * 9 * INIT1 + 2 * NEW1 * NEW1
                     + 2 * 9 * NEW1 + 2 * INIT2 * PLANES + 2 * 9 * INIT2
                     + 2 * INIT2 + 2 * len(FOLD_SHIFTS) * 2 * INIT2 + 3 * OUP2)
    cost = pl.CostEstimate(
        flops=int(B * N * flops_per_pix),
        transcendentals=0,
        bytes_accessed=int(4 * (B * N * (INPLANES + OUP2)
                                + wslab.size + lane.size)))

    kern = functools.partial(_fused_kernel, H=H, W=W, bt=bt, lay=lay,
                             roll_mode=roll_mode)
    out = pl.pallas_call(
        kern,
        out_shape=jax.ShapeDtypeStruct((B * OUP2, N), jnp.float32),
        grid=(B // bt,),
        in_specs=[
            pl.BlockSpec((bt * INPLANES, N), lambda i: (i, 0)),
            pl.BlockSpec(wslab.shape, lambda i: (0, 0)),
            pl.BlockSpec(lane.shape, lambda i: (0, 0)),
        ],
        out_specs=pl.BlockSpec((bt * OUP2, N), lambda i: (i, 0)),
        compiler_params=pltpu.CompilerParams(
            dimension_semantics=("parallel",)),     # megacore over batch tiles
        cost_estimate=cost,
    )(xf, wslab, lane)
    return out.reshape(B, OUP2, H, W)


# ------------------------------ parameters -----------------------------------
def init_params(key):
    keys = iter(jax.random.split(key, 40))

    def conv(shape, scale=0.3):
        return scale * jax.random.normal(next(keys), shape, jnp.float32)

    def bn(c):
        gamma = 1.0 + 0.1 * jax.random.normal(next(keys), (c,), jnp.float32)
        beta = 0.1 * jax.random.normal(next(keys), (c,), jnp.float32)
        mean = 0.1 * jax.random.normal(next(keys), (c,), jnp.float32)
        var = 1.0 + 0.1 * jnp.abs(jax.random.normal(next(keys), (c,), jnp.float32))
        s = gamma / jnp.sqrt(var + BN_EPS)
        b = beta - mean * s
        return s, b

    p = {}
    p['m1_pw1_w'] = conv((INIT1, INPLANES))              # Conv2d(16, 2, 1)
    p['m1_bn1_s'], p['m1_bn1_b'] = bn(INIT1)
    p['m1_dw_w'] = conv((INIT1, 3, 3))                   # Conv2d(2, 2, 3, groups=2)
    p['m1_bn2_s'], p['m1_bn2_b'] = bn(NEW1)
    p['m1_pw2_w'] = conv((NEW1, NEW1))                   # Conv2d(2, 2, 1)
    p['m1_bn3_s'], p['m1_bn3_b'] = bn(NEW1)
    p['c3_dw_w'] = conv((PLANES, 3, 3))                  # Conv2d(4, 4, 3, groups=4)
    p['c3_bn_s'], p['c3_bn_b'] = bn(PLANES)
    p['m2_pw1_w'] = conv((INIT2, PLANES))                # Conv2d(4, 8, 1)
    p['m2_bn1_s'], p['m2_bn1_b'] = bn(INIT2)
    p['m2_dw_w'] = conv((INIT2, 3, 3))                   # Conv2d(8, 8, 3, s=2, groups=8)
    p['m2_bn2_s'], p['m2_bn2_b'] = bn(INIT2)
    p['m2_pw2_w'] = conv((NEW2,))                        # Conv2d(8, 8, 1, groups=8)
    p['m2_bn3_s'], p['m2_bn3_b'] = bn(NEW2)
    return p


# ------------------------------ pure-JAX reference ----------------------------
def _ref_forward(x, p):
    def conv1x1(t, w):
        return jax.lax.conv_general_dilated(
            t, w[:, :, None, None], (1, 1), 'VALID',
            dimension_numbers=('NCHW', 'OIHW', 'NCHW'))

    def dw3x3(t, w, stride):
        C = t.shape[1]
        return jax.lax.conv_general_dilated(
            t, w[:, None, :, :], (stride, stride), ((1, 1), (1, 1)),
            dimension_numbers=('NCHW', 'OIHW', 'NCHW'), feature_group_count=C)

    def bn(t, s, b):
        return t * s[None, :, None, None] + b[None, :, None, None]

    relu = lambda t: jnp.maximum(t, 0.0)

    def upsample2x(t):
        _, _, H, W = t.shape

        def idx(n):
            i = jnp.arange(2 * n, dtype=jnp.float32)
            src = jnp.clip((i + 0.5) * 0.5 - 0.5, 0.0, None)
            x0 = jnp.clip(jnp.floor(src).astype(jnp.int32), 0, n - 1)
            x1 = jnp.clip(x0 + 1, 0, n - 1)
            return x0, x1, src - x0

        h0, h1, lh = idx(H)
        w0, w1, lw = idx(W)
        top = (t[:, :, h0, :] * (1 - lh)[None, None, :, None]
               + t[:, :, h1, :] * lh[None, None, :, None])
        return (top[:, :, :, w0] * (1 - lw)[None, None, None, :]
                + top[:, :, :, w1] * lw[None, None, None, :])

    a1 = relu(bn(conv1x1(x, p['m1_pw1_w']), p['m1_bn1_s'], p['m1_bn1_b']))
    a2 = relu(bn(dw3x3(a1, p['m1_dw_w'], 1), p['m1_bn2_s'], p['m1_bn2_b']))
    a3 = relu(bn(conv1x1(a2, p['m1_pw2_w']), p['m1_bn3_s'], p['m1_bn3_b']))
    m1 = jnp.concatenate([a1, a3], 1)[:, :OUP1]
    b1 = bn(dw3x3(m1, p['c3_dw_w'], 1), p['c3_bn_s'], p['c3_bn_b'])
    c1 = bn(conv1x1(b1, p['m2_pw1_w']), p['m2_bn1_s'], p['m2_bn1_b'])
    c2 = relu(bn(dw3x3(c1, p['m2_dw_w'], 2), p['m2_bn2_s'], p['m2_bn2_b']))
    c3 = bn(c2 * p['m2_pw2_w'][None, :, None, None], p['m2_bn3_s'], p['m2_bn3_b'])
    c4 = upsample2x(c3)
    m2 = jnp.concatenate([c1, c4], 1)[:, :OUP2]
    return relu(m2 + x)


# ---------------------------------- main --------------------------------------
if __name__ == "__main__":
    key = jax.random.PRNGKey(0)
    kx, kp = jax.random.split(key)
    B, H, W = 8, 16, 16                       # B=8 -> batch tile 4, grid 2
    x = jax.random.normal(kx, (B, INPLANES, H, W), jnp.float32)
    params = init_params(kp)

    _roll_mode()                              # one-time rotation-direction probe

    forward = jax.jit(ml_bottleneck_forward)
    out = jax.block_until_ready(forward(x, params))
    assert out.shape == (B, PLANES * EXPANSION, H, W)

    ref = jax.block_until_ready(_ref_forward(x, params))
    np.testing.assert_allclose(np.asarray(out), np.asarray(ref), rtol=2e-2, atol=2e-2)

    print("KERNEL_OK")
</pallas_src>

<mosaic_0001>
module attributes {stable_mosaic.version = 11 : i64} {
  func.func @k(%arg0: memref<8x128xf32, #tpu.memory_space<vmem>>, %arg1: memref<8x128xf32, #tpu.memory_space<vmem>>) attributes {dimension_semantics = [], scalar_prefetch = 0 : i64, scratch_operands = 0 : i64, tpu.core_type = #tpu.core_type<tc>} {
    %c0 = arith.constant 0 : index
    %c0_0 = arith.constant 0 : index
    %0 = vector.load %arg0[%c0, %c0_0] : memref<8x128xf32, #tpu.memory_space<vmem>>, vector<8x128xf32>
    %c1_i32 = arith.constant 1 : i32
    %1 = tpu.dynamic_rotate %0 by %c1_i32 dim 1 : vector<8x128xf32>, i32 -> vector<8x128xf32>
    %c0_1 = arith.constant 0 : index
    %c0_2 = arith.constant 0 : index
    %2 = vector.load %arg1[%c0_1, %c0_2] : memref<8x128xf32, #tpu.memory_space<vmem>>, vector<8x128xf32>
    tpu.vector_store %arg1[%c0_1, %c0_2], %1 {strides = array<i32>} : memref<8x128xf32, #tpu.memory_space<vmem>>, vector<8x128xf32>,
    return
  }
}

module attributes {stable_mosaic.version = 11 : i64} {
  func.func @_fused_kernel(%arg0: i32, %arg1: memref<64x256xf32, #tpu.memory_space<vmem>>, %arg2: memref<32x256xf32, #tpu.memory_space<vmem>>, %arg3: memref<32x256xf32, #tpu.memory_space<vmem>>, %arg4: memref<64x256xf32, #tpu.memory_space<vmem>>) attributes {dimension_semantics = [#tpu.dimension_semantics<parallel>], iteration_bounds = array<i64: 2>, scalar_prefetch = 0 : i64, scratch_operands = 0 : i64, tpu.core_type = #tpu.core_type<tc>, window_params = [{transform_indices = @transform_0, window_bounds = array<i64: 64, 256>}, {pipeline_mode = #tpu.pipeline_mode<synchronous>, transform_indices = @transform_1, window_bounds = array<i64: 32, 256>}, {pipeline_mode = #tpu.pipeline_mode<synchronous>, transform_indices = @transform_2, window_bounds = array<i64: 32, 256>}, {transform_indices = @transform_3, window_bounds = array<i64: 64, 256>}]} {
    %c0 = arith.constant 0 : index
    %c0_0 = arith.constant 0 : index
    %0 = vector.load %arg1[%c0, %c0_0] : memref<64x256xf32, #tpu.memory_space<vmem>>, vector<64x256xf32>
    %c0_1 = arith.constant 0 : index
    %c0_2 = arith.constant 0 : index
    %1 = vector.load %arg3[%c0_1, %c0_2] : memref<32x256xf32, #tpu.memory_space<vmem>>, vector<9x256xf32>
    %c16 = arith.constant 16 : index
    %c0_3 = arith.constant 0 : index
    %2 = vector.load %arg3[%c16, %c0_3] : memref<32x256xf32, #tpu.memory_space<vmem>>, vector<4x256xf32>
    %c24 = arith.constant 24 : index
    %c0_4 = arith.constant 0 : index
    %3 = vector.load %arg3[%c24, %c0_4] : memref<32x256xf32, #tpu.memory_space<vmem>>, vector<4x256xf32>
    %c0_5 = arith.constant 0 : index
    %c0_6 = arith.constant 0 : index
    %4 = vector.load %arg2[%c0_5, %c0_6] : memref<32x256xf32, #tpu.memory_space<vmem>>, vector<8x64xf32>
    %cst = arith.constant dense<0.000000e+00> : vector<8x256xf32>
    %5 = tpu.matmul %4, %0, %cst {dimension_numbers = #tpu.dot_dimension_numbers<[1], [0], [0], [1], [0, 0, 1, 1], [], []>} : vector<8x64xf32>, vector<64x256xf32>, vector<8x256xf32> -> vector<8x256xf32>
    %c0_7 = arith.constant 0 : index
    %c124 = arith.constant 124 : index
    %6 = vector.load %arg2[%c0_7, %c124] : memref<32x256xf32, #tpu.memory_space<vmem>>, vector<8x1xf32>
    %7 = vector.broadcast %6 : vector<8x1xf32> to vector<8x256xf32>
    %8 = arith.addf %5, %7 : vector<8x256xf32>
    %cst_8 = arith.constant 0.000000e+00 : f32
    %9 = vector.broadcast %cst_8 : f32 to vector<8x256xf32>
    %10 = arith.maximumf %8, %9 : vector<8x256xf32>
    %c0_9 = arith.constant 0 : index
    %c88 = arith.constant 88 : index
    %11 = vector.load %arg2[%c0_9, %c88] : memref<32x256xf32, #tpu.memory_space<vmem>>, vector<8x9xf32>
    %c0_10 = arith.constant 0 : index
    %c97 = arith.constant 97 : index
    %12 = vector.load %arg2[%c0_10, %c97] : memref<32x256xf32, #tpu.memory_space<vmem>>, vector<8x9xf32>
    %c0_11 = arith.constant 0 : index
    %c125 = arith.constant 125 : index
    %13 = vector.load %arg2[%c0_11, %c125] : memref<32x256xf32, #tpu.memory_space<vmem>>, vector<8x1xf32>
    %c0_12 = arith.constant 0 : index
    %c127 = arith.constant 127 : index
    %14 = vector.load %arg2[%c0_12, %c127] : memref<32x256xf32, #tpu.memory_space<vmem>>, vector<8x1xf32>
    %cst_13 = arith.constant 0.000000e+00 : f32
    %15 = vector.broadcast %cst_13 : f32 to vector<8x256xf32>
    %cst_14 = arith.constant 0.000000e+00 : f32
    %16 = vector.broadcast %cst_14 : f32 to vector<8x256xf32>
    %17 = vector.extract_strided_slice %10 {offsets = [0, 239], sizes = [8, 17], strides = [1, 1]} : vector<8x256xf32> to vector<8x17xf32>
    %18 = vector.extract_strided_slice %10 {offsets = [0, 0], sizes = [8, 239], strides = [1, 1]} : vector<8x256xf32> to vector<8x239xf32>
    %19 = tpu.concatenate %17, %18 in 1 : vector<8x17xf32>, vector<8x239xf32> -> vector<8x256xf32>
    %20 = vector.extract_strided_slice %1 {offsets = [0, 0], sizes = [1, 256], strides = [1, 1]} : vector<9x256xf32> to vector<1x256xf32>
    %21 = vector.broadcast %20 : vector<1x256xf32> to vector<8x256xf32>
    %22 = arith.mulf %19, %21 : vector<8x256xf32>
    %23 = vector.extract_strided_slice %11 {offsets = [0, 0], sizes = [8, 1], strides = [1, 1]} : vector<8x9xf32> to vector<8x1xf32>
    %24 = vector.broadcast %23 : vector<8x1xf32> to vector<8x256xf32>
    %25 = arith.mulf %24, %22 : vector<8x256xf32>
    %26 = arith.addf %15, %25 : vector<8x256xf32>
    %27 = vector.extract_strided_slice %12 {offsets = [0, 0], sizes = [8, 1], strides = [1, 1]} : vector<8x9xf32> to vector<8x1xf32>
    %28 = vector.broadcast %27 : vector<8x1xf32> to vector<8x256xf32>
    %29 = arith.mulf %28, %22 : vector<8x256xf32>
    %30 = arith.addf %16, %29 : vector<8x256xf32>
    %31 = vector.extract_strided_slice %10 {offsets = [0, 240], sizes = [8, 16], strides = [1, 1]} : vector<8x256xf32> to vector<8x16xf32>
    %32 = vector.extract_strided_slice %10 {offsets = [0, 0], sizes = [8, 240], strides = [1, 1]} : vector<8x256xf32> to vector<8x240xf32>
    %33 = tpu.concatenate %31, %32 in 1 : vector<8x16xf32>, vector<8x240xf32> -> vector<8x256xf32>
    %34 = vector.extract_strided_slice %1 {offsets = [1, 0], sizes = [1, 256], strides = [1, 1]} : vector<9x256xf32> to vector<1x256xf32>
    %35 = vector.broadcast %34 : vector<1x256xf32> to vector<8x256xf32>
    %36 = arith.mulf %33, %35 : vector<8x256xf32>
    %37 = vector.extract_strided_slice %11 {offsets = [0, 1], sizes = [8, 1], strides = [1, 1]} : vector<8x9xf32> to vector<8x1xf32>
    %38 = vector.broadcast %37 : vector<8x1xf32> to vector<8x256xf32>
    %39 = arith.mulf %38, %36 : vector<8x256xf32>
    %40 = arith.addf %26, %39 : vector<8x256xf32>
    %41 = vector.extract_strided_slice %12 {offsets = [0, 1], sizes = [8, 1], strides = [1, 1]} : vector<8x9xf32> to vector<8x1xf32>
    %42 = vector.broadcast %41 : vector<8x1xf32> to vector<8x256xf32>
    %43 = arith.mulf %42, %36 : vector<8x256xf32>
    %44 = arith.addf %30, %43 : vector<8x256xf32>
    %45 = vector.extract_strided_slice %10 {offsets = [0, 241], sizes = [8, 15], strides = [1, 1]} : vector<8x256xf32> to vector<8x15xf32>
    %46 = vector.extract_strided_slice %10 {offsets = [0, 0], sizes = [8, 241], strides = [1, 1]} : vector<8x256xf32> to vector<8x241xf32>
    %47 = tpu.concatenate %45, %46 in 1 : vector<8x15xf32>, vector<8x241xf32> -> vector<8x256xf32>
    %48 = vector.extract_strided_slice %1 {offsets = [2, 0], sizes = [1, 256], strides = [1, 1]} : vector<9x256xf32> to vector<1x256xf32>
    %49 = vector.broadcast %48 : vector<1x256xf32> to vector<8x256xf32>
    %50 = arith.mulf %47, %49 : vector<8x256xf32>
    %51 = vector.extract_strided_slice %11 {offsets = [0, 2], sizes = [8, 1], strides = [1, 1]} : vector<8x9xf32> to vector<8x1xf32>
    %52 = vector.broadcast %51 : vector<8x1xf32> to vector<8x256xf32>
    %53 = arith.mulf %52, %50 : vector<8x256xf32>
    %54 = arith.addf %40, %53 : vector<8x256xf32>
    %55 = vector.extract_strided_slice %12 {offsets = [0, 2], sizes = [8, 1], strides = [1, 1]} : vector<8x9xf32> to vector<8x1xf32>
    %56 = vector.broadcast %55 : vector<8x1xf32> to vector<8x256xf32>
    %57 = arith.mulf %56, %50 : vector<8x256xf32>
    %58 = arith.addf %44, %57 : vector<8x256xf32>
    %59 = vector.extract_strided_slice %10 {offsets = [0, 255], sizes = [8, 1], strides = [1, 1]} : vector<8x256xf32> to vector<8x1xf32>
    %60 = vector.extract_strided_slice %10 {offsets = [0, 0], sizes = [8, 255], strides = [1, 1]} : vector<8x256xf32> to vector<8x255xf32>
    %61 = tpu.concatenate %59, %60 in 1 : vector<8x1xf32>, vector<8x255xf32> -> vector<8x256xf32>
    %62 = vector.extract_strided_slice %1 {offsets = [3, 0], sizes = [1, 256], strides = [1, 1]} : vector<9x256xf32> to vector<1x256xf32>
    %63 = vector.broadcast %62 : vector<1x256xf32> to vector<8x256xf32>
    %64 = arith.mulf %61, %63 : vector<8x256xf32>
    %65 = vector.extract_strided_slice %11 {offsets = [0, 3], sizes = [8, 1], strides = [1, 1]} : vector<8x9xf32> to vector<8x1xf32>
    %66 = vector.broadcast %65 : vector<8x1xf32> to vector<8x256xf32>
    %67 = arith.mulf %66, %64 : vector<8x256xf32>
    %68 = arith.addf %54, %67 : vector<8x256xf32>
    %69 = vector.extract_strided_slice %12 {offsets = [0, 3], sizes = [8, 1], strides = [1, 1]} : vector<8x9xf32> to vector<8x1xf32>
    %70 = vector.broadcast %69 : vector<8x1xf32> to vector<8x256xf32>
    %71 = arith.mulf %70, %64 : vector<8x256xf32>
    %72 = arith.addf %58, %71 : vector<8x256xf32>
    %73 = vector.extract_strided_slice %11 {offsets = [0, 4], sizes = [8, 1], strides = [1, 1]} : vector<8x9xf32> to vector<8x1xf32>
    %74 = vector.broadcast %73 : vector<8x1xf32> to vector<8x256xf32>
    %75 = arith.mulf %74, %10 : vector<8x256xf32>
    %76 = arith.addf %68, %75 : vector<8x256xf32>
    %77 = vector.extract_strided_slice %12 {offsets = [0, 4], sizes = [8, 1], strides = [1, 1]} : vector<8x9xf32> to vector<8x1xf32>
    %78 = vector.broadcast %77 : vector<8x1xf32> to vector<8x256xf32>
    %79 = arith.mulf %78, %10 : vector<8x256xf32>
    %80 = arith.addf %72, %79 : vector<8x256xf32>
    %81 = vector.extract_strided_slice %10 {offsets = [0, 1], sizes = [8, 255], strides = [1, 1]} : vector<8x256xf32> to vector<8x255xf32>
    %82 = vector.extract_strided_slice %10 {offsets = [0, 0], sizes = [8, 1], strides = [1, 1]} : vector<8x256xf32> to vector<8x1xf32>
    %83 = tpu.concatenate %81, %82 in 1 : vector<8x255xf32>, vector<8x1xf32> -> vector<8x256xf32>
    %84 = vector.extract_strided_slice %1 {offsets = [5, 0], sizes = [1, 256], strides = [1, 1]} : vector<9x256xf32> to vector<1x256xf32>
    %85 = vector.broadcast %84 : vector<1x256xf32> to vector<8x256xf32>
    %86 = arith.mulf %83, %85 : vector<8x256xf32>
    %87 = vector.extract_strided_slice %11 {offsets = [0, 5], sizes = [8, 1], strides = [1, 1]} : vector<8x9xf32> to vector<8x1xf32>
    %88 = vector.broadcast %87 : vector<8x1xf32> to vector<8x256xf32>
    %89 = arith.mulf %88, %86 : vector<8x256xf32>
    %90 = arith.addf %76, %89 : vector<8x256xf32>
    %91 = vector.extract_strided_slice %12 {offsets = [0, 5], sizes = [8, 1], strides = [1, 1]} : vector<8x9xf32> to vector<8x1xf32>
    %92 = vector.broadcast %91 : vector<8x1xf32> to vector<8x256xf32>
    %93 = arith.mulf %92, %86 : vector<8x256xf32>
    %94 = arith.addf %80, %93 : vector<8x256xf32>
    %95 = vector.extract_strided_slice %10 {offsets = [0, 15], sizes = [8, 241], strides = [1, 1]} : vector<8x256xf32> to vector<8x241xf32>
    %96 = vector.extract_strided_slice %10 {offsets = [0, 0], sizes = [8, 15], strides = [1, 1]} : vector<8x256xf32> to vector<8x15xf32>
    %97 = tpu.concatenate %95, %96 in 1 : vector<8x241xf32>, vector<8x15xf32> -> vector<8x256xf32>
    %98 = vector.extract_strided_slice %1 {offsets = [6, 0], sizes = [1, 256], strides = [1, 1]} : vector<9x256xf32> to vector<1x256xf32>
    %99 = vector.broadcast %98 : vector<1x256xf32> to vector<8x256xf32>
    %100 = arith.mulf %97, %99 : vector<8x256xf32>
    %101 = vector.extract_strided_slice %11 {offsets = [0, 6], sizes = [8, 1], strides = [1, 1]} : vector<8x9xf32> to vector<8x1xf32>
    %102 = vector.broadcast %101 : vector<8x1xf32> to vector<8x256xf32>
    %103 = arith.mulf %102, %100 : vector<8x256xf32>
    %104 = arith.addf %90, %103 : vector<8x256xf32>
    %105 = vector.extract_strided_slice %12 {offsets = [0, 6], sizes = [8, 1], strides = [1, 1]} : vector<8x9xf32> to vector<8x1xf32>
    %106 = vector.broadcast %105 : vector<8x1xf32> to vector<8x256xf32>
    %107 = arith.mulf %106, %100 : vector<8x256xf32>
    %108 = arith.addf %94, %107 : vector<8x256xf32>
    %109 = vector.extract_strided_slice %10 {offsets = [0, 16], sizes = [8, 240], strides = [1, 1]} : vector<8x256xf32> to vector<8x240xf32>
    %110 = vector.extract_strided_slice %10 {offsets = [0, 0], sizes = [8, 16], strides = [1, 1]} : vector<8x256xf32> to vector<8x16xf32>
    %111 = tpu.concatenate %109, %110 in 1 : vector<8x240xf32>, vector<8x16xf32> -> vector<8x256xf32>
    %112 = vector.extract_strided_slice %1 {offsets = [7, 0], sizes = [1, 256], strides = [1, 1]} : vector<9x256xf32> to vector<1x256xf32>
    %113 = vector.broadcast %112 : vector<1x256xf32> to vector<8x256xf32>
    %114 = arith.mulf %111, %113 : vector<8x256xf32>
    %115 = vector.extract_strided_slice %11 {offsets = [0, 7], sizes = [8, 1], strides = [1, 1]} : vector<8x9xf32> to vector<8x1xf32>
    %116 = vector.broadcast %115 : vector<8x1xf32> to vector<8x256xf32>
    %117 = arith.mulf %116, %114 : vector<8x256xf32>
    %118 = arith.addf %104, %117 : vector<8x256xf32>
    %119 = vector.extract_strided_slice %12 {offsets = [0, 7], sizes = [8, 1], strides = [1, 1]} : vector<8x9xf32> to vector<8x1xf32>
    %120 = vector.broadcast %119 : vector<8x1xf32> to vector<8x256xf32>
    %121 = arith.mulf %120, %114 : vector<8x256xf32>
    %122 = arith.addf %108, %121 : vector<8x256xf32>
    %123 = vector.extract_strided_slice %10 {offsets = [0, 17], sizes = [8, 239], strides = [1, 1]} : vector<8x256xf32> to vector<8x239xf32>
    %124 = vector.extract_strided_slice %10 {offsets = [0, 0], sizes = [8, 17], strides = [1, 1]} : vector<8x256xf32> to vector<8x17xf32>
    %125 = tpu.concatenate %123, %124 in 1 : vector<8x239xf32>, vector<8x17xf32> -> vector<8x256xf32>
    %126 = vector.extract_strided_slice %1 {offsets = [8, 0], sizes = [1, 256], strides = [1, 1]} : vector<9x256xf32> to vector<1x256xf32>
    %127 = vector.broadcast %126 : vector<1x256xf32> to vector<8x256xf32>
    %128 = arith.mulf %125, %127 : vector<8x256xf32>
    %129 = vector.extract_strided_slice %11 {offsets = [0, 8], sizes = [8, 1], strides = [1, 1]} : vector<8x9xf32> to vector<8x1xf32>
    %130 = vector.broadcast %129 : vector<8x1xf32> to vector<8x256xf32>
    %131 = arith.mulf %130, %128 : vector<8x256xf32>
    %132 = arith.addf %118, %131 : vector<8x256xf32>
    %133 = vector.extract_strided_slice %12 {offsets = [0, 8], sizes = [8, 1], strides = [1, 1]} : vector<8x9xf32> to vector<8x1xf32>
    %134 = vector.broadcast %133 : vector<8x1xf32> to vector<8x256xf32>
    %135 = arith.mulf %134, %128 : vector<8x256xf32>
    %136 = arith.addf %122, %135 : vector<8x256xf32>
    %137 = vector.broadcast %13 : vector<8x1xf32> to vector<8x256xf32>
    %138 = arith.addf %132, %137 : vector<8x256xf32>
    %139 = vector.broadcast %14 : vector<8x1xf32> to vector<8x256xf32>
    %140 = arith.addf %136, %139 : vector<8x256xf32>
    %cst_15 = arith.constant 0.000000e+00 : f32
    %141 = vector.broadcast %cst_15 : f32 to vector<8x256xf32>
    %142 = arith.maximumf %138, %141 : vector<8x256xf32>
    %c0_16 = arith.constant 0 : index
    %c64 = arith.constant 64 : index
    %143 = vector.load %arg2[%c0_16, %c64] : memref<32x256xf32, #tpu.memory_space<vmem>>, vector<8x8xf32>
    %cst_17 = arith.constant dense<0.000000e+00> : vector<8x256xf32>
    %144 = tpu.matmul %143, %142, %cst_17 {dimension_numbers = #tpu.dot_dimension_numbers<[1], [0], [0], [1], [0, 0, 1, 1], [], []>} : vector<8x8xf32>, vector<8x256xf32>, vector<8x256xf32> -> vector<8x256xf32>
    %c0_18 = arith.constant 0 : index
    %c126 = arith.constant 126 : index
    %145 = vector.load %arg2[%c0_18, %c126] : memref<32x256xf32, #tpu.memory_space<vmem>>, vector<8x1xf32>
    %146 = vector.broadcast %145 : vector<8x1xf32> to vector<8x256xf32>
    %147 = arith.addf %144, %146 : vector<8x256xf32>
    %cst_19 = arith.constant 0.000000e+00 : f32
    %148 = vector.broadcast %cst_19 : f32 to vector<8x256xf32>
    %149 = arith.maximumf %147, %148 : vector<8x256xf32>
    %c0_20 = arith.constant 0 : index
    %c106 = arith.constant 106 : index
    %150 = vector.load %arg2[%c0_20, %c106] : memref<32x256xf32, #tpu.memory_space<vmem>>, vector<8x9xf32>
    %c0_21 = arith.constant 0 : index
    %c128 = arith.constant 128 : index
    %151 = vector.load %arg2[%c0_21, %c128] : memref<32x256xf32, #tpu.memory_space<vmem>>, vector<8x1xf32>
    %cst_22 = arith.constant 0.000000e+00 : f32
    %152 = vector.broadcast %cst_22 : f32 to vector<8x256xf32>
    %153 = vector.extract_strided_slice %149 {offsets = [0, 239], sizes = [8, 17], strides = [1, 1]} : vector<8x256xf32> to vector<8x17xf32>
    %154 = vector.extract_strided_slice %149 {offsets = [0, 0], sizes = [8, 239], strides = [1, 1]} : vector<8x256xf32> to vector<8x239xf32>
    %155 = tpu.concatenate %153, %154 in 1 : vector<8x17xf32>, vector<8x239xf32> -> vector<8x256xf32>
    %156 = vector.extract_strided_slice %1 {offsets = [0, 0], sizes = [1, 256], strides = [1, 1]} : vector<9x256xf32> to vector<1x256xf32>
    %157 = vector.broadcast %156 : vector<1x256xf32> to vector<8x256xf32>
    %158 = arith.mulf %155, %157 : vector<8x256xf32>
    %159 = vector.extract_strided_slice %150 {offsets = [0, 0], sizes = [8, 1], strides = [1, 1]} : vector<8x9xf32> to vector<8x1xf32>
    %160 = vector.broadcast %159 : vector<8x1xf32> to vector<8x256xf32>
    %161 = arith.mulf %160, %158 : vector<8x256xf32>
    %162 = arith.addf %152, %161 : vector<8x256xf32>
    %163 = vector.extract_strided_slice %149 {offsets = [0, 240], sizes = [8, 16], strides = [1, 1]} : vector<8x256xf32> to vector<8x16xf32>
    %164 = vector.extract_strided_slice %149 {offsets = [0, 0], sizes = [8, 240], strides = [1, 1]} : vector<8x256xf32> to vector<8x240xf32>
    %165 = tpu.concatenate %163, %164 in 1 : vector<8x16xf32>, vector<8x240xf32> -> vector<8x256xf32>
    %166 = vector.extract_strided_slice %1 {offsets = [1, 0], sizes = [1, 256], strides = [1, 1]} : vector<9x256xf32> to vector<1x256xf32>
    %167 = vector.broadcast %166 : vector<1x256xf32> to vector<8x256xf32>
    %168 = arith.mulf %165, %167 : vector<8x256xf32>
    %169 = vector.extract_strided_slice %150 {offsets = [0, 1], sizes = [8, 1], strides = [1, 1]} : vector<8x9xf32> to vector<8x1xf32>
    %170 = vector.broadcast %169 : vector<8x1xf32> to vector<8x256xf32>
    %171 = arith.mulf %170, %168 : vector<8x256xf32>
    %172 = arith.addf %162, %171 : vector<8x256xf32>
    %173 = vector.extract_strided_slice %149 {offsets = [0, 241], sizes = [8, 15], strides = [1, 1]} : vector<8x256xf32> to vector<8x15xf32>
    %174 = vector.extract_strided_slice %149 {offsets = [0, 0], sizes = [8, 241], strides = [1, 1]} : vector<8x256xf32> to vector<8x241xf32>
    %175 = tpu.concatenate %173, %174 in 1 : vector<8x15xf32>, vector<8x241xf32> -> vector<8x256xf32>
    %176 = vector.extract_strided_slice %1 {offsets = [2, 0], sizes = [1, 256], strides = [1, 1]} : vector<9x256xf32> to vector<1x256xf32>
    %177 = vector.broadcast %176 : vector<1x256xf32> to vector<8x256xf32>
    %178 = arith.mulf %175, %177 : vector<8x256xf32>
    %179 = vector.extract_strided_slice %150 {offsets = [0, 2], sizes = [8, 1], strides = [1, 1]} : vector<8x9xf32> to vector<8x1xf32>
    %180 = vector.broadcast %179 : vector<8x1xf32> to vector<8x256xf32>
    %181 = arith.mulf %180, %178 : vector<8x256xf32>
    %182 = arith.addf %172, %181 : vector<8x256xf32>
    %183 = vector.extract_strided_slice %149 {offsets = [0, 255], sizes = [8, 1], strides = [1, 1]} : vector<8x256xf32> to vector<8x1xf32>
    %184 = vector.extract_strided_slice %149 {offsets = [0, 0], sizes = [8, 255], strides = [1, 1]} : vector<8x256xf32> to vector<8x255xf32>
    %185 = tpu.concatenate %183, %184 in 1 : vector<8x1xf32>, vector<8x255xf32> -> vector<8x256xf32>
    %186 = vector.extract_strided_slice %1 {offsets = [3, 0], sizes = [1, 256], strides = [1, 1]} : vector<9x256xf32> to vector<1x256xf32>
    %187 = vector.broadcast %186 : vector<1x256xf32> to vector<8x256xf32>
    %188 = arith.mulf %185, %187 : vector<8x256xf32>
    %189 = vector.extract_strided_slice %150 {offsets = [0, 3], sizes = [8, 1], strides = [1, 1]} : vector<8x9xf32> to vector<8x1xf32>
    %190 = vector.broadcast %189 : vector<8x1xf32> to vector<8x256xf32>
    %191 = arith.mulf %190, %188 : vector<8x256xf32>
    %192 = arith.addf %182, %191 : vector<8x256xf32>
    %193 = vector.extract_strided_slice %150 {offsets = [0, 4], sizes = [8, 1], strides = [1, 1]} : vector<8x9xf32> to vector<8x1xf32>
    %194 = vector.broadcast %193 : vector<8x1xf32> to vector<8x256xf32>
    %195 = arith.mulf %194, %149 : vector<8x256xf32>
    %196 = arith.addf %192, %195 : vector<8x256xf32>
    %197 = vector.extract_strided_slice %149 {offsets = [0, 1], sizes = [8, 255], strides = [1, 1]} : vector<8x256xf32> to vector<8x255xf32>
    %198 = vector.extract_strided_slice %149 {offsets = [0, 0], sizes = [8, 1], strides = [1, 1]} : vector<8x256xf32> to vector<8x1xf32>
    %199 = tpu.concatenate %197, %198 in 1 : vector<8x255xf32>, vector<8x1xf32> -> vector<8x256xf32>
    %200 = vector.extract_strided_slice %1 {offsets = [5, 0], sizes = [1, 256], strides = [1, 1]} : vector<9x256xf32> to vector<1x256xf32>
    %201 = vector.broadcast %200 : vector<1x256xf32> to vector<8x256xf32>
    %202 = arith.mulf %199, %201 : vector<8x256xf32>
    %203 = vector.extract_strided_slice %150 {offsets = [0, 5], sizes = [8, 1], strides = [1, 1]} : vector<8x9xf32> to vector<8x1xf32>
    %204 = vector.broadcast %203 : vector<8x1xf32> to vector<8x256xf32>
    %205 = arith.mulf %204, %202 : vector<8x256xf32>
    %206 = arith.addf %196, %205 : vector<8x256xf32>
    %207 = vector.extract_strided_slice %149 {offsets = [0, 15], sizes = [8, 241], strides = [1, 1]} : vector<8x256xf32> to vector<8x241xf32>
    %208 = vector.extract_strided_slice %149 {offsets = [0, 0], sizes = [8, 15], strides = [1, 1]} : vector<8x256xf32> to vector<8x15xf32>
    %209 = tpu.concatenate %207, %208 in 1 : vector<8x241xf32>, vector<8x15xf32> -> vector<8x256xf32>
    %210 = vector.extract_strided_slice %1 {offsets = [6, 0], sizes = [1, 256], strides = [1, 1]} : vector<9x256xf32> to vector<1x256xf32>
    %211 = vector.broadcast %210 : vector<1x256xf32> to vector<8x256xf32>
    %212 = arith.mulf %209, %211 : vector<8x256xf32>
    %213 = vector.extract_strided_slice %150 {offsets = [0, 6], sizes = [8, 1], strides = [1, 1]} : vector<8x9xf32> to vector<8x1xf32>
    %214 = vector.broadcast %213 : vector<8x1xf32> to vector<8x256xf32>
    %215 = arith.mulf %214, %212 : vector<8x256xf32>
    %216 = arith.addf %206, %215 : vector<8x256xf32>
    %217 = vector.extract_strided_slice %149 {offsets = [0, 16], sizes = [8, 240], strides = [1, 1]} : vector<8x256xf32> to vector<8x240xf32>
    %218 = vector.extract_strided_slice %149 {offsets = [0, 0], sizes = [8, 16], strides = [1, 1]} : vector<8x256xf32> to vector<8x16xf32>
    %219 = tpu.concatenate %217, %218 in 1 : vector<8x240xf32>, vector<8x16xf32> -> vector<8x256xf32>
    %220 = vector.extract_strided_slice %1 {offsets = [7, 0], sizes = [1, 256], strides = [1, 1]} : vector<9x256xf32> to vector<1x256xf32>
    %221 = vector.broadcast %220 : vector<1x256xf32> to vector<8x256xf32>
    %222 = arith.mulf %219, %221 : vector<8x256xf32>
    %223 = vector.extract_strided_slice %150 {offsets = [0, 7], sizes = [8, 1], strides = [1, 1]} : vector<8x9xf32> to vector<8x1xf32>
    %224 = vector.broadcast %223 : vector<8x1xf32> to vector<8x256xf32>
    %225 = arith.mulf %224, %222 : vector<8x256xf32>
    %226 = arith.addf %216, %225 : vector<8x256xf32>
    %227 = vector.extract_strided_slice %149 {offsets = [0, 17], sizes = [8, 239], strides = [1, 1]} : vector<8x256xf32> to vector<8x239xf32>
    %228 = vector.extract_strided_slice %149 {offsets = [0, 0], sizes = [8, 17], strides = [1, 1]} : vector<8x256xf32> to vector<8x17xf32>
    %229 = tpu.concatenate %227, %228 in 1 : vector<8x239xf32>, vector<8x17xf32> -> vector<8x256xf32>
    %230 = vector.extract_strided_slice %1 {offsets = [8, 0], sizes = [1, 256], strides = [1, 1]} : vector<9x256xf32> to vector<1x256xf32>
    %231 = vector.broadcast %230 : vector<1x256xf32> to vector<8x256xf32>
    %232 = arith.mulf %229, %231 : vector<8x256xf32>
    %233 = vector.extract_strided_slice %150 {offsets = [0, 8], sizes = [8, 1], strides = [1, 1]} : vector<8x9xf32> to vector<8x1xf32>
    %234 = vector.broadcast %233 : vector<8x1xf32> to vector<8x256xf32>
    %235 = arith.mulf %234, %232 : vector<8x256xf32>
    %236 = arith.addf %226, %235 : vector<8x256xf32>
    %237 = vector.broadcast %151 : vector<8x1xf32> to vector<8x256xf32>
    %238 = arith.addf %236, %237 : vector<8x256xf32>
    %c0_23 = arith.constant 0 : index
    %c72 = arith.constant 72 : index
    %239 = vector.load %arg2[%c0_23, %c72] : memref<32x256xf32, #tpu.memory_space<vmem>>, vector<32x8xf32>
    %cst_24 = arith.constant dense<0.000000e+00> : vector<32x256xf32>
    %240 = tpu.matmul %239, %140, %cst_24 {dimension_numbers = #tpu.dot_dimension_numbers<[1], [0], [0], [1], [0, 0, 1, 1], [], []>} : vector<32x8xf32>, vector<8x256xf32>, vector<32x256xf32> -> vector<32x256xf32>
    %c0_25 = arith.constant 0 : index
    %c80 = arith.constant 80 : index
    %241 = vector.load %arg2[%c0_25, %c80] : memref<32x256xf32, #tpu.memory_space<vmem>>, vector<32x8xf32>
    %cst_26 = arith.constant dense<0.000000e+00> : vector<32x256xf32>
    %242 = tpu.matmul %241, %238, %cst_26 {dimension_numbers = #tpu.dot_dimension_numbers<[1], [0], [0], [1], [0, 0, 1, 1], [], []>} : vector<32x8xf32>, vector<8x256xf32>, vector<32x256xf32> -> vector<32x256xf32>
    %243 = arith.addf %240, %242 : vector<32x256xf32>
    %c0_27 = arith.constant 0 : index
    %c129 = arith.constant 129 : index
    %244 = vector.load %arg2[%c0_27, %c129] : memref<32x256xf32, #tpu.memory_space<vmem>>, vector<32x1xf32>
    %245 = vector.broadcast %244 : vector<32x1xf32> to vector<32x256xf32>
    %246 = arith.addf %243, %245 : vector<32x256xf32>
    %c0_28 = arith.constant 0 : index
    %c115 = arith.constant 115 : index
    %247 = vector.load %arg2[%c0_28, %c115] : memref<32x256xf32, #tpu.memory_space<vmem>>, vector<32x9xf32>
    %c0_29 = arith.constant 0 : index
    %c130 = arith.constant 130 : index
    %248 = vector.load %arg2[%c0_29, %c130] : memref<32x256xf32, #tpu.memory_space<vmem>>, vector<32x1xf32>
    %cst_30 = arith.constant 0.000000e+00 : f32
    %249 = vector.broadcast %cst_30 : f32 to vector<32x256xf32>
    %250 = vector.extract_strided_slice %246 {offsets = [0, 239], sizes = [32, 17], strides = [1, 1]} : vector<32x256xf32> to vector<32x17xf32>
    %251 = vector.extract_strided_slice %246 {offsets = [0, 0], sizes = [32, 239], strides = [1, 1]} : vector<32x256xf32> to vector<32x239xf32>
    %252 = tpu.concatenate %250, %251 in 1 : vector<32x17xf32>, vector<32x239xf32> -> vector<32x256xf32>
    %253 = vector.extract_strided_slice %1 {offsets = [0, 0], sizes = [1, 256], strides = [1, 1]} : vector<9x256xf32> to vector<1x256xf32>
    %254 = vector.broadcast %253 : vector<1x256xf32> to vector<32x256xf32>
    %255 = arith.mulf %252, %254 : vector<32x256xf32>
    %256 = vector.extract_strided_slice %247 {offsets = [0, 0], sizes = [32, 1], strides = [1, 1]} : vector<32x9xf32> to vector<32x1xf32>
    %257 = vector.broadcast %256 : vector<32x1xf32> to vector<32x256xf32>
    %258 = arith.mulf %257, %255 : vector<32x256xf32>
    %259 = arith.addf %249, %258 : vector<32x256xf32>
    %260 = vector.extract_strided_slice %246 {offsets = [0, 240], sizes = [32, 16], strides = [1, 1]} : vector<32x256xf32> to vector<32x16xf32>
    %261 = vector.extract_strided_slice %246 {offsets = [0, 0], sizes = [32, 240], strides = [1, 1]} : vector<32x256xf32> to vector<32x240xf32>
    %262 = tpu.concatenate %260, %261 in 1 : vector<32x16xf32>, vector<32x240xf32> -> vector<32x256xf32>
    %263 = vector.extract_strided_slice %1 {offsets = [1, 0], sizes = [1, 256], strides = [1, 1]} : vector<9x256xf32> to vector<1x256xf32>
    %264 = vector.broadcast %263 : vector<1x256xf32> to vector<32x256xf32>
    %265 = arith.mulf %262, %264 : vector<32x256xf32>
    %266 = vector.extract_strided_slice %247 {offsets = [0, 1], sizes = [32, 1], strides = [1, 1]} : vector<32x9xf32> to vector<32x1xf32>
    %267 = vector.broadcast %266 : vector<32x1xf32> to vector<32x256xf32>
    %268 = arith.mulf %267, %265 : vector<32x256xf32>
    %269 = arith.addf %259, %268 : vector<32x256xf32>
    %270 = vector.extract_strided_slice %246 {offsets = [0, 241], sizes = [32, 15], strides = [1, 1]} : vector<32x256xf32> to vector<32x15xf32>
    %271 = vector.extract_strided_slice %246 {offsets = [0, 0], sizes = [32, 241], strides = [1, 1]} : vector<32x256xf32> to vector<32x241xf32>
    %272 = tpu.concatenate %270, %271 in 1 : vector<32x15xf32>, vector<32x241xf32> -> vector<32x256xf32>
    %273 = vector.extract_strided_slice %1 {offsets = [2, 0], sizes = [1, 256], strides = [1, 1]} : vector<9x256xf32> to vector<1x256xf32>
    %274 = vector.broadcast %273 : vector<1x256xf32> to vector<32x256xf32>
    %275 = arith.mulf %272, %274 : vector<32x256xf32>
    %276 = vector.extract_strided_slice %247 {offsets = [0, 2], sizes = [32, 1], strides = [1, 1]} : vector<32x9xf32> to vector<32x1xf32>
    %277 = vector.broadcast %276 : vector<32x1xf32> to vector<32x256xf32>
    %278 = arith.mulf %277, %275 : vector<32x256xf32>
    %279 = arith.addf %269, %278 : vector<32x256xf32>
    %280 = vector.extract_strided_slice %246 {offsets = [0, 255], sizes = [32, 1], strides = [1, 1]} : vector<32x256xf32> to vector<32x1xf32>
    %281 = vector.extract_strided_slice %246 {offsets = [0, 0], sizes = [32, 255], strides = [1, 1]} : vector<32x256xf32> to vector<32x255xf32>
    %282 = tpu.concatenate %280, %281 in 1 : vector<32x1xf32>, vector<32x255xf32> -> vector<32x256xf32>
    %283 = vector.extract_strided_slice %1 {offsets = [3, 0], sizes = [1, 256], strides = [1, 1]} : vector<9x256xf32> to vector<1x256xf32>
    %284 = vector.broadcast %283 : vector<1x256xf32> to vector<32x256xf32>
    %285 = arith.mulf %282, %284 : vector<32x256xf32>
    %286 = vector.extract_strided_slice %247 {offsets = [0, 3], sizes = [32, 1], strides = [1, 1]} : vector<32x9xf32> to vector<32x1xf32>
    %287 = vector.broadcast %286 : vector<32x1xf32> to vector<32x256xf32>
    %288 = arith.mulf %287, %285 : vector<32x256xf32>
    %289 = arith.addf %279, %288 : vector<32x256xf32>
    %290 = vector.extract_strided_slice %247 {offsets = [0, 4], sizes = [32, 1], strides = [1, 1]} : vector<32x9xf32> to vector<32x1xf32>
    %291 = vector.broadcast %290 : vector<32x1xf32> to vector<32x256xf32>
    %292 = arith.mulf %291, %246 : vector<32x256xf32>
    %293 = arith.addf %289, %292 : vector<32x256xf32>
    %294 = vector.extract_strided_slice %246 {offsets = [0, 1], sizes = [32, 255], strides = [1, 1]} : vector<32x256xf32> to vector<32x255xf32>
    %295 = vector.extract_strided_slice %246 {offsets = [0, 0], sizes = [32, 1], strides = [1, 1]} : vector<32x256xf32> to vector<32x1xf32>
    %296 = tpu.concatenate %294, %295 in 1 : vector<32x255xf32>, vector<32x1xf32> -> vector<32x256xf32>
    %297 = vector.extract_strided_slice %1 {offsets = [5, 0], sizes = [1, 256], strides = [1, 1]} : vector<9x256xf32> to vector<1x256xf32>
    %298 = vector.broadcast %297 : vector<1x256xf32> to vector<32x256xf32>
    %299 = arith.mulf %296, %298 : vector<32x256xf32>
    %300 = vector.extract_strided_slice %247 {offsets = [0, 5], sizes = [32, 1], strides = [1, 1]} : vector<32x9xf32> to vector<32x1xf32>
    %301 = vector.broadcast %300 : vector<32x1xf32> to vector<32x256xf32>
    %302 = arith.mulf %301, %299 : vector<32x256xf32>
    %303 = arith.addf %293, %302 : vector<32x256xf32>
    %304 = vector.extract_strided_slice %246 {offsets = [0, 15], sizes = [32, 241], strides = [1, 1]} : vector<32x256xf32> to vector<32x241xf32>
    %305 = vector.extract_strided_slice %246 {offsets = [0, 0], sizes = [32, 15], strides = [1, 1]} : vector<32x256xf32> to vector<32x15xf32>
    %306 = tpu.concatenate %304, %305 in 1 : vector<32x241xf32>, vector<32x15xf32> -> vector<32x256xf32>
    %307 = vector.extract_strided_slice %1 {offsets = [6, 0], sizes = [1, 256], strides = [1, 1]} : vector<9x256xf32> to vector<1x256xf32>
    %308 = vector.broadcast %307 : vector<1x256xf32> to vector<32x256xf32>
    %309 = arith.mulf %306, %308 : vector<32x256xf32>
    %310 = vector.extract_strided_slice %247 {offsets = [0, 6], sizes = [32, 1], strides = [1, 1]} : vector<32x9xf32> to vector<32x1xf32>
    %311 = vector.broadcast %310 : vector<32x1xf32> to vector<32x256xf32>
    %312 = arith.mulf %311, %309 : vector<32x256xf32>
    %313 = arith.addf %303, %312 : vector<32x256xf32>
    %314 = vector.extract_strided_slice %246 {offsets = [0, 16], sizes = [32, 240], strides = [1, 1]} : vector<32x256xf32> to vector<32x240xf32>
    %315 = vector.extract_strided_slice %246 {offsets = [0, 0], sizes = [32, 16], strides = [1, 1]} : vector<32x256xf32> to vector<32x16xf32>
    %316 = tpu.concatenate %314, %315 in 1 : vector<32x240xf32>, vector<32x16xf32> -> vector<32x256xf32>
    %317 = vector.extract_strided_slice %1 {offsets = [7, 0], sizes = [1, 256], strides = [1, 1]} : vector<9x256xf32> to vector<1x256xf32>
    %318 = vector.broadcast %317 : vector<1x256xf32> to vector<32x256xf32>
    %319 = arith.mulf %316, %318 : vector<32x256xf32>
    %320 = vector.extract_strided_slice %247 {offsets = [0, 7], sizes = [32, 1], strides = [1, 1]} : vector<32x9xf32> to vector<32x1xf32>
    %321 = vector.broadcast %320 : vector<32x1xf32> to vector<32x256xf32>
    %322 = arith.mulf %321, %319 : vector<32x256xf32>
    %323 = arith.addf %313, %322 : vector<32x256xf32>
    %324 = vector.extract_strided_slice %246 {offsets = [0, 17], sizes = [32, 239], strides = [1, 1]} : vector<32x256xf32> to vector<32x239xf32>
    %325 = vector.extract_strided_slice %246 {offsets = [0, 0], sizes = [32, 17], strides = [1, 1]} : vector<32x256xf32> to vector<32x17xf32>
    %326 = tpu.concatenate %324, %325 in 1 : vector<32x239xf32>, vector<32x17xf32> -> vector<32x256xf32>
    %327 = vector.extract_strided_slice %1 {offsets = [8, 0], sizes = [1, 256], strides = [1, 1]} : vector<9x256xf32> to vector<1x256xf32>
    %328 = vector.broadcast %327 : vector<1x256xf32> to vector<32x256xf32>
    %329 = arith.mulf %326, %328 : vector<32x256xf32>
    %330 = vector.extract_strided_slice %247 {offsets = [0, 8], sizes = [32, 1], strides = [1, 1]} : vector<32x9xf32> to vector<32x1xf32>
    %331 = vector.broadcast %330 : vector<32x1xf32> to vector<32x256xf32>
    %332 = arith.mulf %331, %329 : vector<32x256xf32>
    %333 = arith.addf %323, %332 : vector<32x256xf32>
    %334 = vector.broadcast %248 : vector<32x1xf32> to vector<32x256xf32>
    %335 = arith.addf %333, %334 : vector<32x256xf32>
    %cst_31 = arith.constant 0.000000e+00 : f32
    %336 = vector.broadcast %cst_31 : f32 to vector<32x256xf32>
    %337 = arith.maximumf %335, %336 : vector<32x256xf32>
    %c0_32 = arith.constant 0 : index
    %c131 = arith.constant 131 : index
    %338 = vector.load %arg2[%c0_32, %c131] : memref<32x256xf32, #tpu.memory_space<vmem>>, vector<32x1xf32>
    %339 = vector.broadcast %338 : vector<32x1xf32> to vector<32x256xf32>
    %340 = arith.mulf %339, %337 : vector<32x256xf32>
    %c0_33 = arith.constant 0 : index
    %c132 = arith.constant 132 : index
    %341 = vector.load %arg2[%c0_33, %c132] : memref<32x256xf32, #tpu.memory_space<vmem>>, vector<32x1xf32>
    %342 = vector.broadcast %341 : vector<32x1xf32> to vector<32x256xf32>
    %343 = arith.addf %340, %342 : vector<32x256xf32>
    %cst_34 = arith.constant 0.000000e+00 : f32
    %344 = vector.broadcast %cst_34 : f32 to vector<32x256xf32>
    %345 = vector.extract_strided_slice %2 {offsets = [0, 0], sizes = [1, 256], strides = [1, 1]} : vector<4x256xf32> to vector<1x256xf32>
    %346 = vector.extract_strided_slice %343 {offsets = [0, 254], sizes = [32, 2], strides = [1, 1]} : vector<32x256xf32> to vector<32x2xf32>
    %347 = vector.extract_strided_slice %343 {offsets = [0, 0], sizes = [32, 254], strides = [1, 1]} : vector<32x256xf32> to vector<32x254xf32>
    %348 = tpu.concatenate %346, %347 in 1 : vector<32x2xf32>, vector<32x254xf32> -> vector<32x256xf32>
    %349 = vector.broadcast %345 : vector<1x256xf32> to vector<32x256xf32>
    %350 = arith.mulf %349, %348 : vector<32x256xf32>
    %351 = arith.addf %344, %350 : vector<32x256xf32>
    %352 = vector.extract_strided_slice %2 {offsets = [1, 0], sizes = [1, 256], strides = [1, 1]} : vector<4x256xf32> to vector<1x256xf32>
    %353 = vector.extract_strided_slice %343 {offsets = [0, 255], sizes = [32, 1], strides = [1, 1]} : vector<32x256xf32> to vector<32x1xf32>
    %354 = vector.extract_strided_slice %343 {offsets = [0, 0], sizes = [32, 255], strides = [1, 1]} : vector<32x256xf32> to vector<32x255xf32>
    %355 = tpu.concatenate %353, %354 in 1 : vector<32x1xf32>, vector<32x255xf32> -> vector<32x256xf32>
    %356 = vector.broadcast %352 : vector<1x256xf32> to vector<32x256xf32>
    %357 = arith.mulf %356, %355 : vector<32x256xf32>
    %358 = arith.addf %351, %357 : vector<32x256xf32>
    %359 = vector.extract_strided_slice %2 {offsets = [2, 0], sizes = [1, 256], strides = [1, 1]} : vector<4x256xf32> to vector<1x256xf32>
    %360 = vector.broadcast %359 : vector<1x256xf32> to vector<32x256xf32>
    %361 = arith.mulf %360, %343 : vector<32x256xf32>
    %362 = arith.addf %358, %361 : vector<32x256xf32>
    %363 = vector.extract_strided_slice %2 {offsets = [3, 0], sizes = [1, 256], strides = [1, 1]} : vector<4x256xf32> to vector<1x256xf32>
    %364 = vector.extract_strided_slice %343 {offsets = [0, 1], sizes = [32, 255], strides = [1, 1]} : vector<32x256xf32> to vector<32x255xf32>
    %365 = vector.extract_strided_slice %343 {offsets = [0, 0], sizes = [32, 1], strides = [1, 1]} : vector<32x256xf32> to vector<32x1xf32>
    %366 = tpu.concatenate %364, %365 in 1 : vector<32x255xf32>, vector<32x1xf32> -> vector<32x256xf32>
    %367 = vector.broadcast %363 : vector<1x256xf32> to vector<32x256xf32>
    %368 = arith.mulf %367, %366 : vector<32x256xf32>
    %369 = arith.addf %362, %368 : vector<32x256xf32>
    %cst_35 = arith.constant 0.000000e+00 : f32
    %370 = vector.broadcast %cst_35 : f32 to vector<32x256xf32>
    %371 = vector.extract_strided_slice %3 {offsets = [0, 0], sizes = [1, 256], strides = [1, 1]} : vector<4x256xf32> to vector<1x256xf32>
    %372 = vector.extract_strided_slice %369 {offsets = [0, 224], sizes = [32, 32], strides = [1, 1]} : vector<32x256xf32> to vector<32x32xf32>
    %373 = vector.extract_strided_slice %369 {offsets = [0, 0], sizes = [32, 224], strides = [1, 1]} : vector<32x256xf32> to vector<32x224xf32>
    %374 = tpu.concatenate %372, %373 in 1 : vector<32x32xf32>, vector<32x224xf32> -> vector<32x256xf32>
    %375 = vector.broadcast %371 : vector<1x256xf32> to vector<32x256xf32>
    %376 = arith.mulf %375, %374 : vector<32x256xf32>
    %377 = arith.addf %370, %376 : vector<32x256xf32>
    %378 = vector.extract_strided_slice %3 {offsets = [1, 0], sizes = [1, 256], strides = [1, 1]} : vector<4x256xf32> to vector<1x256xf32>
    %379 = vector.extract_strided_slice %369 {offsets = [0, 240], sizes = [32, 16], strides = [1, 1]} : vector<32x256xf32> to vector<32x16xf32>
    %380 = vector.extract_strided_slice %369 {offsets = [0, 0], sizes = [32, 240], strides = [1, 1]} : vector<32x256xf32> to vector<32x240xf32>
    %381 = tpu.concatenate %379, %380 in 1 : vector<32x16xf32>, vector<32x240xf32> -> vector<32x256xf32>
    %382 = vector.broadcast %378 : vector<1x256xf32> to vector<32x256xf32>
    %383 = arith.mulf %382, %381 : vector<32x256xf32>
    %384 = arith.addf %377, %383 : vector<32x256xf32>
    %385 = vector.extract_strided_slice %3 {offsets = [2, 0], sizes = [1, 256], strides = [1, 1]} : vector<4x256xf32> to vector<1x256xf32>
    %386 = vector.broadcast %385 : vector<1x256xf32> to vector<32x256xf32>
    %387 = arith.mulf %386, %369 : vector<32x256xf32>
    %388 = arith.addf %384, %387 : vector<32x256xf32>
    %389 = vector.extract_strided_slice %3 {offsets = [3, 0], sizes = [1, 256], strides = [1, 1]} : vector<4x256xf32> to vector<1x256xf32>
    %390 = vector.extract_strided_slice %369 {offsets = [0, 16], sizes = [32, 240], strides = [1, 1]} : vector<32x256xf32> to vector<32x240xf32>
    %391 = vector.extract_strided_slice %369 {offsets = [0, 0], sizes = [32, 16], strides = [1, 1]} : vector<32x256xf32> to vector<32x16xf32>
    %392 = tpu.concatenate %390, %391 in 1 : vector<32x240xf32>, vector<32x16xf32> -> vector<32x256xf32>
    %393 = vector.broadcast %389 : vector<1x256xf32> to vector<32x256xf32>
    %394 = arith.mulf %393, %392 : vector<32x256xf32>
    %395 = arith.addf %388, %394 : vector<32x256xf32>
    %396 = vector.extract_strided_slice %0 {offsets = [0, 0], sizes = [16, 256], strides = [1, 1]} : vector<64x256xf32> to vector<16x256xf32>
    %397 = vector.extract_strided_slice %246 {offsets = [0, 0], sizes = [8, 256], strides = [1, 1]} : vector<32x256xf32> to vector<8x256xf32>
    %398 = vector.extract_strided_slice %395 {offsets = [0, 0], sizes = [8, 256], strides = [1, 1]} : vector<32x256xf32> to vector<8x256xf32>
    %399 = vector.extract_strided_slice %396 {offsets = [0, 0], sizes = [8, 256], strides = [1, 1]} : vector<16x256xf32> to vector<8x256xf32>
    %400 = arith.addf %397, %399 : vector<8x256xf32>
    %cst_36 = arith.constant 0.000000e+00 : f32
    %401 = vector.broadcast %cst_36 : f32 to vector<8x256xf32>
    %402 = arith.maximumf %400, %401 : vector<8x256xf32>
    %c0_37 = arith.constant 0 : index
    %c0_38 = arith.constant 0 : index
    %403 = vector.load %arg4[%c0_37, %c0_38] : memref<64x256xf32, #tpu.memory_space<vmem>>, vector<8x256xf32>
    tpu.vector_store %arg4[%c0_37, %c0_38], %402 {strides = array<i32>} : memref<64x256xf32, #tpu.memory_space<vmem>>, vector<8x256xf32>,
    %404 = vector.extract_strided_slice %396 {offsets = [8, 0], sizes = [8, 256], strides = [1, 1]} : vector<16x256xf32> to vector<8x256xf32>
    %405 = arith.addf %398, %404 : vector<8x256xf32>
    %cst_39 = arith.constant 0.000000e+00 : f32
    %406 = vector.broadcast %cst_39 : f32 to vector<8x256xf32>
    %407 = arith.maximumf %405, %406 : vector<8x256xf32>
    %c8 = arith.constant 8 : index
    %c0_40 = arith.constant 0 : index
    %408 = vector.load %arg4[%c8, %c0_40] : memref<64x256xf32, #tpu.memory_space<vmem>>, vector<8x256xf32>
    tpu.vector_store %arg4[%c8, %c0_40], %407 {strides = array<i32>} : memref<64x256xf32, #tpu.memory_space<vmem>>, vector<8x256xf32>,
    %409 = vector.extract_strided_slice %0 {offsets = [16, 0], sizes = [16, 256], strides = [1, 1]} : vector<64x256xf32> to vector<16x256xf32>
    %410 = vector.extract_strided_slice %246 {offsets = [8, 0], sizes = [8, 256], strides = [1, 1]} : vector<32x256xf32> to vector<8x256xf32>
    %411 = vector.extract_strided_slice %395 {offsets = [8, 0], sizes = [8, 256], strides = [1, 1]} : vector<32x256xf32> to vector<8x256xf32>
    %412 = vector.extract_strided_slice %409 {offsets = [0, 0], sizes = [8, 256], strides = [1, 1]} : vector<16x256xf32> to vector<8x256xf32>
    %413 = arith.addf %410, %412 : vector<8x256xf32>
    %cst_41 = arith.constant 0.000000e+00 : f32
    %414 = vector.broadcast %cst_41 : f32 to vector<8x256xf32>
    %415 = arith.maximumf %413, %414 : vector<8x256xf32>
    %c16_42 = arith.constant 16 : index
    %c0_43 = arith.constant 0 : index
    %416 = vector.load %arg4[%c16_42, %c0_43] : memref<64x256xf32, #tpu.memory_space<vmem>>, vector<8x256xf32>
    tpu.vector_store %arg4[%c16_42, %c0_43], %415 {strides = array<i32>} : memref<64x256xf32, #tpu.memory_space<vmem>>, vector<8x256xf32>,
    %417 = vector.extract_strided_slice %409 {offsets = [8, 0], sizes = [8, 256], strides = [1, 1]} : vector<16x256xf32> to vector<8x256xf32>
    %418 = arith.addf %411, %417 : vector<8x256xf32>
    %cst_44 = arith.constant 0.000000e+00 : f32
    %419 = vector.broadcast %cst_44 : f32 to vector<8x256xf32>
    %420 = arith.maximumf %418, %419 : vector<8x256xf32>
    %c24_45 = arith.constant 24 : index
    %c0_46 = arith.constant 0 : index
    %421 = vector.load %arg4[%c24_45, %c0_46] : memref<64x256xf32, #tpu.memory_space<vmem>>, vector<8x256xf32>
    tpu.vector_store %arg4[%c24_45, %c0_46], %420 {strides = array<i32>} : memref<64x256xf32, #tpu.memory_space<vmem>>, vector<8x256xf32>,
    %422 = vector.extract_strided_slice %0 {offsets = [32, 0], sizes = [16, 256], strides = [1, 1]} : vector<64x256xf32> to vector<16x256xf32>
    %423 = vector.extract_strided_slice %246 {offsets = [16, 0], sizes = [8, 256], strides = [1, 1]} : vector<32x256xf32> to vector<8x256xf32>
    %424 = vector.extract_strided_slice %395 {offsets = [16, 0], sizes = [8, 256], strides = [1, 1]} : vector<32x256xf32> to vector<8x256xf32>
    %425 = vector.extract_strided_slice %422 {offsets = [0, 0], sizes = [8, 256], strides = [1, 1]} : vector<16x256xf32> to vector<8x256xf32>
    %426 = arith.addf %423, %425 : vector<8x256xf32>
    %cst_47 = arith.constant 0.000000e+00 : f32
    %427 = vector.broadcast %cst_47 : f32 to vector<8x256xf32>
    %428 = arith.maximumf %426, %427 : vector<8x256xf32>
    %c32 = arith.constant 32 : index
    %c0_48 = arith.constant 0 : index
    %429 = vector.load %arg4[%c32, %c0_48] : memref<64x256xf32, #tpu.memory_space<vmem>>, vector<8x256xf32>
    tpu.vector_store %arg4[%c32, %c0_48], %428 {strides = array<i32>} : memref<64x256xf32, #tpu.memory_space<vmem>>, vector<8x256xf32>,
    %430 = vector.extract_strided_slice %422 {offsets = [8, 0], sizes = [8, 256], strides = [1, 1]} : vector<16x256xf32> to vector<8x256xf32>
    %431 = arith.addf %424, %430 : vector<8x256xf32>
    %cst_49 = arith.constant 0.000000e+00 : f32
    %432 = vector.broadcast %cst_49 : f32 to vector<8x256xf32>
    %433 = arith.maximumf %431, %432 : vector<8x256xf32>
    %c40 = arith.constant 40 : index
    %c0_50 = arith.constant 0 : index
    %434 = vector.load %arg4[%c40, %c0_50] : memref<64x256xf32, #tpu.memory_space<vmem>>, vector<8x256xf32>
    tpu.vector_store %arg4[%c40, %c0_50], %433 {strides = array<i32>} : memref<64x256xf32, #tpu.memory_space<vmem>>, vector<8x256xf32>,
    %435 = vector.extract_strided_slice %0 {offsets = [48, 0], sizes = [16, 256], strides = [1, 1]} : vector<64x256xf32> to vector<16x256xf32>
    %436 = vector.extract_strided_slice %246 {offsets = [24, 0], sizes = [8, 256], strides = [1, 1]} : vector<32x256xf32> to vector<8x256xf32>
    %437 = vector.extract_strided_slice %395 {offsets = [24, 0], sizes = [8, 256], strides = [1, 1]} : vector<32x256xf32> to vector<8x256xf32>
    %438 = vector.extract_strided_slice %435 {offsets = [0, 0], sizes = [8, 256], strides = [1, 1]} : vector<16x256xf32> to vector<8x256xf32>
    %439 = arith.addf %436, %438 : vector<8x256xf32>
    %cst_51 = arith.constant 0.000000e+00 : f32
    %440 = vector.broadcast %cst_51 : f32 to vector<8x256xf32>
    %441 = arith.maximumf %439, %440 : vector<8x256xf32>
    %c48 = arith.constant 48 : index
    %c0_52 = arith.constant 0 : index
    %442 = vector.load %arg4[%c48, %c0_52] : memref<64x256xf32, #tpu.memory_space<vmem>>, vector<8x256xf32>
    tpu.vector_store %arg4[%c48, %c0_52], %441 {strides = array<i32>} : memref<64x256xf32, #tpu.memory_space<vmem>>, vector<8x256xf32>,
    %443 = vector.extract_strided_slice %435 {offsets = [8, 0], sizes = [8, 256], strides = [1, 1]} : vector<16x256xf32> to vector<8x256xf32>
    %444 = arith.addf %437, %443 : vector<8x256xf32>
    %cst_53 = arith.constant 0.000000e+00 : f32
    %445 = vector.broadcast %cst_53 : f32 to vector<8x256xf32>
    %446 = arith.maximumf %444, %445 : vector<8x256xf32>
    %c56 = arith.constant 56 : index
    %c0_54 = arith.constant 0 : index
    %447 = vector.load %arg4[%c56, %c0_54] : memref<64x256xf32, #tpu.memory_space<vmem>>, vector<8x256xf32>
    tpu.vector_store %arg4[%c56, %c0_54], %446 {strides = array<i32>} : memref<64x256xf32, #tpu.memory_space<vmem>>, vector<8x256xf32>,
    return
  }
  func.func @transform_0(%arg0: i32) -> (i32, i32) {
    %c0_i32 = arith.constant 0 : i32
    %c0_i32_0 = arith.constant 0 : i32
    return %arg0, %c0_i32 : i32, i32
  }
  func.func @transform_1(%arg0: i32) -> (i32, i32) {
    %c0_i32 = arith.constant 0 : i32
    %c0_i32_0 = arith.constant 0 : i32
    %c0_i32_1 = arith.constant 0 : i32
    return %c0_i32, %c0_i32_0 : i32, i32
  }
  func.func @transform_2(%arg0: i32) -> (i32, i32) {
    %c0_i32 = arith.constant 0 : i32
    %c0_i32_0 = arith.constant 0 : i32
    %c0_i32_1 = arith.constant 0 : i32
    return %c0_i32, %c0_i32_0 : i32, i32
  }
  func.func @transform_3(%arg0: i32) -> (i32, i32) {
    %c0_i32 = arith.constant 0 : i32
    %c0_i32_0 = arith.constant 0 : i32
    return %arg0, %c0_i32 : i32, i32
  }
}

</mosaic_0001>

<llo_original>
// kernel: tpu_custom_call.1
$region0: #{tpu_custom_call.1}
  #allocation0 [shape = 'u32[]', space=smem, size = 0x4, offset = 0x4, fixed_abs, tag = 'smem constant byte address 0x4 - core index']
  #allocation1 [shape = 'u32[144,128]{1,0:T(1,128)}', space=vmem, size = 0x12000, scoped, tag = 'internal scratch']
  %s0 = inlined_call_operand.hbm [shape: f32[8,128], index: 0, kind: input, shape index: {}]
  %s1 = inlined_call_operand.hbm [shape: f32[8,128], index: 1, kind: output, shape index: {}]
  %s2 = sld [smem:[#allocation0]]
  $region18: #{tpu_custom_call.1} parent=0
    _
  %s4 = ssub.s32 1, %s2
  %s5 = scalar_select 0, %s4, %s2
  $region1: #{tpu_custom_call.1} parent=0
    #allocation2 [shape = 'u8[4096]{0}', space=vmem, size = 0x1000, scoped, tag = 'input window, operand 0, single buffered']
    #allocation3 [shape = 's32[1]{0}', space=sflag, size = 0x4, scoped, tag = 'scoped memory for tpu_custom_call.1']
    #allocation4 [shape = 's32[1]{0}', space=sflag, size = 0x4, scoped, tag = 'scoped memory for tpu_custom_call.1']
    #allocation5 [shape = 'u8[4096]{0}', space=vmem, size = 0x1000, scoped, tag = 'output window, operand 0, single buffered']
    %6 = vsyncpa [#allocation3], 0
    %7 = vsyncpa [#allocation4], 0
    // Predicated region
    $region2: #{tpu_custom_call.1} parent=1 // pred_check
      _
    $region3: #{tpu_custom_call.1} parent=1 // pred_check_branch
      %9 = sbr.rel (0) target = $region5
    $region4: #{tpu_custom_call.1} parent=1 // pred_region
      %s11 = ssub.s32 128, 128
      %12 = vsyncadd [#allocation3], %s11
      %s14 = sshll.u32 [#allocation2], 4
      %s15 = int_to_ptr.vmem [resolvable:$true] %s14
      %17 = dma.hbm_to_vmem [thread:$0]  %s0, 128, %s15, [#allocation3]
    $region5: #{tpu_custom_call.1} parent=1 // pred_fallthru
      _
    // Predicated region
    $region6: #{tpu_custom_call.1} parent=1 // pred_check
      _
    $region7: #{tpu_custom_call.1} parent=1 // pred_check_branch
      %19 = sbr.rel (0) target = $region9
    $region8: #{tpu_custom_call.1} parent=1 // pred_region
      %20 = dma.done [#allocation3], 128
    $region9: #{tpu_custom_call.1} parent=1 // pred_fallthru
      _
    %v21 = vld [vmem:[#allocation2] sm:$0xff]
    %22 = vrot.lane.b32.xlu0 %v21, 1
    %v23 = vpop.permute.xlu0 %22
    %24 = vst [vmem:[#allocation5] sm:$0xff] %v23
    // Predicated region
    $region10: #{tpu_custom_call.1} parent=1 // pred_check
      _
    $region11: #{tpu_custom_call.1} parent=1 // pred_check_branch
      %26 = sbr.rel (0) target = $region13
    $region12: #{tpu_custom_call.1} parent=1 // pred_region
      %s28 = ssub.s32 128, 128
      %29 = vsyncadd [#allocation4], %s28
      %s31 = sshll.u32 [#allocation5], 4
      %s32 = int_to_ptr.vmem [resolvable:$true] %s31
      %34 = dma.vmem_to_hbm [thread:$0]  %s32, 128, %s1, [#allocation4]
    $region13: #{tpu_custom_call.1} parent=1 // pred_fallthru
      _
    // Predicated region
    $region14: #{tpu_custom_call.1} parent=1 // pred_check
      _
    $region15: #{tpu_custom_call.1} parent=1 // pred_check_branch
      %36 = sbr.rel (0) target = $region17
    $region16: #{tpu_custom_call.1} parent=1 // pred_region
      %37 = dma.done [#allocation4], 128
    $region17: #{tpu_custom_call.1} parent=1 // pred_fallthru
      _
    %38 = vsyncpa [#allocation3], 1
    %39 = vsyncpa [#allocation4], 1

// kernel: mul.91
$region0: #{mul.91}
  #allocation0 [shape = 's32[1]{0}', space=sflag, size = 0x4, scoped, tag = 'scoped memory for mul.91']
  %s0 = inlined_call_operand.vmem [shape: f32[8], index: 0, kind: input, shape index: {}]
  %s1 = inlined_call_operand.vmem [shape: f32[8], index: 1, kind: input, shape index: {}]
  %s2 = inlined_call_operand.vmem [shape: f32[8], index: 2, kind: output, shape index: {}]
  %v3 = vld [vmem:[%s0] sm:$0x1]
  %v4 = vld [vmem:[%s1] sm:$0x1]
  %5 = xla_tuple %v3, %v4
  %6 = xla_tuple %5
  %v7 = vmul.f32 %v3, %v4
  %8 = xla_tuple %v7
  %9 = vst [vmem:[%s2] sm:$0x1] %v7

// kernel: ml_bottleneck_forward.1
$region0: #{ml_bottleneck_forward.1}
  #allocation0 [shape = 'u32[]', space=smem, size = 0x4, offset = 0x4, fixed_abs, tag = 'smem constant byte address 0x4 - core index']
  #allocation1 [shape = 'u32[144,128]{1,0:T(1,128)}', space=vmem, size = 0x12000, scoped, tag = 'internal scratch']
  %s0 = inlined_call_operand.vmem [shape: f32[128,256], index: 0, kind: input, shape index: {}]
  %s1 = inlined_call_operand.vmem [shape: f32[32,256], index: 1, kind: input, shape index: {}]
  %s2 = inlined_call_operand.vmem [shape: f32[32,256], index: 2, kind: input, shape index: {}]
  %s3 = inlined_call_operand.vmem [shape: f32[128,256], index: 3, kind: output, shape index: {}]
  %s4 = sld [smem:[#allocation0]]
  $region45: #{ml_bottleneck_forward.1} parent=0
    _
  %s6 = ssub.s32 1, %s4
  %s7 = scalar_select 0, %s6, %s4
  loop: start=0, step=1, limit=4
  $region2: #{ml_bottleneck_forward.1} parent=0 // loop_pre_header
    _
  $region3: #{ml_bottleneck_forward.1} parent=0 // loop_header
    %s9 = sphi 0, %s13
    %p10 = scmp.ge.s32.totalorder %s9, 4
    %s19 = sphi 0, %s21
    %s22 = sphi 0, %s19
    %s23 = sphi 0, %s22
    %s39 = sphi 0, %s23
    %s43 = sphi 0, %s43
    %s45 = sphi 0, %s43
    %s46 = sphi 0, %s45
    %s60 = sphi 0, %s46
    %s64 = sphi 0, %s64
    %s66 = sphi 0, %s64
    %s67 = sphi 0, %s66
    %s81 = sphi 0, %s67
    %s87 = sphi 0, %s89
    %s90 = sphi 0, %s87
    %s91 = sphi 0, %s90
    %s107 = sphi 0, %s91
  $region4: #{ml_bottleneck_forward.1} parent=0 // loop_header_branch
    %12 = sbr.rel (%p10) target = $region8
  $region5: #{ml_bottleneck_forward.1} parent=0 // loop_body
    %s14 = ssub.s32 %s9, 1
    %s15 = ssub.s32 %s9, 2
    %s16 = sadd.s32 %s9, 1
    %s17 = ssub.s32 %s9, %s16
    %p18 = scmp.eq.s32.totalorder %s17, 0
    %s20 = sadd.s32 %s19, 1
    %s21 = scalar_select %p18, %s19, %s20
    %p24 = pneg %p18
    %p25 = scmp.eq.s32.totalorder %s9, 1
    %p26 = por %p24, %p25
    %p27 = scmp.ne.s32.totalorder %s19, %s22
    %p28 = scmp.eq.s32.totalorder %s9, 0
    %p29 = por %p27, %p28
    %p30 = scmp.ne.s32.totalorder %s19, %s22
    %p31 = scmp.eq.s32.totalorder %s14, 1
    %p32 = por %p30, %p31
    %p33 = scmp.ne.s32.totalorder %s22, %s23
    %p34 = scmp.eq.s32.totalorder %s14, 0
    %p35 = por %p33, %p34
    %p36 = scmp.ne.s32.totalorder %s22, %s23
    %p37 = scmp.eq.s32.totalorder %s15, 1
    %p38 = por %p36, %p37
    %p40 = scmp.ne.s32.totalorder %s23, %s39
    %p41 = scmp.eq.s32.totalorder %s15, 0
    %p42 = por %p40, %p41
    %s44 = sadd.s32 %s43, 1
    %p47 = scmp.eq.s32.totalorder %s9, 1
    %p48 = scmp.ne.s32.totalorder %s43, %s45
    %p49 = scmp.eq.s32.totalorder %s9, 0
    %p50 = por %p48, %p49
    %p51 = scmp.ne.s32.totalorder %s43, %s45
    %p52 = scmp.eq.s32.totalorder %s14, 1
    %p53 = por %p51, %p52
    %p54 = scmp.ne.s32.totalorder %s45, %s46
    %p55 = scmp.eq.s32.totalorder %s14, 0
    %p56 = por %p54, %p55
    %p57 = scmp.ne.s32.totalorder %s45, %s46
    %p58 = scmp.eq.s32.totalorder %s15, 1
    %p59 = por %p57, %p58
    %p61 = scmp.ne.s32.totalorder %s46, %s60
    %p62 = scmp.eq.s32.totalorder %s15, 0
    %p63 = por %p61, %p62
    %s65 = sadd.s32 %s64, 1
    %p68 = scmp.eq.s32.totalorder %s9, 1
    %p69 = scmp.ne.s32.totalorder %s64, %s66
    %p70 = scmp.eq.s32.totalorder %s9, 0
    %p71 = por %p69, %p70
    %p72 = scmp.ne.s32.totalorder %s64, %s66
    %p73 = scmp.eq.s32.totalorder %s14, 1
    %p74 = por %p72, %p73
    %p75 = scmp.ne.s32.totalorder %s66, %s67
    %p76 = scmp.eq.s32.totalorder %s14, 0
    %p77 = por %p75, %p76
    %p78 = scmp.ne.s32.totalorder %s66, %s67
    %p79 = scmp.eq.s32.totalorder %s15, 1
    %p80 = por %p78, %p79
    %p82 = scmp.ne.s32.totalorder %s67, %s81
    %p83 = scmp.eq.s32.totalorder %s15, 0
    %p84 = por %p82, %p83
    %s85 = ssub.s32 %s9, %s16
    %p86 = scmp.eq.s32.totalorder %s85, 0
    %s88 = sadd.s32 %s87, 1
    %s89 = scalar_select %p86, %s87, %s88
    %p92 = pneg %p86
    %p93 = scmp.eq.s32.totalorder %s9, 1
    %p94 = por %p92, %p93
    %p95 = scmp.ne.s32.totalorder %s87, %s90
    %p96 = scmp.eq.s32.totalorder %s9, 0
    %p97 = por %p95, %p96
    %p98 = scmp.ne.s32.totalorder %s87, %s90
    %p99 = scmp.eq.s32.totalorder %s14, 1
    %p100 = por %p98, %p99
    %p101 = scmp.ne.s32.totalorder %s90, %s91
    %p102 = scmp.eq.s32.totalorder %s14, 0
    %p103 = por %p101, %p102
    %p104 = scmp.ne.s32.totalorder %s90, %s91
    %p105 = scmp.eq.s32.totalorder %s15, 1
    %p106 = por %p104, %p105
    %p108 = scmp.ne.s32.totalorder %s91, %s107
    %p109 = scmp.eq.s32.totalorder %s15, 0
    %p110 = por %p108, %p109
    %p111 = scmp.le.s32.totalorder 1, %s9
    %p112 = scmp.lt.s32.totalorder %s9, 3
    %p113 = pnand %p111, %p112
    %p114 = pneg %p113
    // Predicated region
    $region9: #{ml_bottleneck_forward.1} parent=5 // pred_check
      _
    $region10: #{ml_bottleneck_forward.1} parent=5 // pred_check_branch
      %116 = sbr.rel (%p113) target = $region12
    $region11: #{ml_bottleneck_forward.1} parent=5 // pred_region
      %s117 = ssub.s32 %s9, 1
      // Predicated region
      $region13: #{ml_bottleneck_forward.1} parent=11 // pred_check
        %p118 = pneg %p56
      $region14: #{ml_bottleneck_forward.1} parent=11 // pred_check_branch
        %120 = sbr.rel (%p118) target = $region16
      $region15: #{ml_bottleneck_forward.1} parent=11 // pred_region
        _
      $region16: #{ml_bottleneck_forward.1} parent=11 // pred_fallthru
        _
      // Predicated region
      $region17: #{ml_bottleneck_forward.1} parent=11 // pred_check
        %p121 = pneg %p77
      $region18: #{ml_bottleneck_forward.1} parent=11 // pred_check_branch
        %123 = sbr.rel (%p121) target = $region20
      $region19: #{ml_bottleneck_forward.1} parent=11 // pred_region
        _
      $region20: #{ml_bottleneck_forward.1} parent=11 // pred_fallthru
        _
    $region12: #{ml_bottleneck_forward.1} parent=5 // pred_fallthru
      _
    %p124 = scmp.lt.s32.totalorder %s9, 2
    // Predicated region
    $region21: #{ml_bottleneck_forward.1} parent=5 // pred_check
      %p125 = pneg %p124
    $region22: #{ml_bottleneck_forward.1} parent=5 // pred_check_branch
      %127 = sbr.rel (%p125) target = $region24
    $region23: #{ml_bottleneck_forward.1} parent=5 // pred_region
      // Predicated region
      $region25: #{ml_bottleneck_forward.1} parent=23 // pred_check
        %p128 = pneg %p29
      $region26: #{ml_bottleneck_forward.1} parent=23 // pred_check_branch
        %130 = sbr.rel (%p128) target = $region28
      $region27: #{ml_bottleneck_forward.1} parent=23 // pred_region
        %s131 = smul.u32 8, %s9
        %p132 = scmp.lt.s32.totalorder %s131, 15
        %s133 = scalar_select %p132, %s131, 15
        %s134 = smul.addr %s133, 2
        %s135 = smul.addr %s134, 8
        %s136 = scalar_lea.vmem %s0, %s135
        %s137 = smul.u32 8, %s9
      $region28: #{ml_bottleneck_forward.1} parent=23 // pred_fallthru
        _
    $region24: #{ml_bottleneck_forward.1} parent=5 // pred_fallthru
      _
    %p138 = scmp.le.s32.totalorder 1, %s9
    %p139 = scmp.lt.s32.totalorder %s9, 3
    %p140 = pnand %p138, %p139
    %p141 = pneg %p140
    // Predicated region
    $region29: #{ml_bottleneck_forward.1} parent=5 // pred_check
      _
    $region30: #{ml_bottleneck_forward.1} parent=5 // pred_check_branch
      %143 = sbr.rel (%p140) target = $region32
    $region31: #{ml_bottleneck_forward.1} parent=5 // pred_region
      %s144 = ssub.s32 %s9, 1
      %s145 = smul.u32 8, %s14
      %p146 = scmp.lt.s32.totalorder %s145, 15
      %s147 = scalar_select %p146, %s145, 15
      %s148 = smul.addr %s147, 2
      %s149 = smul.addr %s148, 8
      %s150 = scalar_lea.vmem %s0, %s149
      %p151 = pneg %p35
      %p152 = pneg %p32
      %p153 = pneg %p56
      %p154 = pneg %p53
      %p155 = pneg %p77
      %p156 = pneg %p74
      %p157 = pneg %p103
      %p158 = pneg %p100
      %s159 = smul.u32 8, %s14
      %p160 = scmp.lt.s32.totalorder %s159, 15
      %s161 = scalar_select %p160, %s159, 15
      %s162 = smul.addr %s161, 2
      %s163 = smul.addr %s162, 8
      %s164 = scalar_lea.vmem %s3, %s163
      %s165 = smul.u32 8, %s14
      %p166 = scmp.lt.s32.totalorder %s165, 15
      %s167 = scalar_select %p166, %s165, 15
      %s168 = smul.addr %s167, 2
      %s169 = smul.addr %s168, 8
      %s170 = scalar_lea.vmem %s0, %s169
      %s171 = smul.u32 8, %s14
      %s172 = smul.u32 8, %s14
      %p173 = scmp.lt.s32.totalorder %s172, 15
      %s174 = scalar_select %p173, %s172, 15
      %s175 = smul.addr %s174, 2
      %s176 = smul.addr %s175, 8
      %s177 = scalar_lea.vmem %s3, %s176
      %s178 = smul.u32 8, %s14
      %v179 = vld [vmem:[%s170] sm:$0xff]
      %v180 = vld [vmem:[%s170 + $0x8] sm:$0xff]
      %v181 = vld [vmem:[%s170 + $0x10] sm:$0xff]
      %v182 = vld [vmem:[%s170 + $0x18] sm:$0xff]
      %v183 = vld [vmem:[%s170 + $0x20] sm:$0xff]
      %v184 = vld [vmem:[%s170 + $0x28] sm:$0xff]
      %v185 = vld [vmem:[%s170 + $0x30] sm:$0xff]
      %v186 = vld [vmem:[%s170 + $0x38] sm:$0xff]
      %v187 = vld [vmem:[%s170 + $0x40] sm:$0xff]
      %v188 = vld [vmem:[%s170 + $0x48] sm:$0xff]
      %v189 = vld [vmem:[%s170 + $0x50] sm:$0xff]
      %v190 = vld [vmem:[%s170 + $0x58] sm:$0xff]
      %v191 = vld [vmem:[%s170 + $0x60] sm:$0xff]
      %v192 = vld [vmem:[%s170 + $0x68] sm:$0xff]
      %v193 = vld [vmem:[%s170 + $0x70] sm:$0xff]
      %v194 = vld [vmem:[%s170 + $0x78] sm:$0xff]
      %v195 = vld [vmem:[%s2] sm:$0xff]
      %v196 = vld [vmem:[%s2 + $0x8] sm:$0xff]
      %v197 = vld [vmem:[%s2 + $0x10] sm:$0x1]
      %v198 = vld [vmem:[%s2 + $0x18] sm:$0x1]
      %v199 = vld [vmem:[%s2 + $0x20] sm:$0xf]
      %v200 = vld [vmem:[%s2 + $0x28] sm:$0xf]
      %v201 = vld [vmem:[%s2 + $0x30] sm:$0xf]
      %v202 = vld [vmem:[%s2 + $0x38] sm:$0xf]
      %v203 = vld [vmem:[%s1] sm:$0xff]
      %205 = vset.pattern.permute.xlu0 124
      %206 = vperm.xlu0 %205, %v203
      %v207 = vpop.permute.xlu0 %206
      %vm209 = vcmask 523264
      %v210 = vsel %vm209, %v203, 0
      %212 = vmatprep.subr.mxu0 0.0
      %213 = vmatpush1.msra.mxu0 0.0
      %214 = vmatprep.subr.mxu0 0.0
      %215 = vmatpush1.msra.mxu0 0.0
      %216 = vmatprep.subr.mxu0 0.0
      %217 = vmatpush1.msra.mxu0 0.0
      %218 = vmatprep.subr.mxu0 0.0
      %219 = vmatpush1.msra.mxu0 0.0
      %220 = vmatprep.subr.mxu0 0.0
      %221 = vmatpush1.msra.mxu0 0.0
      %222 = vmatprep.subr.mxu0 0.0
      %223 = vmatpush1.msra.mxu0 0.0
      %224 = vmatprep.subr.mxu0 0.0
      %225 = vmatpush1.msra.mxu0 0.0
      %226 = vmatprep.subr.mxu0 0.0
      %227 = vmatpush1.msra.mxu0 0.0
      %228 = vmatprep.subr.mxu0 %v194
      %229 = vmatpush1.msra.mxu0 %v193
      %230 = vmatprep.subr.mxu0 %v192
      %231 = vmatpush1.msra.mxu0 %v191
      %232 = vmatprep.subr.mxu0 %v190
      %233 = vmatpush1.msra.mxu0 %v189
      %234 = vmatprep.subr.mxu0 %v188
      %235 = vmatpush1.msra.mxu0 %v187
      %236 = vmatprep.subr.mxu0 %v186
      %237 = vmatpush1.msra.mxu0 %v185
      %238 = vmatprep.subr.mxu0 %v184
      %239 = vmatpush1.msra.mxu0 %v183
      %240 = vmatprep.subr.mxu0 %v182
      %241 = vmatpush1.msra.mxu0 %v181
      %242 = vmatprep.subr.mxu0 %v180
      %243 = vmatpush1.msra.mxu0 %v179
      %244 = vmatprep.subr.mxu0 0.0
      %245 = vmatpush2.msra.mxu0 0.0
      %246 = vmatprep.subr.mxu0 0.0
      %247 = vmatpush2.msra.mxu0 0.0
      %248 = vmatprep.subr.mxu0 0.0
      %249 = vmatpush2.msra.mxu0 0.0
      %250 = vmatprep.subr.mxu0 0.0
      %251 = vmatpush2.msra.mxu0 0.0
      %252 = vmatprep.subr.mxu0 0.0
      %253 = vmatpush2.msra.mxu0 0.0
      %254 = vmatprep.subr.mxu0 0.0
      %255 = vmatpush2.msra.mxu0 0.0
      %256 = vmatprep.subr.mxu0 0.0
      %257 = vmatpush2.msra.mxu0 0.0
      %258 = vmatprep.subr.mxu0 0.0
      %259 = vmatpush2.msra.mxu0 0.0
      %260 = vmatprep.subr.mxu0 0.0
      %261 = vmatpush2.msra.mxu0 0.0
      %262 = vmatprep.subr.mxu0 0.0
      %263 = vmatpush2.msra.mxu0 0.0
      %264 = vmatprep.subr.mxu0 0.0
      %265 = vmatpush2.msra.mxu0 0.0
      %266 = vmatprep.subr.mxu0 0.0
      %267 = vmatpush2.msra.mxu0 0.0
      %268 = vmatprep.subr.mxu0 0.0
      %269 = vmatpush2.msra.mxu0 0.0
      %270 = vmatprep.subr.mxu0 0.0
      %271 = vmatpush2.msra.mxu0 0.0
      %272 = vmatprep.subr.mxu0 0.0
      %273 = vmatpush2.msra.mxu0 0.0
      %274 = vmatprep.subr.mxu0 0.0
      %275 = vmatpush2.msra.mxu0 0.0
      %276 = vmatprep.mubr.f32.mxu0 0.0
      %277 = vmatmul.mubr.f32.gmra.mxu0 %v210
      %v278 = vpop.f32.mrf.mxu0
      %v279 = vadd.f32 %v207, %v278
      %v280 = vpop.f32.mrf.mxu0
      %v281 = vadd.f32 %v207, %v280
      %282 = vdwg.mxu0
      %v283 = vmax.f32 %v279, 0.0
      %v284 = vmax.f32 %v281, 0.0
      %286 = vrot.lane.b32.xlu0 %v284, 17
      %v287 = vpop.permute.xlu0 %286
      %290 = vrot.lane.b32.xlu0 %v283, 17
      %v291 = vpop.permute.xlu0 %290
      %vm292 = vcmask 138240
      %v293 = vsel %vm292, %v291, %v287
      %v296 = vsel %vm292, %v287, %v291
      %v297 = vlaneseq
      %v298 = vshrl.u32 %v297, 7
      %v299 = vsub.s32 0, %v298
      %v300 = vrot.slane %v195, %v299
      %v301 = vlaneseq
      %v302 = vshrl.u32 %v301, 7
      %v303 = vsub.s32 0, %v302
      %v304 = vrot.slane %v196, %v303
      %v305 = vmul.f32 %v296, %v300
      %v306 = vmul.f32 %v293, %v304
      %307 = vset.pattern.permute.xlu0 88
      %308 = vperm.xlu0 %307, %v203
      %v309 = vpop.permute.xlu0 %308
      %v311 = vmul.f32 %v309, %v305
      %v312 = vmul.f32 %v309, %v306
      %v313 = vadd.f32 %v311, 0.0
      %v314 = vadd.f32 %v312, 0.0
      %315 = vset.pattern.permute.xlu0 97
      %316 = vperm.xlu0 %315, %v203
      %v317 = vpop.permute.xlu0 %316
      %v319 = vmul.f32 %v317, %v305
      %v320 = vmul.f32 %v317, %v306
      %v321 = vadd.f32 %v319, 0.0
      %v322 = vadd.f32 %v320, 0.0
      %323 = vrot.lane.b32.xlu0 %v284, 16
      %v324 = vpop.permute.xlu0 %323
      %326 = vrot.lane.b32.xlu0 %v283, 16
      %v327 = vpop.permute.xlu0 %326
      %vm328 = vcmask 130048
      %v329 = vsel %vm328, %v327, %v324
      %v332 = vsel %vm328, %v324, %v327
      %v333 = vlaneseq
      %v334 = vshrl.u32 %v333, 7
      %v335 = vsub.s32 1, %v334
      %v336 = vrot.slane %v195, %v335
      %v337 = vlaneseq
      %v338 = vshrl.u32 %v337, 7
      %v339 = vsub.s32 1, %v338
      %v340 = vrot.slane %v196, %v339
      %v341 = vmul.f32 %v332, %v336
      %v342 = vmul.f32 %v329, %v340
      %343 = vset.pattern.permute.xlu0 89
      %344 = vperm.xlu0 %343, %v203
      %v345 = vpop.permute.xlu0 %344
      %v347 = vmul.f32 %v345, %v341
      %v348 = vmul.f32 %v345, %v342
      %v349 = vadd.f32 %v313, %v347
      %v350 = vadd.f32 %v314, %v348
      %351 = vset.pattern.permute.xlu0 98
      %352 = vperm.xlu0 %351, %v203
      %v353 = vpop.permute.xlu0 %352
      %v355 = vmul.f32 %v353, %v341
      %v356 = vmul.f32 %v353, %v342
      %v357 = vadd.f32 %v321, %v355
      %v358 = vadd.f32 %v322, %v356
      %359 = vrot.lane.b32.xlu0 %v284, 15
      %v360 = vpop.permute.xlu0 %359
      %362 = vrot.lane.b32.xlu0 %v283, 15
      %v363 = vpop.permute.xlu0 %362
      %vm364 = vcmask 121856
      %v365 = vsel %vm364, %v363, %v360
      %v368 = vsel %vm364, %v360, %v363
      %v369 = vlaneseq
      %v370 = vshrl.u32 %v369, 7
      %v371 = vsub.s32 2, %v370
      %v372 = vrot.slane %v195, %v371
      %v373 = vlaneseq
      %v374 = vshrl.u32 %v373, 7
      %v375 = vsub.s32 2, %v374
      %v376 = vrot.slane %v196, %v375
      %v377 = vmul.f32 %v368, %v372
      %v378 = vmul.f32 %v365, %v376
      %379 = vset.pattern.permute.xlu0 90
      %380 = vperm.xlu0 %379, %v203
      %v381 = vpop.permute.xlu0 %380
      %v383 = vmul.f32 %v381, %v377
      %v384 = vmul.f32 %v381, %v378
      %v385 = vadd.f32 %v349, %v383
      %v386 = vadd.f32 %v350, %v384
      %387 = vset.pattern.permute.xlu0 99
      %388 = vperm.xlu0 %387, %v203
      %v389 = vpop.permute.xlu0 %388
      %v391 = vmul.f32 %v389, %v377
      %v392 = vmul.f32 %v389, %v378
      %v393 = vadd.f32 %v357, %v391
      %v394 = vadd.f32 %v358, %v392
      %395 = vrot.lane.b32.xlu0 %v284, 1
      %v396 = vpop.permute.xlu0 %395
      %398 = vrot.lane.b32.xlu0 %v283, 1
      %v399 = vpop.permute.xlu0 %398
      %vm400 = vcmask 7168
      %v401 = vsel %vm400, %v399, %v396
      %v404 = vsel %vm400, %v396, %v399
      %v405 = vlaneseq
      %v406 = vshrl.u32 %v405, 7
      %v407 = vsub.s32 3, %v406
      %v408 = vrot.slane %v195, %v407
      %v409 = vlaneseq
      %v410 = vshrl.u32 %v409, 7
      %v411 = vsub.s32 3, %v410
      %v412 = vrot.slane %v196, %v411
      %v413 = vmul.f32 %v404, %v408
      %v414 = vmul.f32 %v401, %v412
      %415 = vset.pattern.permute.xlu0 91
      %416 = vperm.xlu0 %415, %v203
      %v417 = vpop.permute.xlu0 %416
      %v419 = vmul.f32 %v417, %v413
      %v420 = vmul.f32 %v417, %v414
      %v421 = vadd.f32 %v385, %v419
      %v422 = vadd.f32 %v386, %v420
      %423 = vset.pattern.permute.xlu0 100
      %424 = vperm.xlu0 %423, %v203
      %v425 = vpop.permute.xlu0 %424
      %v427 = vmul.f32 %v425, %v413
      %v428 = vmul.f32 %v425, %v414
      %v429 = vadd.f32 %v393, %v427
      %v430 = vadd.f32 %v394, %v428
      %431 = vset.pattern.permute.xlu0 92
      %432 = vperm.xlu0 %431, %v203
      %v433 = vpop.permute.xlu0 %432
      %v435 = vmul.f32 %v433, %v283
      %v436 = vmul.f32 %v433, %v284
      %v437 = vadd.f32 %v421, %v435
      %v438 = vadd.f32 %v422, %v436
      %439 = vset.pattern.permute.xlu0 101
      %440 = vperm.xlu0 %439, %v203
      %v441 = vpop.permute.xlu0 %440
      %v443 = vmul.f32 %v441, %v283
      %v444 = vmul.f32 %v441, %v284
      %v445 = vadd.f32 %v429, %v443
      %v446 = vadd.f32 %v430, %v444
      %447 = vrot.lane.b32.xlu0 %v283, 127
      %v448 = vpop.permute.xlu0 %447
      %449 = vrot.lane.b32.xlu0 %v284, 127
      %v450 = vpop.permute.xlu0 %449
      %vm451 = vcmask 1039360
      %v452 = vsel %vm451, %v448, %v450
      %v456 = vsel %vm451, %v450, %v448
      %v457 = vlaneseq
      %v458 = vshrl.u32 %v457, 7
      %v459 = vsub.s32 5, %v458
      %v460 = vrot.slane %v195, %v459
      %v461 = vlaneseq
      %v462 = vshrl.u32 %v461, 7
      %v463 = vsub.s32 5, %v462
      %v464 = vrot.slane %v196, %v463
      %v465 = vmul.f32 %v452, %v460
      %v466 = vmul.f32 %v456, %v464
      %467 = vset.pattern.permute.xlu0 93
      %468 = vperm.xlu0 %467, %v203
      %v469 = vpop.permute.xlu0 %468
      %v471 = vmul.f32 %v469, %v465
      %v472 = vmul.f32 %v469, %v466
      %v473 = vadd.f32 %v437, %v471
      %v474 = vadd.f32 %v438, %v472
      %475 = vset.pattern.permute.xlu0 102
      %476 = vperm.xlu0 %475, %v203
      %v477 = vpop.permute.xlu0 %476
      %v479 = vmul.f32 %v477, %v465
      %v480 = vmul.f32 %v477, %v466
      %v481 = vadd.f32 %v445, %v479
      %v482 = vadd.f32 %v446, %v480
      %483 = vrot.lane.b32.xlu0 %v283, 113
      %v484 = vpop.permute.xlu0 %483
      %485 = vrot.lane.b32.xlu0 %v284, 113
      %v486 = vpop.permute.xlu0 %485
      %vm487 = vcmask 924672
      %v488 = vsel %vm487, %v484, %v486
      %v492 = vsel %vm487, %v486, %v484
      %v493 = vlaneseq
      %v494 = vshrl.u32 %v493, 7
      %v495 = vsub.s32 6, %v494
      %v496 = vrot.slane %v195, %v495
      %v497 = vlaneseq
      %v498 = vshrl.u32 %v497, 7
      %v499 = vsub.s32 6, %v498
      %v500 = vrot.slane %v196, %v499
      %v501 = vmul.f32 %v488, %v496
      %v502 = vmul.f32 %v492, %v500
      %503 = vset.pattern.permute.xlu0 94
      %504 = vperm.xlu0 %503, %v203
      %v505 = vpop.permute.xlu0 %504
      %v507 = vmul.f32 %v505, %v501
      %v508 = vmul.f32 %v505, %v502
      %v509 = vadd.f32 %v473, %v507
      %v510 = vadd.f32 %v474, %v508
      %511 = vset.pattern.permute.xlu0 103
      %512 = vperm.xlu0 %511, %v203
      %v513 = vpop.permute.xlu0 %512
      %v515 = vmul.f32 %v513, %v501
      %v516 = vmul.f32 %v513, %v502
      %v517 = vadd.f32 %v481, %v515
      %v518 = vadd.f32 %v482, %v516
      %519 = vrot.lane.b32.xlu0 %v283, 112
      %v520 = vpop.permute.xlu0 %519
      %521 = vrot.lane.b32.xlu0 %v284, 112
      %v522 = vpop.permute.xlu0 %521
      %vm523 = vcmask 916480
      %v524 = vsel %vm523, %v520, %v522
      %v528 = vsel %vm523, %v522, %v520
      %v529 = vlaneseq
      %v530 = vshrl.u32 %v529, 7
      %v531 = vsub.s32 7, %v530
      %v532 = vrot.slane %v195, %v531
      %v533 = vlaneseq
      %v534 = vshrl.u32 %v533, 7
      %v535 = vsub.s32 7, %v534
      %v536 = vrot.slane %v196, %v535
      %v537 = vmul.f32 %v524, %v532
      %v538 = vmul.f32 %v528, %v536
      %539 = vset.pattern.permute.xlu0 95
      %540 = vperm.xlu0 %539, %v203
      %v541 = vpop.permute.xlu0 %540
      %v543 = vmul.f32 %v541, %v537
      %v544 = vmul.f32 %v541, %v538
      %v545 = vadd.f32 %v509, %v543
      %v546 = vadd.f32 %v510, %v544
      %547 = vset.pattern.permute.xlu0 104
      %548 = vperm.xlu0 %547, %v203
      %v549 = vpop.permute.xlu0 %548
      %v551 = vmul.f32 %v549, %v537
      %v552 = vmul.f32 %v549, %v538
      %v553 = vadd.f32 %v517, %v551
      %v554 = vadd.f32 %v518, %v552
      %555 = vrot.lane.b32.xlu0 %v283, 111
      %v556 = vpop.permute.xlu0 %555
      %557 = vrot.lane.b32.xlu0 %v284, 111
      %v558 = vpop.permute.xlu0 %557
      %vm559 = vcmask 908288
      %v560 = vsel %vm559, %v556, %v558
      %v564 = vsel %vm559, %v558, %v556
      %v565 = vlaneseq
      %v566 = vshrl.u32 %v565, 7
      %v567 = vsub.s32 0, %v566
      %v568 = vrot.slane %v197, %v567
      %v569 = vlaneseq
      %v570 = vshrl.u32 %v569, 7
      %v571 = vsub.s32 0, %v570
      %v572 = vrot.slane %v198, %v571
      %v573 = vmul.f32 %v560, %v568
      %v574 = vmul.f32 %v564, %v572
      %575 = vset.pattern.permute.xlu0 96
      %576 = vperm.xlu0 %575, %v203
      %v577 = vpop.permute.xlu0 %576
      %v579 = vmul.f32 %v577, %v573
      %v580 = vmul.f32 %v577, %v574
      %v581 = vadd.f32 %v545, %v579
      %v582 = vadd.f32 %v546, %v580
      %583 = vset.pattern.permute.xlu0 105
      %584 = vperm.xlu0 %583, %v203
      %v585 = vpop.permute.xlu0 %584
      %v587 = vmul.f32 %v585, %v573
      %v588 = vmul.f32 %v585, %v574
      %v589 = vadd.f32 %v553, %v587
      %v590 = vadd.f32 %v554, %v588
      %591 = vset.pattern.permute.xlu0 125
      %592 = vperm.xlu0 %591, %v203
      %v593 = vpop.permute.xlu0 %592
      %v595 = vadd.f32 %v581, %v593
      %v596 = vadd.f32 %v582, %v593
      %597 = vset.pattern.permute.xlu0 127
      %598 = vperm.xlu0 %597, %v203
      %v599 = vpop.permute.xlu0 %598
      %v601 = vadd.f32 %v589, %v599
      %v602 = vadd.f32 %v590, %v599
      %v603 = vmax.f32 %v595, 0.0
      %v604 = vmax.f32 %v596, 0.0
      %605 = vset.pattern.permute.xlu0 126
      %606 = vperm.xlu0 %605, %v203
      %v607 = vpop.permute.xlu0 %606
      %609 = vrot.lane.b32.xlu0 %v203, 64
      %v610 = vpop.permute.xlu0 %609
      %vm611 = vcmask 64512
      %v612 = vsel %vm611, %v610, 0
      %614 = vmatprep.subr.mxu0 0.0
      %615 = vmatpush1.msra.mxu0 0.0
      %616 = vmatprep.subr.mxu0 0.0
      %617 = vmatpush1.msra.mxu0 0.0
      %618 = vmatprep.subr.mxu0 0.0
      %619 = vmatpush1.msra.mxu0 0.0
      %620 = vmatprep.subr.mxu0 0.0
      %621 = vmatpush1.msra.mxu0 0.0
      %622 = vmatprep.subr.mxu0 0.0
      %623 = vmatpush1.msra.mxu0 0.0
      %624 = vmatprep.subr.mxu0 0.0
      %625 = vmatpush1.msra.mxu0 0.0
      %626 = vmatprep.subr.mxu0 0.0
      %627 = vmatpush1.msra.mxu0 0.0
      %628 = vmatprep.subr.mxu0 0.0
      %629 = vmatpush1.msra.mxu0 0.0
      %630 = vmatprep.subr.mxu0 0.0
      %631 = vmatpush1.msra.mxu0 0.0
      %632 = vmatprep.subr.mxu0 0.0
      %633 = vmatpush1.msra.mxu0 0.0
      %634 = vmatprep.subr.mxu0 0.0
      %635 = vmatpush1.msra.mxu0 0.0
      %636 = vmatprep.subr.mxu0 0.0
      %637 = vmatpush1.msra.mxu0 0.0
      %638 = vmatprep.subr.mxu0 0.0
      %639 = vmatpush1.msra.mxu0 0.0
      %640 = vmatprep.subr.mxu0 0.0
      %641 = vmatpush1.msra.mxu0 0.0
      %642 = vmatprep.subr.mxu0 0.0
      %643 = vmatpush1.msra.mxu0 0.0
      %644 = vmatprep.subr.mxu0 %v604
      %645 = vmatpush1.msra.mxu0 %v603
      %646 = vmatprep.subr.mxu0 0.0
      %647 = vmatpush2.msra.mxu0 0.0
      %648 = vmatprep.subr.mxu0 0.0
      %649 = vmatpush2.msra.mxu0 0.0
      %650 = vmatprep.subr.mxu0 0.0
      %651 = vmatpush2.msra.mxu0 0.0
      %652 = vmatprep.subr.mxu0 0.0
      %653 = vmatpush2.msra.mxu0 0.0
      %654 = vmatprep.subr.mxu0 0.0
      %655 = vmatpush2.msra.mxu0 0.0
      %656 = vmatprep.subr.mxu0 0.0
      %657 = vmatpush2.msra.mxu0 0.0
      %658 = vmatprep.subr.mxu0 0.0
      %659 = vmatpush2.msra.mxu0 0.0
      %660 = vmatprep.subr.mxu0 0.0
      %661 = vmatpush2.msra.mxu0 0.0
      %662 = vmatprep.subr.mxu0 0.0
      %663 = vmatpush2.msra.mxu0 0.0
      %664 = vmatprep.subr.mxu0 0.0
      %665 = vmatpush2.msra.mxu0 0.0
      %666 = vmatprep.subr.mxu0 0.0
      %667 = vmatpush2.msra.mxu0 0.0
      %668 = vmatprep.subr.mxu0 0.0
      %669 = vmatpush2.msra.mxu0 0.0
      %670 = vmatprep.subr.mxu0 0.0
      %671 = vmatpush2.msra.mxu0 0.0
      %672 = vmatprep.subr.mxu0 0.0
      %673 = vmatpush2.msra.mxu0 0.0
      %674 = vmatprep.subr.mxu0 0.0
      %675 = vmatpush2.msra.mxu0 0.0
      %676 = vmatprep.subr.mxu0 0.0
      %677 = vmatpush2.msra.mxu0 0.0
      %678 = vmatprep.mubr.f32.mxu0 0.0
      %679 = vmatmul.mubr.f32.gmra.mxu0 %v612
      %v680 = vpop.f32.mrf.mxu0
      %v681 = vadd.f32 %v607, %v680
      %v682 = vpop.f32.mrf.mxu0
      %v683 = vadd.f32 %v607, %v682
      %684 = vdwg.mxu0
      %v685 = vmax.f32 %v681, 0.0
      %v686 = vmax.f32 %v683, 0.0
      %v687 = vld [vmem:[%s1 + $0x8] sm:$0xff]
      %689 = vrot.lane.b32.xlu0 %v686, 17
      %v690 = vpop.permute.xlu0 %689
      %693 = vrot.lane.b32.xlu0 %v685, 17
      %v694 = vpop.permute.xlu0 %693
      %v695 = vsel %vm292, %v694, %v690
      %v698 = vsel %vm292, %v690, %v694
      %v699 = vmul.f32 %v698, %v300
      %v700 = vmul.f32 %v695, %v304
      %701 = vset.pattern.permute.xlu0 106
      %702 = vperm.xlu0 %701, %v203
      %v703 = vpop.permute.xlu0 %702
      %v705 = vmul.f32 %v703, %v699
      %v706 = vmul.f32 %v703, %v700
      %v707 = vadd.f32 %v705, 0.0
      %v708 = vadd.f32 %v706, 0.0
      %709 = vrot.lane.b32.xlu0 %v686, 16
      %v710 = vpop.permute.xlu0 %709
      %712 = vrot.lane.b32.xlu0 %v685, 16
      %v713 = vpop.permute.xlu0 %712
      %v714 = vsel %vm328, %v713, %v710
      %v717 = vsel %vm328, %v710, %v713
      %v718 = vmul.f32 %v717, %v336
      %v719 = vmul.f32 %v714, %v340
      %720 = vset.pattern.permute.xlu0 107
      %721 = vperm.xlu0 %720, %v203
      %v722 = vpop.permute.xlu0 %721
      %v724 = vmul.f32 %v722, %v718
      %v725 = vmul.f32 %v722, %v719
      %v726 = vadd.f32 %v707, %v724
      %v727 = vadd.f32 %v708, %v725
      %728 = vrot.lane.b32.xlu0 %v686, 15
      %v729 = vpop.permute.xlu0 %728
      %731 = vrot.lane.b32.xlu0 %v685, 15
      %v732 = vpop.permute.xlu0 %731
      %v733 = vsel %vm364, %v732, %v729
      %v736 = vsel %vm364, %v729, %v732
      %v737 = vmul.f32 %v736, %v372
      %v738 = vmul.f32 %v733, %v376
      %739 = vset.pattern.permute.xlu0 108
      %740 = vperm.xlu0 %739, %v203
      %v741 = vpop.permute.xlu0 %740
      %v743 = vmul.f32 %v741, %v737
      %v744 = vmul.f32 %v741, %v738
      %v745 = vadd.f32 %v726, %v743
      %v746 = vadd.f32 %v727, %v744
      %747 = vrot.lane.b32.xlu0 %v686, 1
      %v748 = vpop.permute.xlu0 %747
      %750 = vrot.lane.b32.xlu0 %v685, 1
      %v751 = vpop.permute.xlu0 %750
      %v752 = vsel %vm400, %v751, %v748
      %v755 = vsel %vm400, %v748, %v751
      %v756 = vmul.f32 %v755, %v408
      %v757 = vmul.f32 %v752, %v412
      %758 = vset.pattern.permute.xlu0 109
      %759 = vperm.xlu0 %758, %v203
      %v760 = vpop.permute.xlu0 %759
      %v762 = vmul.f32 %v760, %v756
      %v763 = vmul.f32 %v760, %v757
      %v764 = vadd.f32 %v745, %v762
      %v765 = vadd.f32 %v746, %v763
      %766 = vset.pattern.permute.xlu0 110
      %767 = vperm.xlu0 %766, %v203
      %v768 = vpop.permute.xlu0 %767
      %v770 = vmul.f32 %v768, %v685
      %v771 = vmul.f32 %v768, %v686
      %v772 = vadd.f32 %v764, %v770
      %v773 = vadd.f32 %v765, %v771
      %774 = vrot.lane.b32.xlu0 %v685, 127
      %v775 = vpop.permute.xlu0 %774
      %776 = vrot.lane.b32.xlu0 %v686, 127
      %v777 = vpop.permute.xlu0 %776
      %v778 = vsel %vm451, %v775, %v777
      %v782 = vsel %vm451, %v777, %v775
      %v783 = vmul.f32 %v778, %v460
      %v784 = vmul.f32 %v782, %v464
      %785 = vset.pattern.permute.xlu0 111
      %786 = vperm.xlu0 %785, %v203
      %v787 = vpop.permute.xlu0 %786
      %v789 = vmul.f32 %v787, %v783
      %v790 = vmul.f32 %v787, %v784
      %v791 = vadd.f32 %v772, %v789
      %v792 = vadd.f32 %v773, %v790
      %793 = vrot.lane.b32.xlu0 %v685, 113
      %v794 = vpop.permute.xlu0 %793
      %795 = vrot.lane.b32.xlu0 %v686, 113
      %v796 = vpop.permute.xlu0 %795
      %v797 = vsel %vm487, %v794, %v796
      %v801 = vsel %vm487, %v796, %v794
      %v802 = vmul.f32 %v797, %v496
      %v803 = vmul.f32 %v801, %v500
      %804 = vset.pattern.permute.xlu0 112
      %805 = vperm.xlu0 %804, %v203
      %v806 = vpop.permute.xlu0 %805
      %v808 = vmul.f32 %v806, %v802
      %v809 = vmul.f32 %v806, %v803
      %v810 = vadd.f32 %v791, %v808
      %v811 = vadd.f32 %v792, %v809
      %812 = vrot.lane.b32.xlu0 %v685, 112
      %v813 = vpop.permute.xlu0 %812
      %814 = vrot.lane.b32.xlu0 %v686, 112
      %v815 = vpop.permute.xlu0 %814
      %v816 = vsel %vm523, %v813, %v815
      %v820 = vsel %vm523, %v815, %v813
      %v821 = vmul.f32 %v816, %v532
      %v822 = vmul.f32 %v820, %v536
      %823 = vset.pattern.permute.xlu0 113
      %824 = vperm.xlu0 %823, %v203
      %v825 = vpop.permute.xlu0 %824
      %v827 = vmul.f32 %v825, %v821
      %v828 = vmul.f32 %v825, %v822
      %v829 = vadd.f32 %v810, %v827
      %v830 = vadd.f32 %v811, %v828
      %831 = vrot.lane.b32.xlu0 %v685, 111
      %v832 = vpop.permute.xlu0 %831
      %833 = vrot.lane.b32.xlu0 %v686, 111
      %v834 = vpop.permute.xlu0 %833
      %v835 = vsel %vm559, %v832, %v834
      %v839 = vsel %vm559, %v834, %v832
      %v840 = vmul.f32 %v835, %v568
      %v841 = vmul.f32 %v839, %v572
      %842 = vset.pattern.permute.xlu0 114
      %843 = vperm.xlu0 %842, %v203
      %v844 = vpop.permute.xlu0 %843
      %v846 = vmul.f32 %v844, %v840
      %v847 = vmul.f32 %v844, %v841
      %v848 = vadd.f32 %v829, %v846
      %v849 = vadd.f32 %v830, %v847
      %851 = vset.pattern.permute.xlu0 0
      %852 = vperm.xlu0 %851, %v687
      %v853 = vpop.permute.xlu0 %852
      %v855 = vadd.f32 %v848, %v853
      %v856 = vadd.f32 %v849, %v853
      %v857 = vld [vmem:[%s1] sm:$0xff]
      %v858 = vld [vmem:[%s1 + $0x10] sm:$0xff]
      %v859 = vld [vmem:[%s1 + $0x20] sm:$0xff]
      %v860 = vld [vmem:[%s1 + $0x30] sm:$0xff]
      %865 = vrot.lane.b32.xlu0 %v857, 48
      %v866 = vpop.permute.xlu0 %865
      %867 = vrot.lane.b32.xlu0 %v858, 48
      %v868 = vpop.permute.xlu0 %867
      %869 = vrot.lane.b32.xlu0 %v859, 48
      %v870 = vpop.permute.xlu0 %869
      %871 = vrot.lane.b32.xlu0 %v860, 48
      %v872 = vpop.permute.xlu0 %871
      %v873 = vsel %vm611, %v866, 0
      %v875 = vsel %vm611, %v868, 0
      %v877 = vsel %vm611, %v870, 0
      %v879 = vsel %vm611, %v872, 0
      %881 = vmatprep.subr.mxu0 0.0
      %882 = vmatpush1.msra.mxu0 0.0
      %883 = vmatprep.subr.mxu0 0.0
      %884 = vmatpush1.msra.mxu0 0.0
      %885 = vmatprep.subr.mxu0 0.0
      %886 = vmatpush1.msra.mxu0 0.0
      %887 = vmatprep.subr.mxu0 0.0
      %888 = vmatpush1.msra.mxu0 0.0
      %889 = vmatprep.subr.mxu0 0.0
      %890 = vmatpush1.msra.mxu0 0.0
      %891 = vmatprep.subr.mxu0 0.0
      %892 = vmatpush1.msra.mxu0 0.0
      %893 = vmatprep.subr.mxu0 0.0
      %894 = vmatpush1.msra.mxu0 0.0
      %895 = vmatprep.subr.mxu0 0.0
      %896 = vmatpush1.msra.mxu0 0.0
      %897 = vmatprep.subr.mxu0 0.0
      %898 = vmatpush1.msra.mxu0 0.0
      %899 = vmatprep.subr.mxu0 0.0
      %900 = vmatpush1.msra.mxu0 0.0
      %901 = vmatprep.subr.mxu0 0.0
      %902 = vmatpush1.msra.mxu0 0.0
      %903 = vmatprep.subr.mxu0 0.0
      %904 = vmatpush1.msra.mxu0 0.0
      %905 = vmatprep.subr.mxu0 0.0
      %906 = vmatpush1.msra.mxu0 0.0
      %907 = vmatprep.subr.mxu0 0.0
      %908 = vmatpush1.msra.mxu0 0.0
      %909 = vmatprep.subr.mxu0 0.0
      %910 = vmatpush1.msra.mxu0 0.0
      %911 = vmatprep.subr.mxu0 %v856
      %912 = vmatpush1.msra.mxu0 %v855
      %913 = vmatprep.subr.mxu0 0.0
      %914 = vmatpush2.msra.mxu0 0.0
      %915 = vmatprep.subr.mxu0 0.0
      %916 = vmatpush2.msra.mxu0 0.0
      %917 = vmatprep.subr.mxu0 0.0
      %918 = vmatpush2.msra.mxu0 0.0
      %919 = vmatprep.subr.mxu0 0.0
      %920 = vmatpush2.msra.mxu0 0.0
      %921 = vmatprep.subr.mxu0 0.0
      %922 = vmatpush2.msra.mxu0 0.0
      %923 = vmatprep.subr.mxu0 0.0
      %924 = vmatpush2.msra.mxu0 0.0
      %925 = vmatprep.subr.mxu0 0.0
      %926 = vmatpush2.msra.mxu0 0.0
      %927 = vmatprep.subr.mxu0 0.0
      %928 = vmatpush2.msra.mxu0 0.0
      %929 = vmatprep.subr.mxu0 0.0
      %930 = vmatpush2.msra.mxu0 0.0
      %931 = vmatprep.subr.mxu0 0.0
      %932 = vmatpush2.msra.mxu0 0.0
      %933 = vmatprep.subr.mxu0 0.0
      %934 = vmatpush2.msra.mxu0 0.0
      %935 = vmatprep.subr.mxu0 0.0
      %936 = vmatpush2.msra.mxu0 0.0
      %937 = vmatprep.subr.mxu0 0.0
      %938 = vmatpush2.msra.mxu0 0.0
      %939 = vmatprep.subr.mxu0 0.0
      %940 = vmatpush2.msra.mxu0 0.0
      %941 = vmatprep.subr.mxu0 0.0
      %942 = vmatpush2.msra.mxu0 0.0
      %943 = vmatprep.subr.mxu0 0.0
      %944 = vmatpush2.msra.mxu0 0.0
      %945 = vmatprep.mubr.f32.mxu0 0.0
      %946 = vmatmul.mubr.f32.gmra.mxu0 %v873
      %v947 = vpop.f32.mrf.mxu0
      %v948 = vadd.f32 0.0, %v947
      %v949 = vpop.f32.mrf.mxu0
      %v950 = vadd.f32 0.0, %v949
      %951 = vmatprep.mubr.f32.mxu0 0.0
      %952 = vmatmul.mubr.f32.gmra.mxu0 %v875
      %v953 = vpop.f32.mrf.mxu0
      %v954 = vadd.f32 0.0, %v953
      %v955 = vpop.f32.mrf.mxu0
      %v956 = vadd.f32 0.0, %v955
      %957 = vmatprep.mubr.f32.mxu0 0.0
      %958 = vmatmul.mubr.f32.gmra.mxu0 %v877
      %v959 = vpop.f32.mrf.mxu0
      %v960 = vadd.f32 0.0, %v959
      %v961 = vpop.f32.mrf.mxu0
      %v962 = vadd.f32 0.0, %v961
      %963 = vmatprep.mubr.f32.mxu0 0.0
      %964 = vmatmul.mubr.f32.gmra.mxu0 %v879
      %v965 = vpop.f32.mrf.mxu0
      %v966 = vadd.f32 0.0, %v965
      %v967 = vpop.f32.mrf.mxu0
      %v968 = vadd.f32 0.0, %v967
      %969 = vdwg.mxu0
      %970 = vrot.lane.b32.xlu0 %v857, 56
      %v971 = vpop.permute.xlu0 %970
      %972 = vrot.lane.b32.xlu0 %v858, 56
      %v973 = vpop.permute.xlu0 %972
      %974 = vrot.lane.b32.xlu0 %v859, 56
      %v975 = vpop.permute.xlu0 %974
      %976 = vrot.lane.b32.xlu0 %v860, 56
      %v977 = vpop.permute.xlu0 %976
      %v978 = vsel %vm611, %v971, 0
      %v980 = vsel %vm611, %v973, 0
      %v982 = vsel %vm611, %v975, 0
      %v984 = vsel %vm611, %v977, 0
      %986 = vmatprep.subr.mxu0 0.0
      %987 = vmatpush1.msra.mxu0 0.0
      %988 = vmatprep.subr.mxu0 0.0
      %989 = vmatpush1.msra.mxu0 0.0
      %990 = vmatprep.subr.mxu0 0.0
      %991 = vmatpush1.msra.mxu0 0.0
      %992 = vmatprep.subr.mxu0 0.0
      %993 = vmatpush1.msra.mxu0 0.0
      %994 = vmatprep.subr.mxu0 0.0
      %995 = vmatpush1.msra.mxu0 0.0
      %996 = vmatprep.subr.mxu0 0.0
      %997 = vmatpush1.msra.mxu0 0.0
      %998 = vmatprep.subr.mxu0 0.0
      %999 = vmatpush1.msra.mxu0 0.0
      %1000 = vmatprep.subr.mxu0 0.0
      %1001 = vmatpush1.msra.mxu0 0.0
      %1002 = vmatprep.subr.mxu0 0.0
      %1003 = vmatpush1.msra.mxu0 0.0
      %1004 = vmatprep.subr.mxu0 0.0
      %1005 = vmatpush1.msra.mxu0 0.0
      %1006 = vmatprep.subr.mxu0 0.0
      %1007 = vmatpush1.msra.mxu0 0.0
      %1008 = vmatprep.subr.mxu0 0.0
      %1009 = vmatpush1.msra.mxu0 0.0
      %1010 = vmatprep.subr.mxu0 0.0
      %1011 = vmatpush1.msra.mxu0 0.0
      %1012 = vmatprep.subr.mxu0 0.0
      %1013 = vmatpush1.msra.mxu0 0.0
      %1014 = vmatprep.subr.mxu0 0.0
      %1015 = vmatpush1.msra.mxu0 0.0
      %1016 = vmatprep.subr.mxu0 %v602
      %1017 = vmatpush1.msra.mxu0 %v601
      %1018 = vmatprep.subr.mxu0 0.0
      %1019 = vmatpush2.msra.mxu0 0.0
      %1020 = vmatprep.subr.mxu0 0.0
      %1021 = vmatpush2.msra.mxu0 0.0
      %1022 = vmatprep.subr.mxu0 0.0
      %1023 = vmatpush2.msra.mxu0 0.0
      %1024 = vmatprep.subr.mxu0 0.0
      %1025 = vmatpush2.msra.mxu0 0.0
      %1026 = vmatprep.subr.mxu0 0.0
      %1027 = vmatpush2.msra.mxu0 0.0
      %1028 = vmatprep.subr.mxu0 0.0
      %1029 = vmatpush2.msra.mxu0 0.0
      %1030 = vmatprep.subr.mxu0 0.0
      %1031 = vmatpush2.msra.mxu0 0.0
      %1032 = vmatprep.subr.mxu0 0.0
      %1033 = vmatpush2.msra.mxu0 0.0
      %1034 = vmatprep.subr.mxu0 0.0
      %1035 = vmatpush2.msra.mxu0 0.0
      %1036 = vmatprep.subr.mxu0 0.0
      %1037 = vmatpush2.msra.mxu0 0.0
      %1038 = vmatprep.subr.mxu0 0.0
      %1039 = vmatpush2.msra.mxu0 0.0
      %1040 = vmatprep.subr.mxu0 0.0
      %1041 = vmatpush2.msra.mxu0 0.0
      %1042 = vmatprep.subr.mxu0 0.0
      %1043 = vmatpush2.msra.mxu0 0.0
      %1044 = vmatprep.subr.mxu0 0.0
      %1045 = vmatpush2.msra.mxu0 0.0
      %1046 = vmatprep.subr.mxu0 0.0
      %1047 = vmatpush2.msra.mxu0 0.0
      %1048 = vmatprep.subr.mxu0 0.0
      %1049 = vmatpush2.msra.mxu0 0.0
      %1050 = vmatprep.mubr.f32.mxu0 0.0
      %1051 = vmatmul.mubr.f32.gmra.mxu0 %v978
      %v1052 = vpop.f32.mrf.mxu0
      %v1053 = vadd.f32 %v948, %v1052
      %v1054 = vpop.f32.mrf.mxu0
      %v1055 = vadd.f32 %v950, %v1054
      %1056 = vmatprep.mubr.f32.mxu0 0.0
      %1057 = vmatmul.mubr.f32.gmra.mxu0 %v980
      %v1058 = vpop.f32.mrf.mxu0
      %v1059 = vadd.f32 %v954, %v1058
      %v1060 = vpop.f32.mrf.mxu0
      %v1061 = vadd.f32 %v956, %v1060
      %1062 = vmatprep.mubr.f32.mxu0 0.0
      %1063 = vmatmul.mubr.f32.gmra.mxu0 %v982
      %v1064 = vpop.f32.mrf.mxu0
      %v1065 = vadd.f32 %v960, %v1064
      %v1066 = vpop.f32.mrf.mxu0
      %v1067 = vadd.f32 %v962, %v1066
      %1068 = vmatprep.mubr.f32.mxu0 0.0
      %1069 = vmatmul.mubr.f32.gmra.mxu0 %v984
      %v1070 = vpop.f32.mrf.mxu0
      %v1071 = vadd.f32 %v966, %v1070
      %v1072 = vpop.f32.mrf.mxu0
      %v1073 = vadd.f32 %v968, %v1072
      %1074 = vdwg.mxu0
      %v1075 = vld [vmem:[%s1 + $0x8] sm:$0xff]
      %v1076 = vld [vmem:[%s1 + $0x18] sm:$0xff]
      %v1077 = vld [vmem:[%s1 + $0x28] sm:$0xff]
      %v1078 = vld [vmem:[%s1 + $0x38] sm:$0xff]
      %1080 = vset.pattern.permute.xlu0 1
      %1081 = vperm.xlu0 %1080, %v1075
      %v1082 = vpop.permute.xlu0 %1081
      %1085 = vset.pattern.permute.xlu0 1
      %1086 = vperm.xlu0 %1085, %v1076
      %v1087 = vpop.permute.xlu0 %1086
      %1090 = vset.pattern.permute.xlu0 1
      %1091 = vperm.xlu0 %1090, %v1077
      %v1092 = vpop.permute.xlu0 %1091
      %1095 = vset.pattern.permute.xlu0 1
      %1096 = vperm.xlu0 %1095, %v1078
      %v1097 = vpop.permute.xlu0 %1096
      %v1099 = vadd.f32 %v1053, %v1082
      %v1100 = vadd.f32 %v1055, %v1082
      %v1101 = vadd.f32 %v1059, %v1087
      %v1102 = vadd.f32 %v1061, %v1087
      %v1103 = vadd.f32 %v1065, %v1092
      %v1104 = vadd.f32 %v1067, %v1092
      %v1105 = vadd.f32 %v1071, %v1097
      %v1106 = vadd.f32 %v1073, %v1097
      %1111 = vrot.lane.b32.xlu0 %v1100, 17
      %v1112 = vpop.permute.xlu0 %1111
      %1113 = vrot.lane.b32.xlu0 %v1102, 17
      %v1114 = vpop.permute.xlu0 %1113
      %1115 = vrot.lane.b32.xlu0 %v1104, 17
      %v1116 = vpop.permute.xlu0 %1115
      %1117 = vrot.lane.b32.xlu0 %v1106, 17
      %v1118 = vpop.permute.xlu0 %1117
      %1127 = vrot.lane.b32.xlu0 %v1099, 17
      %v1128 = vpop.permute.xlu0 %1127
      %1129 = vrot.lane.b32.xlu0 %v1101, 17
      %v1130 = vpop.permute.xlu0 %1129
      %1131 = vrot.lane.b32.xlu0 %v1103, 17
      %v1132 = vpop.permute.xlu0 %1131
      %1133 = vrot.lane.b32.xlu0 %v1105, 17
      %v1134 = vpop.permute.xlu0 %1133
      %v1135 = vsel %vm292, %v1128, %v1112
      %v1136 = vsel %vm292, %v1130, %v1114
      %v1137 = vsel %vm292, %v1132, %v1116
      %v1138 = vsel %vm292, %v1134, %v1118
      %v1147 = vsel %vm292, %v1112, %v1128
      %v1148 = vsel %vm292, %v1114, %v1130
      %v1149 = vsel %vm292, %v1116, %v1132
      %v1150 = vsel %vm292, %v1118, %v1134
      %v1151 = vmul.f32 %v1147, %v300
      %v1152 = vmul.f32 %v1135, %v304
      %v1153 = vmul.f32 %v1148, %v300
      %v1154 = vmul.f32 %v1136, %v304
      %v1155 = vmul.f32 %v1149, %v300
      %v1156 = vmul.f32 %v1137, %v304
      %v1157 = vmul.f32 %v1150, %v300
      %v1158 = vmul.f32 %v1138, %v304
      %1159 = vset.pattern.permute.xlu0 115
      %1160 = vperm.xlu0 %1159, %v857
      %v1161 = vpop.permute.xlu0 %1160
      %1163 = vset.pattern.permute.xlu0 115
      %1164 = vperm.xlu0 %1163, %v858
      %v1165 = vpop.permute.xlu0 %1164
      %1167 = vset.pattern.permute.xlu0 115
      %1168 = vperm.xlu0 %1167, %v859
      %v1169 = vpop.permute.xlu0 %1168
      %1171 = vset.pattern.permute.xlu0 115
      %1172 = vperm.xlu0 %1171, %v860
      %v1173 = vpop.permute.xlu0 %1172
      %v1175 = vmul.f32 %v1161, %v1151
      %v1176 = vmul.f32 %v1161, %v1152
      %v1177 = vmul.f32 %v1165, %v1153
      %v1178 = vmul.f32 %v1165, %v1154
      %v1179 = vmul.f32 %v1169, %v1155
      %v1180 = vmul.f32 %v1169, %v1156
      %v1181 = vmul.f32 %v1173, %v1157
      %v1182 = vmul.f32 %v1173, %v1158
      %v1183 = vadd.f32 %v1175, 0.0
      %v1184 = vadd.f32 %v1176, 0.0
      %v1185 = vadd.f32 %v1177, 0.0
      %v1186 = vadd.f32 %v1178, 0.0
      %v1187 = vadd.f32 %v1179, 0.0
      %v1188 = vadd.f32 %v1180, 0.0
      %v1189 = vadd.f32 %v1181, 0.0
      %v1190 = vadd.f32 %v1182, 0.0
      %1191 = vrot.lane.b32.xlu0 %v1100, 16
      %v1192 = vpop.permute.xlu0 %1191
      %1193 = vrot.lane.b32.xlu0 %v1102, 16
      %v1194 = vpop.permute.xlu0 %1193
      %1195 = vrot.lane.b32.xlu0 %v1104, 16
      %v1196 = vpop.permute.xlu0 %1195
      %1197 = vrot.lane.b32.xlu0 %v1106, 16
      %v1198 = vpop.permute.xlu0 %1197
      %1203 = vrot.lane.b32.xlu0 %v1099, 16
      %v1204 = vpop.permute.xlu0 %1203
      %1205 = vrot.lane.b32.xlu0 %v1101, 16
      %v1206 = vpop.permute.xlu0 %1205
      %1207 = vrot.lane.b32.xlu0 %v1103, 16
      %v1208 = vpop.permute.xlu0 %1207
      %1209 = vrot.lane.b32.xlu0 %v1105, 16
      %v1210 = vpop.permute.xlu0 %1209
      %v1211 = vsel %vm328, %v1204, %v1192
      %v1212 = vsel %vm328, %v1206, %v1194
      %v1213 = vsel %vm328, %v1208, %v1196
      %v1214 = vsel %vm328, %v1210, %v1198
      %v1223 = vsel %vm328, %v1192, %v1204
      %v1224 = vsel %vm328, %v1194, %v1206
      %v1225 = vsel %vm328, %v1196, %v1208
      %v1226 = vsel %vm328, %v1198, %v1210
      %v1227 = vmul.f32 %v1223, %v336
      %v1228 = vmul.f32 %v1211, %v340
      %v1229 = vmul.f32 %v1224, %v336
      %v1230 = vmul.f32 %v1212, %v340
      %v1231 = vmul.f32 %v1225, %v336
      %v1232 = vmul.f32 %v1213, %v340
      %v1233 = vmul.f32 %v1226, %v336
      %v1234 = vmul.f32 %v1214, %v340
      %1235 = vset.pattern.permute.xlu0 116
      %1236 = vperm.xlu0 %1235, %v857
      %v1237 = vpop.permute.xlu0 %1236
      %1239 = vset.pattern.permute.xlu0 116
      %1240 = vperm.xlu0 %1239, %v858
      %v1241 = vpop.permute.xlu0 %1240
      %1243 = vset.pattern.permute.xlu0 116
      %1244 = vperm.xlu0 %1243, %v859
      %v1245 = vpop.permute.xlu0 %1244
      %1247 = vset.pattern.permute.xlu0 116
      %1248 = vperm.xlu0 %1247, %v860
      %v1249 = vpop.permute.xlu0 %1248
      %v1251 = vmul.f32 %v1237, %v1227
      %v1252 = vmul.f32 %v1237, %v1228
      %v1253 = vmul.f32 %v1241, %v1229
      %v1254 = vmul.f32 %v1241, %v1230
      %v1255 = vmul.f32 %v1245, %v1231
      %v1256 = vmul.f32 %v1245, %v1232
      %v1257 = vmul.f32 %v1249, %v1233
      %v1258 = vmul.f32 %v1249, %v1234
      %v1259 = vadd.f32 %v1183, %v1251
      %v1260 = vadd.f32 %v1184, %v1252
      %v1261 = vadd.f32 %v1185, %v1253
      %v1262 = vadd.f32 %v1186, %v1254
      %v1263 = vadd.f32 %v1187, %v1255
      %v1264 = vadd.f32 %v1188, %v1256
      %v1265 = vadd.f32 %v1189, %v1257
      %v1266 = vadd.f32 %v1190, %v1258
      %1267 = vrot.lane.b32.xlu0 %v1100, 15
      %v1268 = vpop.permute.xlu0 %1267
      %1269 = vrot.lane.b32.xlu0 %v1102, 15
      %v1270 = vpop.permute.xlu0 %1269
      %1271 = vrot.lane.b32.xlu0 %v1104, 15
      %v1272 = vpop.permute.xlu0 %1271
      %1273 = vrot.lane.b32.xlu0 %v1106, 15
      %v1274 = vpop.permute.xlu0 %1273
      %1279 = vrot.lane.b32.xlu0 %v1099, 15
      %v1280 = vpop.permute.xlu0 %1279
      %1281 = vrot.lane.b32.xlu0 %v1101, 15
      %v1282 = vpop.permute.xlu0 %1281
      %1283 = vrot.lane.b32.xlu0 %v1103, 15
      %v1284 = vpop.permute.xlu0 %1283
      %1285 = vrot.lane.b32.xlu0 %v1105, 15
      %v1286 = vpop.permute.xlu0 %1285
      %v1287 = vsel %vm364, %v1280, %v1268
      %v1288 = vsel %vm364, %v1282, %v1270
      %v1289 = vsel %vm364, %v1284, %v1272
      %v1290 = vsel %vm364, %v1286, %v1274
      %v1299 = vsel %vm364, %v1268, %v1280
      %v1300 = vsel %vm364, %v1270, %v1282
      %v1301 = vsel %vm364, %v1272, %v1284
      %v1302 = vsel %vm364, %v1274, %v1286
      %v1303 = vmul.f32 %v1299, %v372
      %v1304 = vmul.f32 %v1287, %v376
      %v1305 = vmul.f32 %v1300, %v372
      %v1306 = vmul.f32 %v1288, %v376
      %v1307 = vmul.f32 %v1301, %v372
      %v1308 = vmul.f32 %v1289, %v376
      %v1309 = vmul.f32 %v1302, %v372
      %v1310 = vmul.f32 %v1290, %v376
      %1311 = vset.pattern.permute.xlu0 117
      %1312 = vperm.xlu0 %1311, %v857
      %v1313 = vpop.permute.xlu0 %1312
      %1315 = vset.pattern.permute.xlu0 117
      %1316 = vperm.xlu0 %1315, %v858
      %v1317 = vpop.permute.xlu0 %1316
      %1319 = vset.pattern.permute.xlu0 117
      %1320 = vperm.xlu0 %1319, %v859
      %v1321 = vpop.permute.xlu0 %1320
      %1323 = vset.pattern.permute.xlu0 117
      %1324 = vperm.xlu0 %1323, %v860
      %v1325 = vpop.permute.xlu0 %1324
      %v1327 = vmul.f32 %v1313, %v1303
      %v1328 = vmul.f32 %v1313, %v1304
      %v1329 = vmul.f32 %v1317, %v1305
      %v1330 = vmul.f32 %v1317, %v1306
      %v1331 = vmul.f32 %v1321, %v1307
      %v1332 = vmul.f32 %v1321, %v1308
      %v1333 = vmul.f32 %v1325, %v1309
      %v1334 = vmul.f32 %v1325, %v1310
      %v1335 = vadd.f32 %v1259, %v1327
      %v1336 = vadd.f32 %v1260, %v1328
      %v1337 = vadd.f32 %v1261, %v1329
      %v1338 = vadd.f32 %v1262, %v1330
      %v1339 = vadd.f32 %v1263, %v1331
      %v1340 = vadd.f32 %v1264, %v1332
      %v1341 = vadd.f32 %v1265, %v1333
      %v1342 = vadd.f32 %v1266, %v1334
      %1343 = vrot.lane.b32.xlu0 %v1100, 1
      %v1344 = vpop.permute.xlu0 %1343
      %1345 = vrot.lane.b32.xlu0 %v1102, 1
      %v1346 = vpop.permute.xlu0 %1345
      %1347 = vrot.lane.b32.xlu0 %v1104, 1
      %v1348 = vpop.permute.xlu0 %1347
      %1349 = vrot.lane.b32.xlu0 %v1106, 1
      %v1350 = vpop.permute.xlu0 %1349
      %1355 = vrot.lane.b32.xlu0 %v1099, 1
      %v1356 = vpop.permute.xlu0 %1355
      %1357 = vrot.lane.b32.xlu0 %v1101, 1
      %v1358 = vpop.permute.xlu0 %1357
      %1359 = vrot.lane.b32.xlu0 %v1103, 1
      %v1360 = vpop.permute.xlu0 %1359
      %1361 = vrot.lane.b32.xlu0 %v1105, 1
      %v1362 = vpop.permute.xlu0 %1361
      %v1363 = vsel %vm400, %v1356, %v1344
      %v1364 = vsel %vm400, %v1358, %v1346
      %v1365 = vsel %vm400, %v1360, %v1348
      %v1366 = vsel %vm400, %v1362, %v1350
      %v1375 = vsel %vm400, %v1344, %v1356
      %v1376 = vsel %vm400, %v1346, %v1358
      %v1377 = vsel %vm400, %v1348, %v1360
      %v1378 = vsel %vm400, %v1350, %v1362
      %v1379 = vmul.f32 %v1375, %v408
      %v1380 = vmul.f32 %v1363, %v412
      %v1381 = vmul.f32 %v1376, %v408
      %v1382 = vmul.f32 %v1364, %v412
      %v1383 = vmul.f32 %v1377, %v408
      %v1384 = vmul.f32 %v1365, %v412
      %v1385 = vmul.f32 %v1378, %v408
      %v1386 = vmul.f32 %v1366, %v412
      %1387 = vset.pattern.permute.xlu0 118
      %1388 = vperm.xlu0 %1387, %v857
      %v1389 = vpop.permute.xlu0 %1388
      %1391 = vset.pattern.permute.xlu0 118
      %1392 = vperm.xlu0 %1391, %v858
      %v1393 = vpop.permute.xlu0 %1392
      %1395 = vset.pattern.permute.xlu0 118
      %1396 = vperm.xlu0 %1395, %v859
      %v1397 = vpop.permute.xlu0 %1396
      %1399 = vset.pattern.permute.xlu0 118
      %1400 = vperm.xlu0 %1399, %v860
      %v1401 = vpop.permute.xlu0 %1400
      %v1403 = vmul.f32 %v1389, %v1379
      %v1404 = vmul.f32 %v1389, %v1380
      %v1405 = vmul.f32 %v1393, %v1381
      %v1406 = vmul.f32 %v1393, %v1382
      %v1407 = vmul.f32 %v1397, %v1383
      %v1408 = vmul.f32 %v1397, %v1384
      %v1409 = vmul.f32 %v1401, %v1385
      %v1410 = vmul.f32 %v1401, %v1386
      %v1411 = vadd.f32 %v1335, %v1403
      %v1412 = vadd.f32 %v1336, %v1404
      %v1413 = vadd.f32 %v1337, %v1405
      %v1414 = vadd.f32 %v1338, %v1406
      %v1415 = vadd.f32 %v1339, %v1407
      %v1416 = vadd.f32 %v1340, %v1408
      %v1417 = vadd.f32 %v1341, %v1409
      %v1418 = vadd.f32 %v1342, %v1410
      %1419 = vset.pattern.permute.xlu0 119
      %1420 = vperm.xlu0 %1419, %v857
      %v1421 = vpop.permute.xlu0 %1420
      %1423 = vset.pattern.permute.xlu0 119
      %1424 = vperm.xlu0 %1423, %v858
      %v1425 = vpop.permute.xlu0 %1424
      %1427 = vset.pattern.permute.xlu0 119
      %1428 = vperm.xlu0 %1427, %v859
      %v1429 = vpop.permute.xlu0 %1428
      %1431 = vset.pattern.permute.xlu0 119
      %1432 = vperm.xlu0 %1431, %v860
      %v1433 = vpop.permute.xlu0 %1432
      %v1435 = vmul.f32 %v1421, %v1099
      %v1436 = vmul.f32 %v1421, %v1100
      %v1437 = vmul.f32 %v1425, %v1101
      %v1438 = vmul.f32 %v1425, %v1102
      %v1439 = vmul.f32 %v1429, %v1103
      %v1440 = vmul.f32 %v1429, %v1104
      %v1441 = vmul.f32 %v1433, %v1105
      %v1442 = vmul.f32 %v1433, %v1106
      %v1443 = vadd.f32 %v1411, %v1435
      %v1444 = vadd.f32 %v1412, %v1436
      %v1445 = vadd.f32 %v1413, %v1437
      %v1446 = vadd.f32 %v1414, %v1438
      %v1447 = vadd.f32 %v1415, %v1439
      %v1448 = vadd.f32 %v1416, %v1440
      %v1449 = vadd.f32 %v1417, %v1441
      %v1450 = vadd.f32 %v1418, %v1442
      %1451 = vrot.lane.b32.xlu0 %v1099, 127
      %v1452 = vpop.permute.xlu0 %1451
      %1453 = vrot.lane.b32.xlu0 %v1100, 127
      %v1454 = vpop.permute.xlu0 %1453
      %1455 = vrot.lane.b32.xlu0 %v1101, 127
      %v1456 = vpop.permute.xlu0 %1455
      %1457 = vrot.lane.b32.xlu0 %v1102, 127
      %v1458 = vpop.permute.xlu0 %1457
      %1459 = vrot.lane.b32.xlu0 %v1103, 127
      %v1460 = vpop.permute.xlu0 %1459
      %1461 = vrot.lane.b32.xlu0 %v1104, 127
      %v1462 = vpop.permute.xlu0 %1461
      %1463 = vrot.lane.b32.xlu0 %v1105, 127
      %v1464 = vpop.permute.xlu0 %1463
      %1465 = vrot.lane.b32.xlu0 %v1106, 127
      %v1466 = vpop.permute.xlu0 %1465
      %v1467 = vsel %vm451, %v1452, %v1454
      %v1468 = vsel %vm451, %v1456, %v1458
      %v1469 = vsel %vm451, %v1460, %v1462
      %v1470 = vsel %vm451, %v1464, %v1466
      %v1483 = vsel %vm451, %v1454, %v1452
      %v1484 = vsel %vm451, %v1458, %v1456
      %v1485 = vsel %vm451, %v1462, %v1460
      %v1486 = vsel %vm451, %v1466, %v1464
      %v1487 = vmul.f32 %v1467, %v460
      %v1488 = vmul.f32 %v1483, %v464
      %v1489 = vmul.f32 %v1468, %v460
      %v1490 = vmul.f32 %v1484, %v464
      %v1491 = vmul.f32 %v1469, %v460
      %v1492 = vmul.f32 %v1485, %v464
      %v1493 = vmul.f32 %v1470, %v460
      %v1494 = vmul.f32 %v1486, %v464
      %1495 = vset.pattern.permute.xlu0 120
      %1496 = vperm.xlu0 %1495, %v857
      %v1497 = vpop.permute.xlu0 %1496
      %1499 = vset.pattern.permute.xlu0 120
      %1500 = vperm.xlu0 %1499, %v858
      %v1501 = vpop.permute.xlu0 %1500
      %1503 = vset.pattern.permute.xlu0 120
      %1504 = vperm.xlu0 %1503, %v859
      %v1505 = vpop.permute.xlu0 %1504
      %1507 = vset.pattern.permute.xlu0 120
      %1508 = vperm.xlu0 %1507, %v860
      %v1509 = vpop.permute.xlu0 %1508
      %v1511 = vmul.f32 %v1497, %v1487
      %v1512 = vmul.f32 %v1497, %v1488
      %v1513 = vmul.f32 %v1501, %v1489
      %v1514 = vmul.f32 %v1501, %v1490
      %v1515 = vmul.f32 %v1505, %v1491
      %v1516 = vmul.f32 %v1505, %v1492
      %v1517 = vmul.f32 %v1509, %v1493
      %v1518 = vmul.f32 %v1509, %v1494
      %v1519 = vadd.f32 %v1443, %v1511
      %v1520 = vadd.f32 %v1444, %v1512
      %v1521 = vadd.f32 %v1445, %v1513
      %v1522 = vadd.f32 %v1446, %v1514
      %v1523 = vadd.f32 %v1447, %v1515
      %v1524 = vadd.f32 %v1448, %v1516
      %v1525 = vadd.f32 %v1449, %v1517
      %v1526 = vadd.f32 %v1450, %v1518
      %1527 = vrot.lane.b32.xlu0 %v1099, 113
      %v1528 = vpop.permute.xlu0 %1527
      %1529 = vrot.lane.b32.xlu0 %v1100, 113
      %v1530 = vpop.permute.xlu0 %1529
      %1531 = vrot.lane.b32.xlu0 %v1101, 113
      %v1532 = vpop.permute.xlu0 %1531
      %1533 = vrot.lane.b32.xlu0 %v1102, 113
      %v1534 = vpop.permute.xlu0 %1533
      %1535 = vrot.lane.b32.xlu0 %v1103, 113
      %v1536 = vpop.permute.xlu0 %1535
      %1537 = vrot.lane.b32.xlu0 %v1104, 113
      %v1538 = vpop.permute.xlu0 %1537
      %1539 = vrot.lane.b32.xlu0 %v1105, 113
      %v1540 = vpop.permute.xlu0 %1539
      %1541 = vrot.lane.b32.xlu0 %v1106, 113
      %v1542 = vpop.permute.xlu0 %1541
      %v1543 = vsel %vm487, %v1528, %v1530
      %v1544 = vsel %vm487, %v1532, %v1534
      %v1545 = vsel %vm487, %v1536, %v1538
      %v1546 = vsel %vm487, %v1540, %v1542
      %v1559 = vsel %vm487, %v1530, %v1528
      %v1560 = vsel %vm487, %v1534, %v1532
      %v1561 = vsel %vm487, %v1538, %v1536
      %v1562 = vsel %vm487, %v1542, %v1540
      %v1563 = vmul.f32 %v1543, %v496
      %v1564 = vmul.f32 %v1559, %v500
      %v1565 = vmul.f32 %v1544, %v496
      %v1566 = vmul.f32 %v1560, %v500
      %v1567 = vmul.f32 %v1545, %v496
      %v1568 = vmul.f32 %v1561, %v500
      %v1569 = vmul.f32 %v1546, %v496
      %v1570 = vmul.f32 %v1562, %v500
      %1571 = vset.pattern.permute.xlu0 121
      %1572 = vperm.xlu0 %1571, %v857
      %v1573 = vpop.permute.xlu0 %1572
      %1575 = vset.pattern.permute.xlu0 121
      %1576 = vperm.xlu0 %1575, %v858
      %v1577 = vpop.permute.xlu0 %1576
      %1579 = vset.pattern.permute.xlu0 121
      %1580 = vperm.xlu0 %1579, %v859
      %v1581 = vpop.permute.xlu0 %1580
      %1583 = vset.pattern.permute.xlu0 121
      %1584 = vperm.xlu0 %1583, %v860
      %v1585 = vpop.permute.xlu0 %1584
      %v1587 = vmul.f32 %v1573, %v1563
      %v1588 = vmul.f32 %v1573, %v1564
      %v1589 = vmul.f32 %v1577, %v1565
      %v1590 = vmul.f32 %v1577, %v1566
      %v1591 = vmul.f32 %v1581, %v1567
      %v1592 = vmul.f32 %v1581, %v1568
      %v1593 = vmul.f32 %v1585, %v1569
      %v1594 = vmul.f32 %v1585, %v1570
      %v1595 = vadd.f32 %v1519, %v1587
      %v1596 = vadd.f32 %v1520, %v1588
      %v1597 = vadd.f32 %v1521, %v1589
      %v1598 = vadd.f32 %v1522, %v1590
      %v1599 = vadd.f32 %v1523, %v1591
      %v1600 = vadd.f32 %v1524, %v1592
      %v1601 = vadd.f32 %v1525, %v1593
      %v1602 = vadd.f32 %v1526, %v1594
      %1603 = vrot.lane.b32.xlu0 %v1099, 112
      %v1604 = vpop.permute.xlu0 %1603
      %1605 = vrot.lane.b32.xlu0 %v1100, 112
      %v1606 = vpop.permute.xlu0 %1605
      %1607 = vrot.lane.b32.xlu0 %v1101, 112
      %v1608 = vpop.permute.xlu0 %1607
      %1609 = vrot.lane.b32.xlu0 %v1102, 112
      %v1610 = vpop.permute.xlu0 %1609
      %1611 = vrot.lane.b32.xlu0 %v1103, 112
      %v1612 = vpop.permute.xlu0 %1611
      %1613 = vrot.lane.b32.xlu0 %v1104, 112
      %v1614 = vpop.permute.xlu0 %1613
      %1615 = vrot.lane.b32.xlu0 %v1105, 112
      %v1616 = vpop.permute.xlu0 %1615
      %1617 = vrot.lane.b32.xlu0 %v1106, 112
      %v1618 = vpop.permute.xlu0 %1617
      %v1619 = vsel %vm523, %v1604, %v1606
      %v1620 = vsel %vm523, %v1608, %v1610
      %v1621 = vsel %vm523, %v1612, %v1614
      %v1622 = vsel %vm523, %v1616, %v1618
      %v1635 = vsel %vm523, %v1606, %v1604
      %v1636 = vsel %vm523, %v1610, %v1608
      %v1637 = vsel %vm523, %v1614, %v1612
      %v1638 = vsel %vm523, %v1618, %v1616
      %v1639 = vmul.f32 %v1619, %v532
      %v1640 = vmul.f32 %v1635, %v536
      %v1641 = vmul.f32 %v1620, %v532
      %v1642 = vmul.f32 %v1636, %v536
      %v1643 = vmul.f32 %v1621, %v532
      %v1644 = vmul.f32 %v1637, %v536
      %v1645 = vmul.f32 %v1622, %v532
      %v1646 = vmul.f32 %v1638, %v536
      %1647 = vset.pattern.permute.xlu0 122
      %1648 = vperm.xlu0 %1647, %v857
      %v1649 = vpop.permute.xlu0 %1648
      %1651 = vset.pattern.permute.xlu0 122
      %1652 = vperm.xlu0 %1651, %v858
      %v1653 = vpop.permute.xlu0 %1652
      %1655 = vset.pattern.permute.xlu0 122
      %1656 = vperm.xlu0 %1655, %v859
      %v1657 = vpop.permute.xlu0 %1656
      %1659 = vset.pattern.permute.xlu0 122
      %1660 = vperm.xlu0 %1659, %v860
      %v1661 = vpop.permute.xlu0 %1660
      %v1663 = vmul.f32 %v1649, %v1639
      %v1664 = vmul.f32 %v1649, %v1640
      %v1665 = vmul.f32 %v1653, %v1641
      %v1666 = vmul.f32 %v1653, %v1642
      %v1667 = vmul.f32 %v1657, %v1643
      %v1668 = vmul.f32 %v1657, %v1644
      %v1669 = vmul.f32 %v1661, %v1645
      %v1670 = vmul.f32 %v1661, %v1646
      %v1671 = vadd.f32 %v1595, %v1663
      %v1672 = vadd.f32 %v1596, %v1664
      %v1673 = vadd.f32 %v1597, %v1665
      %v1674 = vadd.f32 %v1598, %v1666
      %v1675 = vadd.f32 %v1599, %v1667
      %v1676 = vadd.f32 %v1600, %v1668
      %v1677 = vadd.f32 %v1601, %v1669
      %v1678 = vadd.f32 %v1602, %v1670
      %1679 = vrot.lane.b32.xlu0 %v1099, 111
      %v1680 = vpop.permute.xlu0 %1679
      %1681 = vrot.lane.b32.xlu0 %v1100, 111
      %v1682 = vpop.permute.xlu0 %1681
      %1683 = vrot.lane.b32.xlu0 %v1101, 111
      %v1684 = vpop.permute.xlu0 %1683
      %1685 = vrot.lane.b32.xlu0 %v1102, 111
      %v1686 = vpop.permute.xlu0 %1685
      %1687 = vrot.lane.b32.xlu0 %v1103, 111
      %v1688 = vpop.permute.xlu0 %1687
      %1689 = vrot.lane.b32.xlu0 %v1104, 111
      %v1690 = vpop.permute.xlu0 %1689
      %1691 = vrot.lane.b32.xlu0 %v1105, 111
      %v1692 = vpop.permute.xlu0 %1691
      %1693 = vrot.lane.b32.xlu0 %v1106, 111
      %v1694 = vpop.permute.xlu0 %1693
      %v1695 = vsel %vm559, %v1680, %v1682
      %v1696 = vsel %vm559, %v1684, %v1686
      %v1697 = vsel %vm559, %v1688, %v1690
      %v1698 = vsel %vm559, %v1692, %v1694
      %v1711 = vsel %vm559, %v1682, %v1680
      %v1712 = vsel %vm559, %v1686, %v1684
      %v1713 = vsel %vm559, %v1690, %v1688
      %v1714 = vsel %vm559, %v1694, %v1692
      %v1715 = vmul.f32 %v1695, %v568
      %v1716 = vmul.f32 %v1711, %v572
      %v1717 = vmul.f32 %v1696, %v568
      %v1718 = vmul.f32 %v1712, %v572
      %v1719 = vmul.f32 %v1697, %v568
      %v1720 = vmul.f32 %v1713, %v572
      %v1721 = vmul.f32 %v1698, %v568
      %v1722 = vmul.f32 %v1714, %v572
      %1723 = vset.pattern.permute.xlu0 123
      %1724 = vperm.xlu0 %1723, %v857
      %v1725 = vpop.permute.xlu0 %1724
      %1727 = vset.pattern.permute.xlu0 123
      %1728 = vperm.xlu0 %1727, %v858
      %v1729 = vpop.permute.xlu0 %1728
      %1731 = vset.pattern.permute.xlu0 123
      %1732 = vperm.xlu0 %1731, %v859
      %v1733 = vpop.permute.xlu0 %1732
      %1735 = vset.pattern.permute.xlu0 123
      %1736 = vperm.xlu0 %1735, %v860
      %v1737 = vpop.permute.xlu0 %1736
      %v1739 = vmul.f32 %v1725, %v1715
      %v1740 = vmul.f32 %v1725, %v1716
      %v1741 = vmul.f32 %v1729, %v1717
      %v1742 = vmul.f32 %v1729, %v1718
      %v1743 = vmul.f32 %v1733, %v1719
      %v1744 = vmul.f32 %v1733, %v1720
      %v1745 = vmul.f32 %v1737, %v1721
      %v1746 = vmul.f32 %v1737, %v1722
      %v1747 = vadd.f32 %v1671, %v1739
      %v1748 = vadd.f32 %v1672, %v1740
      %v1749 = vadd.f32 %v1673, %v1741
      %v1750 = vadd.f32 %v1674, %v1742
      %v1751 = vadd.f32 %v1675, %v1743
      %v1752 = vadd.f32 %v1676, %v1744
      %v1753 = vadd.f32 %v1677, %v1745
      %v1754 = vadd.f32 %v1678, %v1746
      %1755 = vset.pattern.permute.xlu0 2
      %1756 = vperm.xlu0 %1755, %v1075
      %v1757 = vpop.permute.xlu0 %1756
      %1759 = vset.pattern.permute.xlu0 2
      %1760 = vperm.xlu0 %1759, %v1076
      %v1761 = vpop.permute.xlu0 %1760
      %1763 = vset.pattern.permute.xlu0 2
      %1764 = vperm.xlu0 %1763, %v1077
      %v1765 = vpop.permute.xlu0 %1764
      %1767 = vset.pattern.permute.xlu0 2
      %1768 = vperm.xlu0 %1767, %v1078
      %v1769 = vpop.permute.xlu0 %1768
      %v1771 = vadd.f32 %v1747, %v1757
      %v1772 = vadd.f32 %v1748, %v1757
      %v1773 = vadd.f32 %v1749, %v1761
      %v1774 = vadd.f32 %v1750, %v1761
      %v1775 = vadd.f32 %v1751, %v1765
      %v1776 = vadd.f32 %v1752, %v1765
      %v1777 = vadd.f32 %v1753, %v1769
      %v1778 = vadd.f32 %v1754, %v1769
      %v1779 = vmax.f32 %v1771, 0.0
      %v1780 = vmax.f32 %v1772, 0.0
      %v1781 = vmax.f32 %v1773, 0.0
      %v1782 = vmax.f32 %v1774, 0.0
      %v1783 = vmax.f32 %v1775, 0.0
      %v1784 = vmax.f32 %v1776, 0.0
      %v1785 = vmax.f32 %v1777, 0.0
      %v1786 = vmax.f32 %v1778, 0.0
      %1787 = vset.pattern.permute.xlu0 3
      %1788 = vperm.xlu0 %1787, %v1075
      %v1789 = vpop.permute.xlu0 %1788
      %1791 = vset.pattern.permute.xlu0 3
      %1792 = vperm.xlu0 %1791, %v1076
      %v1793 = vpop.permute.xlu0 %1792
      %1795 = vset.pattern.permute.xlu0 3
      %1796 = vperm.xlu0 %1795, %v1077
      %v1797 = vpop.permute.xlu0 %1796
      %1799 = vset.pattern.permute.xlu0 3
      %1800 = vperm.xlu0 %1799, %v1078
      %v1801 = vpop.permute.xlu0 %1800
      %v1803 = vmul.f32 %v1789, %v1779
      %v1804 = vmul.f32 %v1789, %v1780
      %v1805 = vmul.f32 %v1793, %v1781
      %v1806 = vmul.f32 %v1793, %v1782
      %v1807 = vmul.f32 %v1797, %v1783
      %v1808 = vmul.f32 %v1797, %v1784
      %v1809 = vmul.f32 %v1801, %v1785
      %v1810 = vmul.f32 %v1801, %v1786
      %1811 = vset.pattern.permute.xlu0 4
      %1812 = vperm.xlu0 %1811, %v1075
      %v1813 = vpop.permute.xlu0 %1812
      %1815 = vset.pattern.permute.xlu0 4
      %1816 = vperm.xlu0 %1815, %v1076
      %v1817 = vpop.permute.xlu0 %1816
      %1819 = vset.pattern.permute.xlu0 4
      %1820 = vperm.xlu0 %1819, %v1077
      %v1821 = vpop.permute.xlu0 %1820
      %1823 = vset.pattern.permute.xlu0 4
      %1824 = vperm.xlu0 %1823, %v1078
      %v1825 = vpop.permute.xlu0 %1824
      %v1827 = vadd.f32 %v1803, %v1813
      %v1828 = vadd.f32 %v1804, %v1813
      %v1829 = vadd.f32 %v1805, %v1817
      %v1830 = vadd.f32 %v1806, %v1817
      %v1831 = vadd.f32 %v1807, %v1821
      %v1832 = vadd.f32 %v1808, %v1821
      %v1833 = vadd.f32 %v1809, %v1825
      %v1834 = vadd.f32 %v1810, %v1825
      %1839 = vrot.lane.b32.xlu0 %v1828, 2
      %v1840 = vpop.permute.xlu0 %1839
      %1841 = vrot.lane.b32.xlu0 %v1830, 2
      %v1842 = vpop.permute.xlu0 %1841
      %1843 = vrot.lane.b32.xlu0 %v1832, 2
      %v1844 = vpop.permute.xlu0 %1843
      %1845 = vrot.lane.b32.xlu0 %v1834, 2
      %v1846 = vpop.permute.xlu0 %1845
      %1855 = vrot.lane.b32.xlu0 %v1827, 2
      %v1856 = vpop.permute.xlu0 %1855
      %1857 = vrot.lane.b32.xlu0 %v1829, 2
      %v1858 = vpop.permute.xlu0 %1857
      %1859 = vrot.lane.b32.xlu0 %v1831, 2
      %v1860 = vpop.permute.xlu0 %1859
      %1861 = vrot.lane.b32.xlu0 %v1833, 2
      %v1862 = vpop.permute.xlu0 %1861
      %vm1863 = vcmask 15360
      %v1864 = vsel %vm1863, %v1856, %v1840
      %v1865 = vsel %vm1863, %v1858, %v1842
      %v1866 = vsel %vm1863, %v1860, %v1844
      %v1867 = vsel %vm1863, %v1862, %v1846
      %v1876 = vsel %vm1863, %v1840, %v1856
      %v1877 = vsel %vm1863, %v1842, %v1858
      %v1878 = vsel %vm1863, %v1844, %v1860
      %v1879 = vsel %vm1863, %v1846, %v1862
      %v1880 = vlaneseq
      %v1881 = vshrl.u32 %v1880, 7
      %v1882 = vsub.s32 0, %v1881
      %v1883 = vrot.slane %v199, %v1882
      %v1884 = vlaneseq
      %v1885 = vshrl.u32 %v1884, 7
      %v1886 = vsub.s32 0, %v1885
      %v1887 = vrot.slane %v200, %v1886
      %v1888 = vmul.f32 %v1883, %v1876
      %v1889 = vmul.f32 %v1887, %v1864
      %v1890 = vmul.f32 %v1883, %v1877
      %v1891 = vmul.f32 %v1887, %v1865
      %v1892 = vmul.f32 %v1883, %v1878
      %v1893 = vmul.f32 %v1887, %v1866
      %v1894 = vmul.f32 %v1883, %v1879
      %v1895 = vmul.f32 %v1887, %v1867
      %v1896 = vadd.f32 %v1888, 0.0
      %v1897 = vadd.f32 %v1889, 0.0
      %v1898 = vadd.f32 %v1890, 0.0
      %v1899 = vadd.f32 %v1891, 0.0
      %v1900 = vadd.f32 %v1892, 0.0
      %v1901 = vadd.f32 %v1893, 0.0
      %v1902 = vadd.f32 %v1894, 0.0
      %v1903 = vadd.f32 %v1895, 0.0
      %1904 = vrot.lane.b32.xlu0 %v1828, 1
      %v1905 = vpop.permute.xlu0 %1904
      %1906 = vrot.lane.b32.xlu0 %v1830, 1
      %v1907 = vpop.permute.xlu0 %1906
      %1908 = vrot.lane.b32.xlu0 %v1832, 1
      %v1909 = vpop.permute.xlu0 %1908
      %1910 = vrot.lane.b32.xlu0 %v1834, 1
      %v1911 = vpop.permute.xlu0 %1910
      %1916 = vrot.lane.b32.xlu0 %v1827, 1
      %v1917 = vpop.permute.xlu0 %1916
      %1918 = vrot.lane.b32.xlu0 %v1829, 1
      %v1919 = vpop.permute.xlu0 %1918
      %1920 = vrot.lane.b32.xlu0 %v1831, 1
      %v1921 = vpop.permute.xlu0 %1920
      %1922 = vrot.lane.b32.xlu0 %v1833, 1
      %v1923 = vpop.permute.xlu0 %1922
      %v1924 = vsel %vm400, %v1917, %v1905
      %v1925 = vsel %vm400, %v1919, %v1907
      %v1926 = vsel %vm400, %v1921, %v1909
      %v1927 = vsel %vm400, %v1923, %v1911
      %v1936 = vsel %vm400, %v1905, %v1917
      %v1937 = vsel %vm400, %v1907, %v1919
      %v1938 = vsel %vm400, %v1909, %v1921
      %v1939 = vsel %vm400, %v1911, %v1923
      %v1940 = vlaneseq
      %v1941 = vshrl.u32 %v1940, 7
      %v1942 = vsub.s32 1, %v1941
      %v1943 = vrot.slane %v199, %v1942
      %v1944 = vlaneseq
      %v1945 = vshrl.u32 %v1944, 7
      %v1946 = vsub.s32 1, %v1945
      %v1947 = vrot.slane %v200, %v1946
      %v1948 = vmul.f32 %v1943, %v1936
      %v1949 = vmul.f32 %v1947, %v1924
      %v1950 = vmul.f32 %v1943, %v1937
      %v1951 = vmul.f32 %v1947, %v1925
      %v1952 = vmul.f32 %v1943, %v1938
      %v1953 = vmul.f32 %v1947, %v1926
      %v1954 = vmul.f32 %v1943, %v1939
      %v1955 = vmul.f32 %v1947, %v1927
      %v1956 = vadd.f32 %v1896, %v1948
      %v1957 = vadd.f32 %v1897, %v1949
      %v1958 = vadd.f32 %v1898, %v1950
      %v1959 = vadd.f32 %v1899, %v1951
      %v1960 = vadd.f32 %v1900, %v1952
      %v1961 = vadd.f32 %v1901, %v1953
      %v1962 = vadd.f32 %v1902, %v1954
      %v1963 = vadd.f32 %v1903, %v1955
      %v1964 = vlaneseq
      %v1965 = vshrl.u32 %v1964, 7
      %v1966 = vsub.s32 2, %v1965
      %v1967 = vrot.slane %v199, %v1966
      %v1968 = vlaneseq
      %v1969 = vshrl.u32 %v1968, 7
      %v1970 = vsub.s32 2, %v1969
      %v1971 = vrot.slane %v200, %v1970
      %v1972 = vmul.f32 %v1967, %v1827
      %v1973 = vmul.f32 %v1971, %v1828
      %v1974 = vmul.f32 %v1967, %v1829
      %v1975 = vmul.f32 %v1971, %v1830
      %v1976 = vmul.f32 %v1967, %v1831
      %v1977 = vmul.f32 %v1971, %v1832
      %v1978 = vmul.f32 %v1967, %v1833
      %v1979 = vmul.f32 %v1971, %v1834
      %v1980 = vadd.f32 %v1956, %v1972
      %v1981 = vadd.f32 %v1957, %v1973
      %v1982 = vadd.f32 %v1958, %v1974
      %v1983 = vadd.f32 %v1959, %v1975
      %v1984 = vadd.f32 %v1960, %v1976
      %v1985 = vadd.f32 %v1961, %v1977
      %v1986 = vadd.f32 %v1962, %v1978
      %v1987 = vadd.f32 %v1963, %v1979
      %1988 = vrot.lane.b32.xlu0 %v1827, 127
      %v1989 = vpop.permute.xlu0 %1988
      %1990 = vrot.lane.b32.xlu0 %v1828, 127
      %v1991 = vpop.permute.xlu0 %1990
      %1992 = vrot.lane.b32.xlu0 %v1829, 127
      %v1993 = vpop.permute.xlu0 %1992
      %1994 = vrot.lane.b32.xlu0 %v1830, 127
      %v1995 = vpop.permute.xlu0 %1994
      %1996 = vrot.lane.b32.xlu0 %v1831, 127
      %v1997 = vpop.permute.xlu0 %1996
      %1998 = vrot.lane.b32.xlu0 %v1832, 127
      %v1999 = vpop.permute.xlu0 %1998
      %2000 = vrot.lane.b32.xlu0 %v1833, 127
      %v2001 = vpop.permute.xlu0 %2000
      %2002 = vrot.lane.b32.xlu0 %v1834, 127
      %v2003 = vpop.permute.xlu0 %2002
      %v2004 = vsel %vm451, %v1989, %v1991
      %v2005 = vsel %vm451, %v1993, %v1995
      %v2006 = vsel %vm451, %v1997, %v1999
      %v2007 = vsel %vm451, %v2001, %v2003
      %v2020 = vsel %vm451, %v1991, %v1989
      %v2021 = vsel %vm451, %v1995, %v1993
      %v2022 = vsel %vm451, %v1999, %v1997
      %v2023 = vsel %vm451, %v2003, %v2001
      %v2024 = vlaneseq
      %v2025 = vshrl.u32 %v2024, 7
      %v2026 = vsub.s32 3, %v2025
      %v2027 = vrot.slane %v199, %v2026
      %v2028 = vlaneseq
      %v2029 = vshrl.u32 %v2028, 7
      %v2030 = vsub.s32 3, %v2029
      %v2031 = vrot.slane %v200, %v2030
      %v2032 = vmul.f32 %v2027, %v2004
      %v2033 = vmul.f32 %v2031, %v2020
      %v2034 = vmul.f32 %v2027, %v2005
      %v2035 = vmul.f32 %v2031, %v2021
      %v2036 = vmul.f32 %v2027, %v2006
      %v2037 = vmul.f32 %v2031, %v2022
      %v2038 = vmul.f32 %v2027, %v2007
      %v2039 = vmul.f32 %v2031, %v2023
      %v2040 = vadd.f32 %v1980, %v2032
      %v2041 = vadd.f32 %v1981, %v2033
      %v2042 = vadd.f32 %v1982, %v2034
      %v2043 = vadd.f32 %v1983, %v2035
      %v2044 = vadd.f32 %v1984, %v2036
      %v2045 = vadd.f32 %v1985, %v2037
      %v2046 = vadd.f32 %v1986, %v2038
      %v2047 = vadd.f32 %v1987, %v2039
      %2052 = vrot.lane.b32.xlu0 %v2041, 32
      %v2053 = vpop.permute.xlu0 %2052
      %2054 = vrot.lane.b32.xlu0 %v2043, 32
      %v2055 = vpop.permute.xlu0 %2054
      %2056 = vrot.lane.b32.xlu0 %v2045, 32
      %v2057 = vpop.permute.xlu0 %2056
      %2058 = vrot.lane.b32.xlu0 %v2047, 32
      %v2059 = vpop.permute.xlu0 %2058
      %2068 = vrot.lane.b32.xlu0 %v2040, 32
      %v2069 = vpop.permute.xlu0 %2068
      %2070 = vrot.lane.b32.xlu0 %v2042, 32
      %v2071 = vpop.permute.xlu0 %2070
      %2072 = vrot.lane.b32.xlu0 %v2044, 32
      %v2073 = vpop.permute.xlu0 %2072
      %2074 = vrot.lane.b32.xlu0 %v2046, 32
      %v2075 = vpop.permute.xlu0 %2074
      %vm2076 = vcmask 261120
      %v2077 = vsel %vm2076, %v2069, %v2053
      %v2078 = vsel %vm2076, %v2071, %v2055
      %v2079 = vsel %vm2076, %v2073, %v2057
      %v2080 = vsel %vm2076, %v2075, %v2059
      %v2089 = vsel %vm2076, %v2053, %v2069
      %v2090 = vsel %vm2076, %v2055, %v2071
      %v2091 = vsel %vm2076, %v2057, %v2073
      %v2092 = vsel %vm2076, %v2059, %v2075
      %v2093 = vlaneseq
      %v2094 = vshrl.u32 %v2093, 7
      %v2095 = vsub.s32 0, %v2094
      %v2096 = vrot.slane %v201, %v2095
      %v2097 = vlaneseq
      %v2098 = vshrl.u32 %v2097, 7
      %v2099 = vsub.s32 0, %v2098
      %v2100 = vrot.slane %v202, %v2099
      %v2101 = vmul.f32 %v2096, %v2089
      %v2102 = vmul.f32 %v2100, %v2077
      %v2103 = vmul.f32 %v2096, %v2090
      %v2104 = vmul.f32 %v2100, %v2078
      %v2105 = vmul.f32 %v2096, %v2091
      %v2106 = vmul.f32 %v2100, %v2079
      %v2107 = vmul.f32 %v2096, %v2092
      %v2108 = vmul.f32 %v2100, %v2080
      %v2109 = vadd.f32 %v2101, 0.0
      %v2110 = vadd.f32 %v2102, 0.0
      %v2111 = vadd.f32 %v2103, 0.0
      %v2112 = vadd.f32 %v2104, 0.0
      %v2113 = vadd.f32 %v2105, 0.0
      %v2114 = vadd.f32 %v2106, 0.0
      %v2115 = vadd.f32 %v2107, 0.0
      %v2116 = vadd.f32 %v2108, 0.0
      %2117 = vrot.lane.b32.xlu0 %v2041, 16
      %v2118 = vpop.permute.xlu0 %2117
      %2119 = vrot.lane.b32.xlu0 %v2043, 16
      %v2120 = vpop.permute.xlu0 %2119
      %2121 = vrot.lane.b32.xlu0 %v2045, 16
      %v2122 = vpop.permute.xlu0 %2121
      %2123 = vrot.lane.b32.xlu0 %v2047, 16
      %v2124 = vpop.permute.xlu0 %2123
      %2129 = vrot.lane.b32.xlu0 %v2040, 16
      %v2130 = vpop.permute.xlu0 %2129
      %2131 = vrot.lane.b32.xlu0 %v2042, 16
      %v2132 = vpop.permute.xlu0 %2131
      %2133 = vrot.lane.b32.xlu0 %v2044, 16
      %v2134 = vpop.permute.xlu0 %2133
      %2135 = vrot.lane.b32.xlu0 %v2046, 16
      %v2136 = vpop.permute.xlu0 %2135
      %v2137 = vsel %vm328, %v2130, %v2118
      %v2138 = vsel %vm328, %v2132, %v2120
      %v2139 = vsel %vm328, %v2134, %v2122
      %v2140 = vsel %vm328, %v2136, %v2124
      %v2149 = vsel %vm328, %v2118, %v2130
      %v2150 = vsel %vm328, %v2120, %v2132
      %v2151 = vsel %vm328, %v2122, %v2134
      %v2152 = vsel %vm328, %v2124, %v2136
      %v2153 = vlaneseq
      %v2154 = vshrl.u32 %v2153, 7
      %v2155 = vsub.s32 1, %v2154
      %v2156 = vrot.slane %v201, %v2155
      %v2157 = vlaneseq
      %v2158 = vshrl.u32 %v2157, 7
      %v2159 = vsub.s32 1, %v2158
      %v2160 = vrot.slane %v202, %v2159
      %v2161 = vmul.f32 %v2156, %v2149
      %v2162 = vmul.f32 %v2160, %v2137
      %v2163 = vmul.f32 %v2156, %v2150
      %v2164 = vmul.f32 %v2160, %v2138
      %v2165 = vmul.f32 %v2156, %v2151
      %v2166 = vmul.f32 %v2160, %v2139
      %v2167 = vmul.f32 %v2156, %v2152
      %v2168 = vmul.f32 %v2160, %v2140
      %v2169 = vadd.f32 %v2109, %v2161
      %v2170 = vadd.f32 %v2110, %v2162
      %v2171 = vadd.f32 %v2111, %v2163
      %v2172 = vadd.f32 %v2112, %v2164
      %v2173 = vadd.f32 %v2113, %v2165
      %v2174 = vadd.f32 %v2114, %v2166
      %v2175 = vadd.f32 %v2115, %v2167
      %v2176 = vadd.f32 %v2116, %v2168
      %v2177 = vlaneseq
      %v2178 = vshrl.u32 %v2177, 7
      %v2179 = vsub.s32 2, %v2178
      %v2180 = vrot.slane %v201, %v2179
      %v2181 = vlaneseq
      %v2182 = vshrl.u32 %v2181, 7
      %v2183 = vsub.s32 2, %v2182
      %v2184 = vrot.slane %v202, %v2183
      %v2185 = vmul.f32 %v2180, %v2040
      %v2186 = vmul.f32 %v2184, %v2041
      %v2187 = vmul.f32 %v2180, %v2042
      %v2188 = vmul.f32 %v2184, %v2043
      %v2189 = vmul.f32 %v2180, %v2044
      %v2190 = vmul.f32 %v2184, %v2045
      %v2191 = vmul.f32 %v2180, %v2046
      %v2192 = vmul.f32 %v2184, %v2047
      %v2193 = vadd.f32 %v2169, %v2185
      %v2194 = vadd.f32 %v2170, %v2186
      %v2195 = vadd.f32 %v2171, %v2187
      %v2196 = vadd.f32 %v2172, %v2188
      %v2197 = vadd.f32 %v2173, %v2189
      %v2198 = vadd.f32 %v2174, %v2190
      %v2199 = vadd.f32 %v2175, %v2191
      %v2200 = vadd.f32 %v2176, %v2192
      %2201 = vrot.lane.b32.xlu0 %v2040, 112
      %v2202 = vpop.permute.xlu0 %2201
      %2203 = vrot.lane.b32.xlu0 %v2041, 112
      %v2204 = vpop.permute.xlu0 %2203
      %2205 = vrot.lane.b32.xlu0 %v2042, 112
      %v2206 = vpop.permute.xlu0 %2205
      %2207 = vrot.lane.b32.xlu0 %v2043, 112
      %v2208 = vpop.permute.xlu0 %2207
      %2209 = vrot.lane.b32.xlu0 %v2044, 112
      %v2210 = vpop.permute.xlu0 %2209
      %2211 = vrot.lane.b32.xlu0 %v2045, 112
      %v2212 = vpop.permute.xlu0 %2211
      %2213 = vrot.lane.b32.xlu0 %v2046, 112
      %v2214 = vpop.permute.xlu0 %2213
      %2215 = vrot.lane.b32.xlu0 %v2047, 112
      %v2216 = vpop.permute.xlu0 %2215
      %v2217 = vsel %vm523, %v2202, %v2204
      %v2218 = vsel %vm523, %v2206, %v2208
      %v2219 = vsel %vm523, %v2210, %v2212
      %v2220 = vsel %vm523, %v2214, %v2216
      %v2233 = vsel %vm523, %v2204, %v2202
      %v2234 = vsel %vm523, %v2208, %v2206
      %v2235 = vsel %vm523, %v2212, %v2210
      %v2236 = vsel %vm523, %v2216, %v2214
      %v2237 = vlaneseq
      %v2238 = vshrl.u32 %v2237, 7
      %v2239 = vsub.s32 3, %v2238
      %v2240 = vrot.slane %v201, %v2239
      %v2241 = vlaneseq
      %v2242 = vshrl.u32 %v2241, 7
      %v2243 = vsub.s32 3, %v2242
      %v2244 = vrot.slane %v202, %v2243
      %v2245 = vmul.f32 %v2240, %v2217
      %v2246 = vmul.f32 %v2244, %v2233
      %v2247 = vmul.f32 %v2240, %v2218
      %v2248 = vmul.f32 %v2244, %v2234
      %v2249 = vmul.f32 %v2240, %v2219
      %v2250 = vmul.f32 %v2244, %v2235
      %v2251 = vmul.f32 %v2240, %v2220
      %v2252 = vmul.f32 %v2244, %v2236
      %v2253 = vadd.f32 %v2193, %v2245
      %v2254 = vadd.f32 %v2194, %v2246
      %v2255 = vadd.f32 %v2195, %v2247
      %v2256 = vadd.f32 %v2196, %v2248
      %v2257 = vadd.f32 %v2197, %v2249
      %v2258 = vadd.f32 %v2198, %v2250
      %v2259 = vadd.f32 %v2199, %v2251
      %v2260 = vadd.f32 %v2200, %v2252
      %v2261 = vadd.f32 %v1099, %v179
      %v2262 = vadd.f32 %v1100, %v180
      %v2263 = vmax.f32 %v2261, 0.0
      %v2264 = vmax.f32 %v2262, 0.0
      %2265 = vst [vmem:[%s177] sm:$0xff] %v2263
      %2266 = vst [vmem:[%s177 + $0x8] sm:$0xff] %v2264
      %v2267 = vadd.f32 %v2253, %v181
      %v2268 = vadd.f32 %v2254, %v182
      %v2269 = vmax.f32 %v2267, 0.0
      %v2270 = vmax.f32 %v2268, 0.0
      %2271 = vst [vmem:[%s177 + $0x10] sm:$0xff] %v2269
      %2272 = vst [vmem:[%s177 + $0x18] sm:$0xff] %v2270
      %v2273 = vadd.f32 %v1101, %v183
      %v2274 = vadd.f32 %v1102, %v184
      %v2275 = vmax.f32 %v2273, 0.0
      %v2276 = vmax.f32 %v2274, 0.0
      %2277 = vst [vmem:[%s177 + $0x20] sm:$0xff] %v2275
      %2278 = vst [vmem:[%s177 + $0x28] sm:$0xff] %v2276
      %v2279 = vadd.f32 %v2255, %v185
      %v2280 = vadd.f32 %v2256, %v186
      %v2281 = vmax.f32 %v2279, 0.0
      %v2282 = vmax.f32 %v2280, 0.0
      %2283 = vst [vmem:[%s177 + $0x30] sm:$0xff] %v2281
      %2284 = vst [vmem:[%s177 + $0x38] sm:$0xff] %v2282
      %v2285 = vadd.f32 %v1103, %v187
      %v2286 = vadd.f32 %v1104, %v188
      %v2287 = vmax.f32 %v2285, 0.0
      %v2288 = vmax.f32 %v2286, 0.0
      %2289 = vst [vmem:[%s177 + $0x40] sm:$0xff] %v2287
      %2290 = vst [vmem:[%s177 + $0x48] sm:$0xff] %v2288
      %v2291 = vadd.f32 %v2257, %v189
      %v2292 = vadd.f32 %v2258, %v190
      %v2293 = vmax.f32 %v2291, 0.0
      %v2294 = vmax.f32 %v2292, 0.0
      %2295 = vst [vmem:[%s177 + $0x50] sm:$0xff] %v2293
      %2296 = vst [vmem:[%s177 + $0x58] sm:$0xff] %v2294
      %v2297 = vadd.f32 %v1105, %v191
      %v2298 = vadd.f32 %v1106, %v192
      %v2299 = vmax.f32 %v2297, 0.0
      %v2300 = vmax.f32 %v2298, 0.0
      %2301 = vst [vmem:[%s177 + $0x60] sm:$0xff] %v2299
      %2302 = vst [vmem:[%s177 + $0x68] sm:$0xff] %v2300
      %v2303 = vadd.f32 %v2259, %v193
      %v2304 = vadd.f32 %v2260, %v194
      %v2305 = vmax.f32 %v2303, 0.0
      %v2306 = vmax.f32 %v2304, 0.0
      %2307 = vst [vmem:[%s177 + $0x70] sm:$0xff] %v2305
      %2308 = vst [vmem:[%s177 + $0x78] sm:$0xff] %v2306
      %s2309 = smul.u32 8, %s14
      %p2310 = scmp.lt.s32.totalorder %s2309, 15
      %s2311 = scalar_select %p2310, %s2309, 15
      %s2312 = smul.addr %s2311, 2
      %s2313 = smul.addr %s2312, 8
      %s2314 = scalar_lea.vmem %s3, %s2313
      // Predicated region
      $region33: #{ml_bottleneck_forward.1} parent=31 // pred_check
        %p2315 = pneg %p100
      $region34: #{ml_bottleneck_forward.1} parent=31 // pred_check_branch
        %2317 = sbr.rel (%p2315) target = $region36
      $region35: #{ml_bottleneck_forward.1} parent=31 // pred_region
        %s2318 = smul.u32 8, %s14
      $region36: #{ml_bottleneck_forward.1} parent=31 // pred_fallthru
        _
    $region32: #{ml_bottleneck_forward.1} parent=5 // pred_fallthru
      _
    %p2319 = scmp.le.s32.totalorder 2, %s9
    // Predicated region
    $region37: #{ml_bottleneck_forward.1} parent=5 // pred_check
      %p2320 = pneg %p2319
    $region38: #{ml_bottleneck_forward.1} parent=5 // pred_check_branch
      %2322 = sbr.rel (%p2320) target = $region40
    $region39: #{ml_bottleneck_forward.1} parent=5 // pred_region
      %s2323 = ssub.s32 %s9, 2
      // Predicated region
      $region41: #{ml_bottleneck_forward.1} parent=39 // pred_check
        %p2324 = pneg %p106
      $region42: #{ml_bottleneck_forward.1} parent=39 // pred_check_branch
        %2326 = sbr.rel (%p2324) target = $region44
      $region43: #{ml_bottleneck_forward.1} parent=39 // pred_region
        %s2327 = smul.u32 8, %s15
        %p2328 = scmp.lt.s32.totalorder %s2327, 15
        %s2329 = scalar_select %p2328, %s2327, 15
        %s2330 = smul.addr %s2329, 2
        %s2331 = smul.addr %s2330, 8
        %s2332 = scalar_lea.vmem %s3, %s2331
      $region44: #{ml_bottleneck_forward.1} parent=39 // pred_fallthru
        _
    $region40: #{ml_bottleneck_forward.1} parent=5 // pred_fallthru
      _
  $region6: #{ml_bottleneck_forward.1} parent=0 // loop_footer
    %s13 = sadd.s32 1, %s9
  $region7: #{ml_bottleneck_forward.1} parent=0 // loop_footer_branch
    %8 = sbr.rel target = $region3
  $region8: #{ml_bottleneck_forward.1} parent=0 // loop_exit
    _

</llo_original>
